<compile_context>
chip_gen: v7x
topology: tpu7x:2x2x1
jax: 0.10.0
libtpu: 0.0.40
codegen_flags: <defaults>
</compile_context>

<pallas_src>
import functools

import jax
import jax.numpy as jnp
from jax.experimental import pallas as pl
from jax.experimental.pallas import tpu as pltpu

USE_BF16_MXU = True
_MXU_DTYPE = jnp.bfloat16 if USE_BF16_MXU else jnp.float32


# ----------------------------------------------------------------------------
# Fully fused per-sample kernel
# ----------------------------------------------------------------------------
def _lenet5_kernel(p1_ref, w1_ref, b1_ref, mask1_ref,
                   w2_ref, b2_ref, mask2_ref,
                   wfc1_ref, bfc1_ref, wfc2_ref, bfc2_ref, wfc3_ref, bfc3_ref,
                   o_ref, *, apply_ln):
    f32 = jnp.float32
    cdt = w1_ref.dtype          # MXU operand dtype (bf16 or f32)

    # ---- conv1: one lane-dense matmul (6,25)x(25,1024) + bias + ReLU ---------
    # Columns: q*256 + (pi*14+pj), q = pool-window position, lanes [196,256) of
    # each q-block are zero-padded patches (ignored by masks/pool).
    y1 = jnp.dot(w1_ref[...], p1_ref[0], preferred_element_type=f32)   # (6,1024)
    y1 = jnp.maximum(y1 + b1_ref[...], 0.0)

    # 2x2 max-pool == elementwise max of the four 128-aligned q-blocks.
    pooled1 = jnp.maximum(jnp.maximum(y1[:, 0:256],   y1[:, 256:512]),
                          jnp.maximum(y1[:, 512:768], y1[:, 768:1024]))  # (6,256)

    if apply_ln:
        # LayerNorm([6,28,28]): stats over the pre-pool ReLU activations (masked
        # to the 6*784 valid lanes); LN commutes with max-pool (positive scale).
        mask1 = mask1_ref[...]                                           # (1,1024)
        n1 = 6.0 * 28.0 * 28.0
        mean1 = jnp.sum(y1 * mask1, keepdims=True) / n1
        var1 = jnp.sum(((y1 - mean1) * mask1) ** 2, keepdims=True) / n1
        pooled1 = (pooled1 - mean1) * jax.lax.rsqrt(var1 + 1e-5)

    # a1[ci, pi*14+pj] is the pooled 14x14 map; lanes >=196 are finite garbage
    # that is never read for a valid conv2 output column.
    a1 = pooled1.astype(cdt)                                             # (6,256)

    # ---- conv2 via shift decomposition: 25 accumulated (16,6)x(6,196) dots ----
    # Output column m = oi*14+oj (valid for oi,oj < 10); input column = m + s,
    # s = di*14+dj, i.e. a static lane slice of a1.
    w2 = w2_ref[...]                                                     # (16,150)
    acc2 = jnp.zeros((16, 196), f32)
    for di in range(5):
        for dj in range(5):
            idx = di * 5 + dj
            s = di * 14 + dj
            acc2 = acc2 + jnp.dot(w2[:, idx * 6:(idx + 1) * 6],
                                  a1[:, s:s + 196],
                                  preferred_element_type=f32)
    y2 = jnp.maximum(acc2 + b2_ref[...], 0.0)                            # (16,196)

    # 2x2 max-pool on the 14-wide grid: max over lane offsets {0,1,14,15}.
    # Pooled value for (pi,pj) lands at lane 28*pi + 2*pj (<=120) of m4.
    m4 = jnp.maximum(jnp.maximum(y2[:, 0:128],  y2[:, 1:129]),
                     jnp.maximum(y2[:, 14:142], y2[:, 15:143]))          # (16,128)

    if apply_ln:
        # LayerNorm([16,10,10]): masked stats over the 16*100 valid columns.
        mask2 = mask2_ref[...]                                           # (1,196)
        n2 = 16.0 * 10.0 * 10.0
        mean2 = jnp.sum(y2 * mask2, keepdims=True) / n2
        var2 = jnp.sum(((y2 - mean2) * mask2) ** 2, keepdims=True) / n2
        m4 = (m4 - mean2) * jax.lax.rsqrt(var2 + 1e-5)

    p2 = m4.astype(cdt)                                                  # (16,128)

    # ---- fc1: sum over the 16 channels of (1,128)x(128,128) dots --------------
    # wfc1 rows are pre-scattered to the pooled-conv2 lane layout; non-pooled
    # lanes have zero weight rows, so no in-kernel compaction/masking is needed.
    h = jnp.zeros((1, 128), f32)
    for ci in range(16):
        h = h + jnp.dot(p2[ci:ci + 1, :], wfc1_ref[ci],
                        preferred_element_type=f32)
    h = jnp.maximum(h + bfc1_ref[...], 0.0)                              # (1,128)
    if apply_ln:                                                         # LN(120)
        v = h[:, :120]
        mean = jnp.sum(v, keepdims=True) / 120.0
        var = jnp.sum((v - mean) ** 2, keepdims=True) / 120.0
        h = (h - mean) * jax.lax.rsqrt(var + 1e-5)

    # ---- fc2 + ReLU + LN(84) --------------------------------------------------
    h = jnp.maximum(jnp.dot(h.astype(cdt), wfc2_ref[...],
                            preferred_element_type=f32) + bfc2_ref[...], 0.0)
    if apply_ln:
        v = h[:, :84]
        mean = jnp.sum(v, keepdims=True) / 84.0
        var = jnp.sum((v - mean) ** 2, keepdims=True) / 84.0
        h = (h - mean) * jax.lax.rsqrt(var + 1e-5)

    # ---- fc3 (lane-dense (1,128) store; valid logits in lanes [0,10)) ---------
    o_ref[0] = (jnp.dot(h.astype(cdt), wfc3_ref[...],
                        preferred_element_type=f32) + bfc3_ref[...])


# ----------------------------------------------------------------------------
# pallas_call wrapper: grid=(batch,), everything else is a replicated full block
# ----------------------------------------------------------------------------
def _lenet5_pallas(p1, prep, apply_ln):
    batch = p1.shape[0]
    kernel = functools.partial(_lenet5_kernel, apply_ln=apply_ln)

    def rep2(a):
        return pl.BlockSpec(a.shape, lambda b: (0, 0))

    def rep3(a):
        return pl.BlockSpec(a.shape, lambda b: (0, 0, 0))

    out = pl.pallas_call(
        kernel,
        out_shape=jax.ShapeDtypeStruct((batch, 1, 128), jnp.float32),
        grid=(batch,),
        in_specs=[
            pl.BlockSpec((1, 25, 1024), lambda b: (b, 0, 0)),
            rep2(prep["w1"]), rep2(prep["b1"]), rep2(prep["mask1"]),
            rep2(prep["w2"]), rep2(prep["b2"]), rep2(prep["mask2"]),
            rep3(prep["wfc1"]), rep2(prep["bfc1"]),
            rep2(prep["wfc2"]), rep2(prep["bfc2"]),
            rep2(prep["wfc3"]), rep2(prep["bfc3"]),
        ],
        out_specs=pl.BlockSpec((1, 1, 128), lambda b: (b, 0, 0)),
        compiler_params=pltpu.CompilerParams(
            dimension_semantics=("parallel",)),       # 2x on v7x (2 TCs)
    )(p1, prep["w1"], prep["b1"], prep["mask1"],
      prep["w2"], prep["b2"], prep["mask2"],
      prep["wfc1"], prep["bfc1"], prep["wfc2"], prep["bfc2"],
      prep["wfc3"], prep["bfc3"])
    return out.reshape(batch, 128)


# ----------------------------------------------------------------------------
# Parameter preparation (done ONCE, outside the per-step forward)
# ----------------------------------------------------------------------------
def prepare_params(params):
    mdt = _MXU_DTYPE
    f32 = jnp.float32

    # conv1: (6,1,5,5) -> (6,25); column = di*5 + dj (Cin = 1).
    w1 = params["conv1_w"].reshape(6, 25).astype(mdt)
    b1 = params["conv1_b"].reshape(6, 1).astype(f32)

    # conv2: (16,6,5,5) -> (16,150); column = (di*5+dj)*6 + ci (shift-major).
    w2 = jnp.transpose(params["conv2_w"], (0, 2, 3, 1)).reshape(16, 150).astype(mdt)
    b2 = params["conv2_b"].reshape(16, 1).astype(f32)

    # fc1: scatter the (120,400) weights into the pooled-conv2 lane layout:
    # pooled value (ci,pi,pj) lives at lane 28*pi + 2*pj of channel row ci.
    lane = (28 * jnp.arange(5)[:, None] + 2 * jnp.arange(5)[None, :]).reshape(-1)
    wflat = params["fc1_w"].T.reshape(16, 25, 120)          # [ci, pi*5+pj, out]
    wfc1 = jnp.zeros((16, 128, 128), f32).at[:, lane, :120].set(wflat).astype(mdt)
    bfc1 = jnp.zeros((1, 128), f32).at[0, :120].set(params["fc1_b"])

    # fc2/fc3: pad to 128x128; zero rows kill the LN-normalized padding lanes.
    wfc2 = jnp.zeros((128, 128), f32).at[:120, :84].set(params["fc2_w"].T).astype(mdt)
    bfc2 = jnp.zeros((1, 128), f32).at[0, :84].set(params["fc2_b"])
    wfc3 = jnp.zeros((128, 128), f32).at[:84, :10].set(params["fc3_w"].T).astype(mdt)
    bfc3 = jnp.zeros((1, 128), f32).at[0, :10].set(params["fc3_b"])

    # LayerNorm validity masks over the in-kernel activation layouts.
    l1 = jnp.arange(1024)
    mask1 = ((l1 % 256) < 196).astype(f32)[None, :]                      # (1,1024)
    l2 = jnp.arange(196)
    mask2 = (((l2 % 14) < 10) & (l2 < 140)).astype(f32)[None, :]         # (1,196)

    return dict(w1=w1, b1=b1, w2=w2, b2=b2,
                wfc1=wfc1, bfc1=bfc1, wfc2=wfc2, bfc2=bfc2,
                wfc3=wfc3, bfc3=bfc3, mask1=mask1, mask2=mask2)


# ----------------------------------------------------------------------------
# LeNet5 forward
# ----------------------------------------------------------------------------
def lenet5_forward(prep, x, noise_std, normalization_type="Layer"):
    # x: (B, 1, 28, 28) float32, NCHW.
    del noise_std  # TODO(synk): SI noise-injection semantics unavailable (treated as 0).
    if normalization_type == "Batch":
        # TODO(synk): BatchNorm (affine=False, no running stats) branch not implemented.
        raise NotImplementedError("normalization_type='Batch' is not implemented")
    apply_ln = normalization_type == "Layer"
    batch = x.shape[0]

    # conv1 im2col in pool-window-major, 256-padded layout: ONE fused patches op
    # plus a few reshapes (replaces ~100 slice/stack HLOs of the old glue).
    p = jax.lax.conv_general_dilated_patches(
        x.astype(jnp.float32), filter_shape=(5, 5), window_strides=(1, 1),
        padding=((2, 2), (2, 2)),
        precision=jax.lax.Precision.HIGHEST)                 # (B, 25, 28, 28)
    p = p.reshape(batch, 25, 14, 2, 14, 2).transpose(0, 1, 3, 5, 2, 4)
    p = p.reshape(batch, 25, 4, 196)
    p = jnp.pad(p, ((0, 0), (0, 0), (0, 0), (0, 60)))        # pad each q-block to 256
    p = p.reshape(batch, 25, 1024).astype(prep["w1"].dtype)

    out = _lenet5_pallas(p, prep, apply_ln)                  # (B, 128)
    return out[:, :10]


def init_params(key):
    # Deterministic Kaiming-uniform-style init (same shapes as the PyTorch module).
    def uni(k, shape, fan_in):
        bound = 1.0 / jnp.sqrt(float(fan_in))
        return jax.random.uniform(k, shape, jnp.float32, -bound, bound)

    ks = jax.random.split(key, 10)
    return {
        "conv1_w": uni(ks[0], (6, 1, 5, 5), 1 * 5 * 5),
        "conv1_b": uni(ks[1], (6,), 1 * 5 * 5),
        "conv2_w": uni(ks[2], (16, 6, 5, 5), 6 * 5 * 5),
        "conv2_b": uni(ks[3], (16,), 6 * 5 * 5),
        "fc1_w": uni(ks[4], (120, 400), 400),
        "fc1_b": uni(ks[5], (120,), 400),
        "fc2_w": uni(ks[6], (84, 120), 120),
        "fc2_b": uni(ks[7], (84,), 120),
        "fc3_w": uni(ks[8], (10, 84), 84),
        "fc3_b": uni(ks[9], (10,), 84),
    }


if __name__ == "__main__":
    key = jax.random.PRNGKey(0)
    pkey, xkey = jax.random.split(key)
    params = init_params(pkey)
    prep = prepare_params(params)          # one-time weight layout prep (not per step)
    # LeNet5 architecture fixes the spatial shape: (batch=2, C=1, 28, 28).
    x = jax.random.normal(xkey, (2, 1, 28, 28), dtype=jnp.float32)
    noise_std = 0.0

    fwd = jax.jit(functools.partial(lenet5_forward, normalization_type="Layer"))
    out = fwd(prep, x, noise_std)
    out = jax.block_until_ready(out)
    assert out.shape == (2, 10) and out.dtype == jnp.float32
    print("KERNEL_OK")
</pallas_src>

<mosaic_0001>
module attributes {stable_mosaic.version = 11 : i64} {
  func.func @_lenet5_kernel(%arg0: i32, %arg1: memref<1x25x1024xbf16, #tpu.memory_space<vmem>>, %arg2: memref<6x25xbf16, #tpu.memory_space<vmem>>, %arg3: memref<6x1xf32, #tpu.memory_space<vmem>>, %arg4: memref<1x1024xf32, #tpu.memory_space<vmem>>, %arg5: memref<16x150xbf16, #tpu.memory_space<vmem>>, %arg6: memref<16x1xf32, #tpu.memory_space<vmem>>, %arg7: memref<1x196xf32, #tpu.memory_space<vmem>>, %arg8: memref<16x128x128xbf16, #tpu.memory_space<vmem>>, %arg9: memref<1x128xf32, #tpu.memory_space<vmem>>, %arg10: memref<128x128xbf16, #tpu.memory_space<vmem>>, %arg11: memref<1x128xf32, #tpu.memory_space<vmem>>, %arg12: memref<128x128xbf16, #tpu.memory_space<vmem>>, %arg13: memref<1x128xf32, #tpu.memory_space<vmem>>, %arg14: memref<1x1x128xf32, #tpu.memory_space<vmem>>) attributes {dimension_semantics = [#tpu.dimension_semantics<parallel>], iteration_bounds = array<i64: 2>, scalar_prefetch = 0 : i64, scratch_operands = 0 : i64, tpu.core_type = #tpu.core_type<tc>, window_params = [{transform_indices = @transform_0, window_bounds = array<i64: 1, 25, 1024>}, {pipeline_mode = #tpu.pipeline_mode<synchronous>, transform_indices = @transform_1, window_bounds = array<i64: 6, 25>}, {pipeline_mode = #tpu.pipeline_mode<synchronous>, transform_indices = @transform_2, window_bounds = array<i64: 6, 1>}, {pipeline_mode = #tpu.pipeline_mode<synchronous>, transform_indices = @transform_3, window_bounds = array<i64: 1, 1024>}, {pipeline_mode = #tpu.pipeline_mode<synchronous>, transform_indices = @transform_4, window_bounds = array<i64: 16, 150>}, {pipeline_mode = #tpu.pipeline_mode<synchronous>, transform_indices = @transform_5, window_bounds = array<i64: 16, 1>}, {pipeline_mode = #tpu.pipeline_mode<synchronous>, transform_indices = @transform_6, window_bounds = array<i64: 1, 196>}, {pipeline_mode = #tpu.pipeline_mode<synchronous>, transform_indices = @transform_7, window_bounds = array<i64: 16, 128, 128>}, {pipeline_mode = #tpu.pipeline_mode<synchronous>, transform_indices = @transform_8, window_bounds = array<i64: 1, 128>}, {pipeline_mode = #tpu.pipeline_mode<synchronous>, transform_indices = @transform_9, window_bounds = array<i64: 128, 128>}, {pipeline_mode = #tpu.pipeline_mode<synchronous>, transform_indices = @transform_10, window_bounds = array<i64: 1, 128>}, {pipeline_mode = #tpu.pipeline_mode<synchronous>, transform_indices = @transform_11, window_bounds = array<i64: 128, 128>}, {pipeline_mode = #tpu.pipeline_mode<synchronous>, transform_indices = @transform_12, window_bounds = array<i64: 1, 128>}, {transform_indices = @transform_13, window_bounds = array<i64: 1, 1, 128>}]} {
    %c0 = arith.constant 0 : index
    %c0_0 = arith.constant 0 : index
    %0 = vector.load %arg2[%c0, %c0_0] : memref<6x25xbf16, #tpu.memory_space<vmem>>, vector<6x25xbf16>
    %c0_1 = arith.constant 0 : index
    %c0_2 = arith.constant 0 : index
    %c0_3 = arith.constant 0 : index
    %1 = vector.load %arg1[%c0_1, %c0_2, %c0_3] : memref<1x25x1024xbf16, #tpu.memory_space<vmem>>, vector<1x25x1024xbf16>
    %2 = vector.shape_cast %1 : vector<1x25x1024xbf16> to vector<25x1024xbf16>
    %cst = arith.constant dense<0.000000e+00> : vector<6x1024xf32>
    %3 = tpu.matmul %0, %2, %cst {dimension_numbers = #tpu.dot_dimension_numbers<[1], [0], [0], [1], [0, 0, 1, 1], [], []>} : vector<6x25xbf16>, vector<25x1024xbf16>, vector<6x1024xf32> -> vector<6x1024xf32>
    %c0_4 = arith.constant 0 : index
    %c0_5 = arith.constant 0 : index
    %4 = vector.load %arg3[%c0_4, %c0_5] : memref<6x1xf32, #tpu.memory_space<vmem>>, vector<6x1xf32>
    %5 = vector.broadcast %4 : vector<6x1xf32> to vector<6x1024xf32>
    %6 = arith.addf %3, %5 : vector<6x1024xf32>
    %cst_6 = arith.constant 0.000000e+00 : f32
    %7 = vector.broadcast %cst_6 : f32 to vector<6x1024xf32>
    %8 = arith.maximumf %6, %7 : vector<6x1024xf32>
    %9 = vector.extract_strided_slice %8 {offsets = [0, 0], sizes = [6, 256], strides = [1, 1]} : vector<6x1024xf32> to vector<6x256xf32>
    %10 = vector.extract_strided_slice %8 {offsets = [0, 256], sizes = [6, 256], strides = [1, 1]} : vector<6x1024xf32> to vector<6x256xf32>
    %11 = arith.maximumf %9, %10 : vector<6x256xf32>
    %12 = vector.extract_strided_slice %8 {offsets = [0, 512], sizes = [6, 256], strides = [1, 1]} : vector<6x1024xf32> to vector<6x256xf32>
    %13 = vector.extract_strided_slice %8 {offsets = [0, 768], sizes = [6, 256], strides = [1, 1]} : vector<6x1024xf32> to vector<6x256xf32>
    %14 = arith.maximumf %12, %13 : vector<6x256xf32>
    %15 = arith.maximumf %11, %14 : vector<6x256xf32>
    %c0_7 = arith.constant 0 : index
    %c0_8 = arith.constant 0 : index
    %16 = vector.load %arg4[%c0_7, %c0_8] : memref<1x1024xf32, #tpu.memory_space<vmem>>, vector<1x1024xf32>
    %17 = vector.broadcast %16 : vector<1x1024xf32> to vector<6x1024xf32>
    %18 = arith.mulf %8, %17 : vector<6x1024xf32>
    %19 = vector.shape_cast %18 : vector<6x1024xf32> to vector<1x6x1024xf32>
    %cst_9 = arith.constant dense<0.000000e+00> : vector<1xf32>
    %20 = vector.multi_reduction <add>, %19, %cst_9 [1, 2] : vector<1x6x1024xf32> to vector<1xf32>
    %21 = vector.shape_cast %20 : vector<1xf32> to vector<1x1x1xf32>
    %22 = vector.extract %21[0, 0, 0] : f32 from vector<1x1x1xf32>
    %23 = vector.broadcast %22 : f32 to vector<1x1xf32>
    %cst_10 = arith.constant 4.704000e+03 : f32
    %24 = vector.broadcast %cst_10 : f32 to vector<1x1xf32>
    %25 = arith.divf %23, %24 : vector<1x1xf32>
    %26 = vector.broadcast %25 : vector<1x1xf32> to vector<6x1024xf32>
    %27 = arith.subf %8, %26 : vector<6x1024xf32>
    %28 = vector.broadcast %16 : vector<1x1024xf32> to vector<6x1024xf32>
    %29 = arith.mulf %27, %28 : vector<6x1024xf32>
    %30 = arith.mulf %29, %29 : vector<6x1024xf32>
    %31 = vector.shape_cast %30 : vector<6x1024xf32> to vector<1x6x1024xf32>
    %cst_11 = arith.constant dense<0.000000e+00> : vector<1xf32>
    %32 = vector.multi_reduction <add>, %31, %cst_11 [1, 2] : vector<1x6x1024xf32> to vector<1xf32>
    %33 = vector.shape_cast %32 : vector<1xf32> to vector<1x1x1xf32>
    %34 = vector.extract %33[0, 0, 0] : f32 from vector<1x1x1xf32>
    %35 = vector.broadcast %34 : f32 to vector<1x1xf32>
    %cst_12 = arith.constant 4.704000e+03 : f32
    %36 = vector.broadcast %cst_12 : f32 to vector<1x1xf32>
    %37 = arith.divf %35, %36 : vector<1x1xf32>
    %38 = vector.broadcast %25 : vector<1x1xf32> to vector<6x256xf32>
    %39 = arith.subf %15, %38 : vector<6x256xf32>
    %cst_13 = arith.constant 9.99999974E-6 : f32
    %40 = vector.broadcast %cst_13 : f32 to vector<1x1xf32>
    %41 = arith.addf %37, %40 : vector<1x1xf32>
    %42 = math.rsqrt %41 : vector<1x1xf32>
    %43 = vector.broadcast %42 : vector<1x1xf32> to vector<6x256xf32>
    %44 = arith.mulf %39, %43 : vector<6x256xf32>
    %45 = arith.truncf %44 : vector<6x256xf32> to vector<6x256xbf16>
    %c0_14 = arith.constant 0 : index
    %c0_15 = arith.constant 0 : index
    %46 = vector.load %arg5[%c0_14, %c0_15] : memref<16x150xbf16, #tpu.memory_space<vmem>>, vector<16x150xbf16>
    %cst_16 = arith.constant 0.000000e+00 : f32
    %47 = vector.broadcast %cst_16 : f32 to vector<16x196xf32>
    %48 = vector.extract_strided_slice %46 {offsets = [0, 0], sizes = [16, 6], strides = [1, 1]} : vector<16x150xbf16> to vector<16x6xbf16>
    %49 = vector.extract_strided_slice %45 {offsets = [0, 0], sizes = [6, 196], strides = [1, 1]} : vector<6x256xbf16> to vector<6x196xbf16>
    %cst_17 = arith.constant dense<0.000000e+00> : vector<16x196xf32>
    %50 = tpu.matmul %48, %49, %cst_17 {dimension_numbers = #tpu.dot_dimension_numbers<[1], [0], [0], [1], [0, 0, 1, 1], [], []>} : vector<16x6xbf16>, vector<6x196xbf16>, vector<16x196xf32> -> vector<16x196xf32>
    %51 = arith.addf %47, %50 : vector<16x196xf32>
    %52 = vector.extract_strided_slice %46 {offsets = [0, 6], sizes = [16, 6], strides = [1, 1]} : vector<16x150xbf16> to vector<16x6xbf16>
    %53 = vector.extract_strided_slice %45 {offsets = [0, 1], sizes = [6, 196], strides = [1, 1]} : vector<6x256xbf16> to vector<6x196xbf16>
    %cst_18 = arith.constant dense<0.000000e+00> : vector<16x196xf32>
    %54 = tpu.matmul %52, %53, %cst_18 {dimension_numbers = #tpu.dot_dimension_numbers<[1], [0], [0], [1], [0, 0, 1, 1], [], []>} : vector<16x6xbf16>, vector<6x196xbf16>, vector<16x196xf32> -> vector<16x196xf32>
    %55 = arith.addf %51, %54 : vector<16x196xf32>
    %56 = vector.extract_strided_slice %46 {offsets = [0, 12], sizes = [16, 6], strides = [1, 1]} : vector<16x150xbf16> to vector<16x6xbf16>
    %57 = vector.extract_strided_slice %45 {offsets = [0, 2], sizes = [6, 196], strides = [1, 1]} : vector<6x256xbf16> to vector<6x196xbf16>
    %cst_19 = arith.constant dense<0.000000e+00> : vector<16x196xf32>
    %58 = tpu.matmul %56, %57, %cst_19 {dimension_numbers = #tpu.dot_dimension_numbers<[1], [0], [0], [1], [0, 0, 1, 1], [], []>} : vector<16x6xbf16>, vector<6x196xbf16>, vector<16x196xf32> -> vector<16x196xf32>
    %59 = arith.addf %55, %58 : vector<16x196xf32>
    %60 = vector.extract_strided_slice %46 {offsets = [0, 18], sizes = [16, 6], strides = [1, 1]} : vector<16x150xbf16> to vector<16x6xbf16>
    %61 = vector.extract_strided_slice %45 {offsets = [0, 3], sizes = [6, 196], strides = [1, 1]} : vector<6x256xbf16> to vector<6x196xbf16>
    %cst_20 = arith.constant dense<0.000000e+00> : vector<16x196xf32>
    %62 = tpu.matmul %60, %61, %cst_20 {dimension_numbers = #tpu.dot_dimension_numbers<[1], [0], [0], [1], [0, 0, 1, 1], [], []>} : vector<16x6xbf16>, vector<6x196xbf16>, vector<16x196xf32> -> vector<16x196xf32>
    %63 = arith.addf %59, %62 : vector<16x196xf32>
    %64 = vector.extract_strided_slice %46 {offsets = [0, 24], sizes = [16, 6], strides = [1, 1]} : vector<16x150xbf16> to vector<16x6xbf16>
    %65 = vector.extract_strided_slice %45 {offsets = [0, 4], sizes = [6, 196], strides = [1, 1]} : vector<6x256xbf16> to vector<6x196xbf16>
    %cst_21 = arith.constant dense<0.000000e+00> : vector<16x196xf32>
    %66 = tpu.matmul %64, %65, %cst_21 {dimension_numbers = #tpu.dot_dimension_numbers<[1], [0], [0], [1], [0, 0, 1, 1], [], []>} : vector<16x6xbf16>, vector<6x196xbf16>, vector<16x196xf32> -> vector<16x196xf32>
    %67 = arith.addf %63, %66 : vector<16x196xf32>
    %68 = vector.extract_strided_slice %46 {offsets = [0, 30], sizes = [16, 6], strides = [1, 1]} : vector<16x150xbf16> to vector<16x6xbf16>
    %69 = vector.extract_strided_slice %45 {offsets = [0, 14], sizes = [6, 196], strides = [1, 1]} : vector<6x256xbf16> to vector<6x196xbf16>
    %cst_22 = arith.constant dense<0.000000e+00> : vector<16x196xf32>
    %70 = tpu.matmul %68, %69, %cst_22 {dimension_numbers = #tpu.dot_dimension_numbers<[1], [0], [0], [1], [0, 0, 1, 1], [], []>} : vector<16x6xbf16>, vector<6x196xbf16>, vector<16x196xf32> -> vector<16x196xf32>
    %71 = arith.addf %67, %70 : vector<16x196xf32>
    %72 = vector.extract_strided_slice %46 {offsets = [0, 36], sizes = [16, 6], strides = [1, 1]} : vector<16x150xbf16> to vector<16x6xbf16>
    %73 = vector.extract_strided_slice %45 {offsets = [0, 15], sizes = [6, 196], strides = [1, 1]} : vector<6x256xbf16> to vector<6x196xbf16>
    %cst_23 = arith.constant dense<0.000000e+00> : vector<16x196xf32>
    %74 = tpu.matmul %72, %73, %cst_23 {dimension_numbers = #tpu.dot_dimension_numbers<[1], [0], [0], [1], [0, 0, 1, 1], [], []>} : vector<16x6xbf16>, vector<6x196xbf16>, vector<16x196xf32> -> vector<16x196xf32>
    %75 = arith.addf %71, %74 : vector<16x196xf32>
    %76 = vector.extract_strided_slice %46 {offsets = [0, 42], sizes = [16, 6], strides = [1, 1]} : vector<16x150xbf16> to vector<16x6xbf16>
    %77 = vector.extract_strided_slice %45 {offsets = [0, 16], sizes = [6, 196], strides = [1, 1]} : vector<6x256xbf16> to vector<6x196xbf16>
    %cst_24 = arith.constant dense<0.000000e+00> : vector<16x196xf32>
    %78 = tpu.matmul %76, %77, %cst_24 {dimension_numbers = #tpu.dot_dimension_numbers<[1], [0], [0], [1], [0, 0, 1, 1], [], []>} : vector<16x6xbf16>, vector<6x196xbf16>, vector<16x196xf32> -> vector<16x196xf32>
    %79 = arith.addf %75, %78 : vector<16x196xf32>
    %80 = vector.extract_strided_slice %46 {offsets = [0, 48], sizes = [16, 6], strides = [1, 1]} : vector<16x150xbf16> to vector<16x6xbf16>
    %81 = vector.extract_strided_slice %45 {offsets = [0, 17], sizes = [6, 196], strides = [1, 1]} : vector<6x256xbf16> to vector<6x196xbf16>
    %cst_25 = arith.constant dense<0.000000e+00> : vector<16x196xf32>
    %82 = tpu.matmul %80, %81, %cst_25 {dimension_numbers = #tpu.dot_dimension_numbers<[1], [0], [0], [1], [0, 0, 1, 1], [], []>} : vector<16x6xbf16>, vector<6x196xbf16>, vector<16x196xf32> -> vector<16x196xf32>
    %83 = arith.addf %79, %82 : vector<16x196xf32>
    %84 = vector.extract_strided_slice %46 {offsets = [0, 54], sizes = [16, 6], strides = [1, 1]} : vector<16x150xbf16> to vector<16x6xbf16>
    %85 = vector.extract_strided_slice %45 {offsets = [0, 18], sizes = [6, 196], strides = [1, 1]} : vector<6x256xbf16> to vector<6x196xbf16>
    %cst_26 = arith.constant dense<0.000000e+00> : vector<16x196xf32>
    %86 = tpu.matmul %84, %85, %cst_26 {dimension_numbers = #tpu.dot_dimension_numbers<[1], [0], [0], [1], [0, 0, 1, 1], [], []>} : vector<16x6xbf16>, vector<6x196xbf16>, vector<16x196xf32> -> vector<16x196xf32>
    %87 = arith.addf %83, %86 : vector<16x196xf32>
    %88 = vector.extract_strided_slice %46 {offsets = [0, 60], sizes = [16, 6], strides = [1, 1]} : vector<16x150xbf16> to vector<16x6xbf16>
    %89 = vector.extract_strided_slice %45 {offsets = [0, 28], sizes = [6, 196], strides = [1, 1]} : vector<6x256xbf16> to vector<6x196xbf16>
    %cst_27 = arith.constant dense<0.000000e+00> : vector<16x196xf32>
    %90 = tpu.matmul %88, %89, %cst_27 {dimension_numbers = #tpu.dot_dimension_numbers<[1], [0], [0], [1], [0, 0, 1, 1], [], []>} : vector<16x6xbf16>, vector<6x196xbf16>, vector<16x196xf32> -> vector<16x196xf32>
    %91 = arith.addf %87, %90 : vector<16x196xf32>
    %92 = vector.extract_strided_slice %46 {offsets = [0, 66], sizes = [16, 6], strides = [1, 1]} : vector<16x150xbf16> to vector<16x6xbf16>
    %93 = vector.extract_strided_slice %45 {offsets = [0, 29], sizes = [6, 196], strides = [1, 1]} : vector<6x256xbf16> to vector<6x196xbf16>
    %cst_28 = arith.constant dense<0.000000e+00> : vector<16x196xf32>
    %94 = tpu.matmul %92, %93, %cst_28 {dimension_numbers = #tpu.dot_dimension_numbers<[1], [0], [0], [1], [0, 0, 1, 1], [], []>} : vector<16x6xbf16>, vector<6x196xbf16>, vector<16x196xf32> -> vector<16x196xf32>
    %95 = arith.addf %91, %94 : vector<16x196xf32>
    %96 = vector.extract_strided_slice %46 {offsets = [0, 72], sizes = [16, 6], strides = [1, 1]} : vector<16x150xbf16> to vector<16x6xbf16>
    %97 = vector.extract_strided_slice %45 {offsets = [0, 30], sizes = [6, 196], strides = [1, 1]} : vector<6x256xbf16> to vector<6x196xbf16>
    %cst_29 = arith.constant dense<0.000000e+00> : vector<16x196xf32>
    %98 = tpu.matmul %96, %97, %cst_29 {dimension_numbers = #tpu.dot_dimension_numbers<[1], [0], [0], [1], [0, 0, 1, 1], [], []>} : vector<16x6xbf16>, vector<6x196xbf16>, vector<16x196xf32> -> vector<16x196xf32>
    %99 = arith.addf %95, %98 : vector<16x196xf32>
    %100 = vector.extract_strided_slice %46 {offsets = [0, 78], sizes = [16, 6], strides = [1, 1]} : vector<16x150xbf16> to vector<16x6xbf16>
    %101 = vector.extract_strided_slice %45 {offsets = [0, 31], sizes = [6, 196], strides = [1, 1]} : vector<6x256xbf16> to vector<6x196xbf16>
    %cst_30 = arith.constant dense<0.000000e+00> : vector<16x196xf32>
    %102 = tpu.matmul %100, %101, %cst_30 {dimension_numbers = #tpu.dot_dimension_numbers<[1], [0], [0], [1], [0, 0, 1, 1], [], []>} : vector<16x6xbf16>, vector<6x196xbf16>, vector<16x196xf32> -> vector<16x196xf32>
    %103 = arith.addf %99, %102 : vector<16x196xf32>
    %104 = vector.extract_strided_slice %46 {offsets = [0, 84], sizes = [16, 6], strides = [1, 1]} : vector<16x150xbf16> to vector<16x6xbf16>
    %105 = vector.extract_strided_slice %45 {offsets = [0, 32], sizes = [6, 196], strides = [1, 1]} : vector<6x256xbf16> to vector<6x196xbf16>
    %cst_31 = arith.constant dense<0.000000e+00> : vector<16x196xf32>
    %106 = tpu.matmul %104, %105, %cst_31 {dimension_numbers = #tpu.dot_dimension_numbers<[1], [0], [0], [1], [0, 0, 1, 1], [], []>} : vector<16x6xbf16>, vector<6x196xbf16>, vector<16x196xf32> -> vector<16x196xf32>
    %107 = arith.addf %103, %106 : vector<16x196xf32>
    %108 = vector.extract_strided_slice %46 {offsets = [0, 90], sizes = [16, 6], strides = [1, 1]} : vector<16x150xbf16> to vector<16x6xbf16>
    %109 = vector.extract_strided_slice %45 {offsets = [0, 42], sizes = [6, 196], strides = [1, 1]} : vector<6x256xbf16> to vector<6x196xbf16>
    %cst_32 = arith.constant dense<0.000000e+00> : vector<16x196xf32>
    %110 = tpu.matmul %108, %109, %cst_32 {dimension_numbers = #tpu.dot_dimension_numbers<[1], [0], [0], [1], [0, 0, 1, 1], [], []>} : vector<16x6xbf16>, vector<6x196xbf16>, vector<16x196xf32> -> vector<16x196xf32>
    %111 = arith.addf %107, %110 : vector<16x196xf32>
    %112 = vector.extract_strided_slice %46 {offsets = [0, 96], sizes = [16, 6], strides = [1, 1]} : vector<16x150xbf16> to vector<16x6xbf16>
    %113 = vector.extract_strided_slice %45 {offsets = [0, 43], sizes = [6, 196], strides = [1, 1]} : vector<6x256xbf16> to vector<6x196xbf16>
    %cst_33 = arith.constant dense<0.000000e+00> : vector<16x196xf32>
    %114 = tpu.matmul %112, %113, %cst_33 {dimension_numbers = #tpu.dot_dimension_numbers<[1], [0], [0], [1], [0, 0, 1, 1], [], []>} : vector<16x6xbf16>, vector<6x196xbf16>, vector<16x196xf32> -> vector<16x196xf32>
    %115 = arith.addf %111, %114 : vector<16x196xf32>
    %116 = vector.extract_strided_slice %46 {offsets = [0, 102], sizes = [16, 6], strides = [1, 1]} : vector<16x150xbf16> to vector<16x6xbf16>
    %117 = vector.extract_strided_slice %45 {offsets = [0, 44], sizes = [6, 196], strides = [1, 1]} : vector<6x256xbf16> to vector<6x196xbf16>
    %cst_34 = arith.constant dense<0.000000e+00> : vector<16x196xf32>
    %118 = tpu.matmul %116, %117, %cst_34 {dimension_numbers = #tpu.dot_dimension_numbers<[1], [0], [0], [1], [0, 0, 1, 1], [], []>} : vector<16x6xbf16>, vector<6x196xbf16>, vector<16x196xf32> -> vector<16x196xf32>
    %119 = arith.addf %115, %118 : vector<16x196xf32>
    %120 = vector.extract_strided_slice %46 {offsets = [0, 108], sizes = [16, 6], strides = [1, 1]} : vector<16x150xbf16> to vector<16x6xbf16>
    %121 = vector.extract_strided_slice %45 {offsets = [0, 45], sizes = [6, 196], strides = [1, 1]} : vector<6x256xbf16> to vector<6x196xbf16>
    %cst_35 = arith.constant dense<0.000000e+00> : vector<16x196xf32>
    %122 = tpu.matmul %120, %121, %cst_35 {dimension_numbers = #tpu.dot_dimension_numbers<[1], [0], [0], [1], [0, 0, 1, 1], [], []>} : vector<16x6xbf16>, vector<6x196xbf16>, vector<16x196xf32> -> vector<16x196xf32>
    %123 = arith.addf %119, %122 : vector<16x196xf32>
    %124 = vector.extract_strided_slice %46 {offsets = [0, 114], sizes = [16, 6], strides = [1, 1]} : vector<16x150xbf16> to vector<16x6xbf16>
    %125 = vector.extract_strided_slice %45 {offsets = [0, 46], sizes = [6, 196], strides = [1, 1]} : vector<6x256xbf16> to vector<6x196xbf16>
    %cst_36 = arith.constant dense<0.000000e+00> : vector<16x196xf32>
    %126 = tpu.matmul %124, %125, %cst_36 {dimension_numbers = #tpu.dot_dimension_numbers<[1], [0], [0], [1], [0, 0, 1, 1], [], []>} : vector<16x6xbf16>, vector<6x196xbf16>, vector<16x196xf32> -> vector<16x196xf32>
    %127 = arith.addf %123, %126 : vector<16x196xf32>
    %128 = vector.extract_strided_slice %46 {offsets = [0, 120], sizes = [16, 6], strides = [1, 1]} : vector<16x150xbf16> to vector<16x6xbf16>
    %129 = vector.extract_strided_slice %45 {offsets = [0, 56], sizes = [6, 196], strides = [1, 1]} : vector<6x256xbf16> to vector<6x196xbf16>
    %cst_37 = arith.constant dense<0.000000e+00> : vector<16x196xf32>
    %130 = tpu.matmul %128, %129, %cst_37 {dimension_numbers = #tpu.dot_dimension_numbers<[1], [0], [0], [1], [0, 0, 1, 1], [], []>} : vector<16x6xbf16>, vector<6x196xbf16>, vector<16x196xf32> -> vector<16x196xf32>
    %131 = arith.addf %127, %130 : vector<16x196xf32>
    %132 = vector.extract_strided_slice %46 {offsets = [0, 126], sizes = [16, 6], strides = [1, 1]} : vector<16x150xbf16> to vector<16x6xbf16>
    %133 = vector.extract_strided_slice %45 {offsets = [0, 57], sizes = [6, 196], strides = [1, 1]} : vector<6x256xbf16> to vector<6x196xbf16>
    %cst_38 = arith.constant dense<0.000000e+00> : vector<16x196xf32>
    %134 = tpu.matmul %132, %133, %cst_38 {dimension_numbers = #tpu.dot_dimension_numbers<[1], [0], [0], [1], [0, 0, 1, 1], [], []>} : vector<16x6xbf16>, vector<6x196xbf16>, vector<16x196xf32> -> vector<16x196xf32>
    %135 = arith.addf %131, %134 : vector<16x196xf32>
    %136 = vector.extract_strided_slice %46 {offsets = [0, 132], sizes = [16, 6], strides = [1, 1]} : vector<16x150xbf16> to vector<16x6xbf16>
    %137 = vector.extract_strided_slice %45 {offsets = [0, 58], sizes = [6, 196], strides = [1, 1]} : vector<6x256xbf16> to vector<6x196xbf16>
    %cst_39 = arith.constant dense<0.000000e+00> : vector<16x196xf32>
    %138 = tpu.matmul %136, %137, %cst_39 {dimension_numbers = #tpu.dot_dimension_numbers<[1], [0], [0], [1], [0, 0, 1, 1], [], []>} : vector<16x6xbf16>, vector<6x196xbf16>, vector<16x196xf32> -> vector<16x196xf32>
    %139 = arith.addf %135, %138 : vector<16x196xf32>
    %140 = vector.extract_strided_slice %46 {offsets = [0, 138], sizes = [16, 6], strides = [1, 1]} : vector<16x150xbf16> to vector<16x6xbf16>
    %141 = vector.extract_strided_slice %45 {offsets = [0, 59], sizes = [6, 196], strides = [1, 1]} : vector<6x256xbf16> to vector<6x196xbf16>
    %cst_40 = arith.constant dense<0.000000e+00> : vector<16x196xf32>
    %142 = tpu.matmul %140, %141, %cst_40 {dimension_numbers = #tpu.dot_dimension_numbers<[1], [0], [0], [1], [0, 0, 1, 1], [], []>} : vector<16x6xbf16>, vector<6x196xbf16>, vector<16x196xf32> -> vector<16x196xf32>
    %143 = arith.addf %139, %142 : vector<16x196xf32>
    %144 = vector.extract_strided_slice %46 {offsets = [0, 144], sizes = [16, 6], strides = [1, 1]} : vector<16x150xbf16> to vector<16x6xbf16>
    %145 = vector.extract_strided_slice %45 {offsets = [0, 60], sizes = [6, 196], strides = [1, 1]} : vector<6x256xbf16> to vector<6x196xbf16>
    %cst_41 = arith.constant dense<0.000000e+00> : vector<16x196xf32>
    %146 = tpu.matmul %144, %145, %cst_41 {dimension_numbers = #tpu.dot_dimension_numbers<[1], [0], [0], [1], [0, 0, 1, 1], [], []>} : vector<16x6xbf16>, vector<6x196xbf16>, vector<16x196xf32> -> vector<16x196xf32>
    %147 = arith.addf %143, %146 : vector<16x196xf32>
    %c0_42 = arith.constant 0 : index
    %c0_43 = arith.constant 0 : index
    %148 = vector.load %arg6[%c0_42, %c0_43] : memref<16x1xf32, #tpu.memory_space<vmem>>, vector<16x1xf32>
    %149 = vector.broadcast %148 : vector<16x1xf32> to vector<16x196xf32>
    %150 = arith.addf %147, %149 : vector<16x196xf32>
    %cst_44 = arith.constant 0.000000e+00 : f32
    %151 = vector.broadcast %cst_44 : f32 to vector<16x196xf32>
    %152 = arith.maximumf %150, %151 : vector<16x196xf32>
    %153 = vector.extract_strided_slice %152 {offsets = [0, 0], sizes = [16, 128], strides = [1, 1]} : vector<16x196xf32> to vector<16x128xf32>
    %154 = vector.extract_strided_slice %152 {offsets = [0, 1], sizes = [16, 128], strides = [1, 1]} : vector<16x196xf32> to vector<16x128xf32>
    %155 = arith.maximumf %153, %154 : vector<16x128xf32>
    %156 = vector.extract_strided_slice %152 {offsets = [0, 14], sizes = [16, 128], strides = [1, 1]} : vector<16x196xf32> to vector<16x128xf32>
    %157 = vector.extract_strided_slice %152 {offsets = [0, 15], sizes = [16, 128], strides = [1, 1]} : vector<16x196xf32> to vector<16x128xf32>
    %158 = arith.maximumf %156, %157 : vector<16x128xf32>
    %159 = arith.maximumf %155, %158 : vector<16x128xf32>
    %c0_45 = arith.constant 0 : index
    %c0_46 = arith.constant 0 : index
    %160 = vector.load %arg7[%c0_45, %c0_46] : memref<1x196xf32, #tpu.memory_space<vmem>>, vector<1x196xf32>
    %161 = vector.broadcast %160 : vector<1x196xf32> to vector<16x196xf32>
    %162 = arith.mulf %152, %161 : vector<16x196xf32>
    %163 = vector.shape_cast %162 : vector<16x196xf32> to vector<1x16x196xf32>
    %cst_47 = arith.constant dense<0.000000e+00> : vector<1xf32>
    %164 = vector.multi_reduction <add>, %163, %cst_47 [1, 2] : vector<1x16x196xf32> to vector<1xf32>
    %165 = vector.shape_cast %164 : vector<1xf32> to vector<1x1x1xf32>
    %166 = vector.extract %165[0, 0, 0] : f32 from vector<1x1x1xf32>
    %167 = vector.broadcast %166 : f32 to vector<1x1xf32>
    %cst_48 = arith.constant 1.600000e+03 : f32
    %168 = vector.broadcast %cst_48 : f32 to vector<1x1xf32>
    %169 = arith.divf %167, %168 : vector<1x1xf32>
    %170 = vector.broadcast %169 : vector<1x1xf32> to vector<16x196xf32>
    %171 = arith.subf %152, %170 : vector<16x196xf32>
    %172 = vector.broadcast %160 : vector<1x196xf32> to vector<16x196xf32>
    %173 = arith.mulf %171, %172 : vector<16x196xf32>
    %174 = arith.mulf %173, %173 : vector<16x196xf32>
    %175 = vector.shape_cast %174 : vector<16x196xf32> to vector<1x16x196xf32>
    %cst_49 = arith.constant dense<0.000000e+00> : vector<1xf32>
    %176 = vector.multi_reduction <add>, %175, %cst_49 [1, 2] : vector<1x16x196xf32> to vector<1xf32>
    %177 = vector.shape_cast %176 : vector<1xf32> to vector<1x1x1xf32>
    %178 = vector.extract %177[0, 0, 0] : f32 from vector<1x1x1xf32>
    %179 = vector.broadcast %178 : f32 to vector<1x1xf32>
    %cst_50 = arith.constant 1.600000e+03 : f32
    %180 = vector.broadcast %cst_50 : f32 to vector<1x1xf32>
    %181 = arith.divf %179, %180 : vector<1x1xf32>
    %182 = vector.broadcast %169 : vector<1x1xf32> to vector<16x128xf32>
    %183 = arith.subf %159, %182 : vector<16x128xf32>
    %cst_51 = arith.constant 9.99999974E-6 : f32
    %184 = vector.broadcast %cst_51 : f32 to vector<1x1xf32>
    %185 = arith.addf %181, %184 : vector<1x1xf32>
    %186 = math.rsqrt %185 : vector<1x1xf32>
    %187 = vector.broadcast %186 : vector<1x1xf32> to vector<16x128xf32>
    %188 = arith.mulf %183, %187 : vector<16x128xf32>
    %189 = arith.truncf %188 : vector<16x128xf32> to vector<16x128xbf16>
    %cst_52 = arith.constant 0.000000e+00 : f32
    %190 = vector.broadcast %cst_52 : f32 to vector<1x128xf32>
    %191 = vector.extract_strided_slice %189 {offsets = [0, 0], sizes = [1, 128], strides = [1, 1]} : vector<16x128xbf16> to vector<1x128xbf16>
    %c0_53 = arith.constant 0 : index
    %c0_54 = arith.constant 0 : index
    %c0_55 = arith.constant 0 : index
    %192 = vector.load %arg8[%c0_53, %c0_54, %c0_55] : memref<16x128x128xbf16, #tpu.memory_space<vmem>>, vector<1x128x128xbf16>
    %193 = vector.shape_cast %192 : vector<1x128x128xbf16> to vector<128x128xbf16>
    %cst_56 = arith.constant dense<0.000000e+00> : vector<1x128xf32>
    %194 = tpu.matmul %191, %193, %cst_56 {dimension_numbers = #tpu.dot_dimension_numbers<[1], [0], [0], [1], [0, 0, 1, 1], [], []>} : vector<1x128xbf16>, vector<128x128xbf16>, vector<1x128xf32> -> vector<1x128xf32>
    %195 = arith.addf %190, %194 : vector<1x128xf32>
    %196 = vector.extract_strided_slice %189 {offsets = [1, 0], sizes = [1, 128], strides = [1, 1]} : vector<16x128xbf16> to vector<1x128xbf16>
    %c1 = arith.constant 1 : index
    %c0_57 = arith.constant 0 : index
    %c0_58 = arith.constant 0 : index
    %197 = vector.load %arg8[%c1, %c0_57, %c0_58] : memref<16x128x128xbf16, #tpu.memory_space<vmem>>, vector<1x128x128xbf16>
    %198 = vector.shape_cast %197 : vector<1x128x128xbf16> to vector<128x128xbf16>
    %cst_59 = arith.constant dense<0.000000e+00> : vector<1x128xf32>
    %199 = tpu.matmul %196, %198, %cst_59 {dimension_numbers = #tpu.dot_dimension_numbers<[1], [0], [0], [1], [0, 0, 1, 1], [], []>} : vector<1x128xbf16>, vector<128x128xbf16>, vector<1x128xf32> -> vector<1x128xf32>
    %200 = arith.addf %195, %199 : vector<1x128xf32>
    %201 = vector.extract_strided_slice %189 {offsets = [2, 0], sizes = [1, 128], strides = [1, 1]} : vector<16x128xbf16> to vector<1x128xbf16>
    %c2 = arith.constant 2 : index
    %c0_60 = arith.constant 0 : index
    %c0_61 = arith.constant 0 : index
    %202 = vector.load %arg8[%c2, %c0_60, %c0_61] : memref<16x128x128xbf16, #tpu.memory_space<vmem>>, vector<1x128x128xbf16>
    %203 = vector.shape_cast %202 : vector<1x128x128xbf16> to vector<128x128xbf16>
    %cst_62 = arith.constant dense<0.000000e+00> : vector<1x128xf32>
    %204 = tpu.matmul %201, %203, %cst_62 {dimension_numbers = #tpu.dot_dimension_numbers<[1], [0], [0], [1], [0, 0, 1, 1], [], []>} : vector<1x128xbf16>, vector<128x128xbf16>, vector<1x128xf32> -> vector<1x128xf32>
    %205 = arith.addf %200, %204 : vector<1x128xf32>
    %206 = vector.extract_strided_slice %189 {offsets = [3, 0], sizes = [1, 128], strides = [1, 1]} : vector<16x128xbf16> to vector<1x128xbf16>
    %c3 = arith.constant 3 : index
    %c0_63 = arith.constant 0 : index
    %c0_64 = arith.constant 0 : index
    %207 = vector.load %arg8[%c3, %c0_63, %c0_64] : memref<16x128x128xbf16, #tpu.memory_space<vmem>>, vector<1x128x128xbf16>
    %208 = vector.shape_cast %207 : vector<1x128x128xbf16> to vector<128x128xbf16>
    %cst_65 = arith.constant dense<0.000000e+00> : vector<1x128xf32>
    %209 = tpu.matmul %206, %208, %cst_65 {dimension_numbers = #tpu.dot_dimension_numbers<[1], [0], [0], [1], [0, 0, 1, 1], [], []>} : vector<1x128xbf16>, vector<128x128xbf16>, vector<1x128xf32> -> vector<1x128xf32>
    %210 = arith.addf %205, %209 : vector<1x128xf32>
    %211 = vector.extract_strided_slice %189 {offsets = [4, 0], sizes = [1, 128], strides = [1, 1]} : vector<16x128xbf16> to vector<1x128xbf16>
    %c4 = arith.constant 4 : index
    %c0_66 = arith.constant 0 : index
    %c0_67 = arith.constant 0 : index
    %212 = vector.load %arg8[%c4, %c0_66, %c0_67] : memref<16x128x128xbf16, #tpu.memory_space<vmem>>, vector<1x128x128xbf16>
    %213 = vector.shape_cast %212 : vector<1x128x128xbf16> to vector<128x128xbf16>
    %cst_68 = arith.constant dense<0.000000e+00> : vector<1x128xf32>
    %214 = tpu.matmul %211, %213, %cst_68 {dimension_numbers = #tpu.dot_dimension_numbers<[1], [0], [0], [1], [0, 0, 1, 1], [], []>} : vector<1x128xbf16>, vector<128x128xbf16>, vector<1x128xf32> -> vector<1x128xf32>
    %215 = arith.addf %210, %214 : vector<1x128xf32>
    %216 = vector.extract_strided_slice %189 {offsets = [5, 0], sizes = [1, 128], strides = [1, 1]} : vector<16x128xbf16> to vector<1x128xbf16>
    %c5 = arith.constant 5 : index
    %c0_69 = arith.constant 0 : index
    %c0_70 = arith.constant 0 : index
    %217 = vector.load %arg8[%c5, %c0_69, %c0_70] : memref<16x128x128xbf16, #tpu.memory_space<vmem>>, vector<1x128x128xbf16>
    %218 = vector.shape_cast %217 : vector<1x128x128xbf16> to vector<128x128xbf16>
    %cst_71 = arith.constant dense<0.000000e+00> : vector<1x128xf32>
    %219 = tpu.matmul %216, %218, %cst_71 {dimension_numbers = #tpu.dot_dimension_numbers<[1], [0], [0], [1], [0, 0, 1, 1], [], []>} : vector<1x128xbf16>, vector<128x128xbf16>, vector<1x128xf32> -> vector<1x128xf32>
    %220 = arith.addf %215, %219 : vector<1x128xf32>
    %221 = vector.extract_strided_slice %189 {offsets = [6, 0], sizes = [1, 128], strides = [1, 1]} : vector<16x128xbf16> to vector<1x128xbf16>
    %c6 = arith.constant 6 : index
    %c0_72 = arith.constant 0 : index
    %c0_73 = arith.constant 0 : index
    %222 = vector.load %arg8[%c6, %c0_72, %c0_73] : memref<16x128x128xbf16, #tpu.memory_space<vmem>>, vector<1x128x128xbf16>
    %223 = vector.shape_cast %222 : vector<1x128x128xbf16> to vector<128x128xbf16>
    %cst_74 = arith.constant dense<0.000000e+00> : vector<1x128xf32>
    %224 = tpu.matmul %221, %223, %cst_74 {dimension_numbers = #tpu.dot_dimension_numbers<[1], [0], [0], [1], [0, 0, 1, 1], [], []>} : vector<1x128xbf16>, vector<128x128xbf16>, vector<1x128xf32> -> vector<1x128xf32>
    %225 = arith.addf %220, %224 : vector<1x128xf32>
    %226 = vector.extract_strided_slice %189 {offsets = [7, 0], sizes = [1, 128], strides = [1, 1]} : vector<16x128xbf16> to vector<1x128xbf16>
    %c7 = arith.constant 7 : index
    %c0_75 = arith.constant 0 : index
    %c0_76 = arith.constant 0 : index
    %227 = vector.load %arg8[%c7, %c0_75, %c0_76] : memref<16x128x128xbf16, #tpu.memory_space<vmem>>, vector<1x128x128xbf16>
    %228 = vector.shape_cast %227 : vector<1x128x128xbf16> to vector<128x128xbf16>
    %cst_77 = arith.constant dense<0.000000e+00> : vector<1x128xf32>
    %229 = tpu.matmul %226, %228, %cst_77 {dimension_numbers = #tpu.dot_dimension_numbers<[1], [0], [0], [1], [0, 0, 1, 1], [], []>} : vector<1x128xbf16>, vector<128x128xbf16>, vector<1x128xf32> -> vector<1x128xf32>
    %230 = arith.addf %225, %229 : vector<1x128xf32>
    %231 = vector.extract_strided_slice %189 {offsets = [8, 0], sizes = [1, 128], strides = [1, 1]} : vector<16x128xbf16> to vector<1x128xbf16>
    %c8 = arith.constant 8 : index
    %c0_78 = arith.constant 0 : index
    %c0_79 = arith.constant 0 : index
    %232 = vector.load %arg8[%c8, %c0_78, %c0_79] : memref<16x128x128xbf16, #tpu.memory_space<vmem>>, vector<1x128x128xbf16>
    %233 = vector.shape_cast %232 : vector<1x128x128xbf16> to vector<128x128xbf16>
    %cst_80 = arith.constant dense<0.000000e+00> : vector<1x128xf32>
    %234 = tpu.matmul %231, %233, %cst_80 {dimension_numbers = #tpu.dot_dimension_numbers<[1], [0], [0], [1], [0, 0, 1, 1], [], []>} : vector<1x128xbf16>, vector<128x128xbf16>, vector<1x128xf32> -> vector<1x128xf32>
    %235 = arith.addf %230, %234 : vector<1x128xf32>
    %236 = vector.extract_strided_slice %189 {offsets = [9, 0], sizes = [1, 128], strides = [1, 1]} : vector<16x128xbf16> to vector<1x128xbf16>
    %c9 = arith.constant 9 : index
    %c0_81 = arith.constant 0 : index
    %c0_82 = arith.constant 0 : index
    %237 = vector.load %arg8[%c9, %c0_81, %c0_82] : memref<16x128x128xbf16, #tpu.memory_space<vmem>>, vector<1x128x128xbf16>
    %238 = vector.shape_cast %237 : vector<1x128x128xbf16> to vector<128x128xbf16>
    %cst_83 = arith.constant dense<0.000000e+00> : vector<1x128xf32>
    %239 = tpu.matmul %236, %238, %cst_83 {dimension_numbers = #tpu.dot_dimension_numbers<[1], [0], [0], [1], [0, 0, 1, 1], [], []>} : vector<1x128xbf16>, vector<128x128xbf16>, vector<1x128xf32> -> vector<1x128xf32>
    %240 = arith.addf %235, %239 : vector<1x128xf32>
    %241 = vector.extract_strided_slice %189 {offsets = [10, 0], sizes = [1, 128], strides = [1, 1]} : vector<16x128xbf16> to vector<1x128xbf16>
    %c10 = arith.constant 10 : index
    %c0_84 = arith.constant 0 : index
    %c0_85 = arith.constant 0 : index
    %242 = vector.load %arg8[%c10, %c0_84, %c0_85] : memref<16x128x128xbf16, #tpu.memory_space<vmem>>, vector<1x128x128xbf16>
    %243 = vector.shape_cast %242 : vector<1x128x128xbf16> to vector<128x128xbf16>
    %cst_86 = arith.constant dense<0.000000e+00> : vector<1x128xf32>
    %244 = tpu.matmul %241, %243, %cst_86 {dimension_numbers = #tpu.dot_dimension_numbers<[1], [0], [0], [1], [0, 0, 1, 1], [], []>} : vector<1x128xbf16>, vector<128x128xbf16>, vector<1x128xf32> -> vector<1x128xf32>
    %245 = arith.addf %240, %244 : vector<1x128xf32>
    %246 = vector.extract_strided_slice %189 {offsets = [11, 0], sizes = [1, 128], strides = [1, 1]} : vector<16x128xbf16> to vector<1x128xbf16>
    %c11 = arith.constant 11 : index
    %c0_87 = arith.constant 0 : index
    %c0_88 = arith.constant 0 : index
    %247 = vector.load %arg8[%c11, %c0_87, %c0_88] : memref<16x128x128xbf16, #tpu.memory_space<vmem>>, vector<1x128x128xbf16>
    %248 = vector.shape_cast %247 : vector<1x128x128xbf16> to vector<128x128xbf16>
    %cst_89 = arith.constant dense<0.000000e+00> : vector<1x128xf32>
    %249 = tpu.matmul %246, %248, %cst_89 {dimension_numbers = #tpu.dot_dimension_numbers<[1], [0], [0], [1], [0, 0, 1, 1], [], []>} : vector<1x128xbf16>, vector<128x128xbf16>, vector<1x128xf32> -> vector<1x128xf32>
    %250 = arith.addf %245, %249 : vector<1x128xf32>
    %251 = vector.extract_strided_slice %189 {offsets = [12, 0], sizes = [1, 128], strides = [1, 1]} : vector<16x128xbf16> to vector<1x128xbf16>
    %c12 = arith.constant 12 : index
    %c0_90 = arith.constant 0 : index
    %c0_91 = arith.constant 0 : index
    %252 = vector.load %arg8[%c12, %c0_90, %c0_91] : memref<16x128x128xbf16, #tpu.memory_space<vmem>>, vector<1x128x128xbf16>
    %253 = vector.shape_cast %252 : vector<1x128x128xbf16> to vector<128x128xbf16>
    %cst_92 = arith.constant dense<0.000000e+00> : vector<1x128xf32>
    %254 = tpu.matmul %251, %253, %cst_92 {dimension_numbers = #tpu.dot_dimension_numbers<[1], [0], [0], [1], [0, 0, 1, 1], [], []>} : vector<1x128xbf16>, vector<128x128xbf16>, vector<1x128xf32> -> vector<1x128xf32>
    %255 = arith.addf %250, %254 : vector<1x128xf32>
    %256 = vector.extract_strided_slice %189 {offsets = [13, 0], sizes = [1, 128], strides = [1, 1]} : vector<16x128xbf16> to vector<1x128xbf16>
    %c13 = arith.constant 13 : index
    %c0_93 = arith.constant 0 : index
    %c0_94 = arith.constant 0 : index
    %257 = vector.load %arg8[%c13, %c0_93, %c0_94] : memref<16x128x128xbf16, #tpu.memory_space<vmem>>, vector<1x128x128xbf16>
    %258 = vector.shape_cast %257 : vector<1x128x128xbf16> to vector<128x128xbf16>
    %cst_95 = arith.constant dense<0.000000e+00> : vector<1x128xf32>
    %259 = tpu.matmul %256, %258, %cst_95 {dimension_numbers = #tpu.dot_dimension_numbers<[1], [0], [0], [1], [0, 0, 1, 1], [], []>} : vector<1x128xbf16>, vector<128x128xbf16>, vector<1x128xf32> -> vector<1x128xf32>
    %260 = arith.addf %255, %259 : vector<1x128xf32>
    %261 = vector.extract_strided_slice %189 {offsets = [14, 0], sizes = [1, 128], strides = [1, 1]} : vector<16x128xbf16> to vector<1x128xbf16>
    %c14 = arith.constant 14 : index
    %c0_96 = arith.constant 0 : index
    %c0_97 = arith.constant 0 : index
    %262 = vector.load %arg8[%c14, %c0_96, %c0_97] : memref<16x128x128xbf16, #tpu.memory_space<vmem>>, vector<1x128x128xbf16>
    %263 = vector.shape_cast %262 : vector<1x128x128xbf16> to vector<128x128xbf16>
    %cst_98 = arith.constant dense<0.000000e+00> : vector<1x128xf32>
    %264 = tpu.matmul %261, %263, %cst_98 {dimension_numbers = #tpu.dot_dimension_numbers<[1], [0], [0], [1], [0, 0, 1, 1], [], []>} : vector<1x128xbf16>, vector<128x128xbf16>, vector<1x128xf32> -> vector<1x128xf32>
    %265 = arith.addf %260, %264 : vector<1x128xf32>
    %266 = vector.extract_strided_slice %189 {offsets = [15, 0], sizes = [1, 128], strides = [1, 1]} : vector<16x128xbf16> to vector<1x128xbf16>
    %c15 = arith.constant 15 : index
    %c0_99 = arith.constant 0 : index
    %c0_100 = arith.constant 0 : index
    %267 = vector.load %arg8[%c15, %c0_99, %c0_100] : memref<16x128x128xbf16, #tpu.memory_space<vmem>>, vector<1x128x128xbf16>
    %268 = vector.shape_cast %267 : vector<1x128x128xbf16> to vector<128x128xbf16>
    %cst_101 = arith.constant dense<0.000000e+00> : vector<1x128xf32>
    %269 = tpu.matmul %266, %268, %cst_101 {dimension_numbers = #tpu.dot_dimension_numbers<[1], [0], [0], [1], [0, 0, 1, 1], [], []>} : vector<1x128xbf16>, vector<128x128xbf16>, vector<1x128xf32> -> vector<1x128xf32>
    %270 = arith.addf %265, %269 : vector<1x128xf32>
    %c0_102 = arith.constant 0 : index
    %c0_103 = arith.constant 0 : index
    %271 = vector.load %arg9[%c0_102, %c0_103] : memref<1x128xf32, #tpu.memory_space<vmem>>, vector<1x128xf32>
    %272 = arith.addf %270, %271 : vector<1x128xf32>
    %cst_104 = arith.constant 0.000000e+00 : f32
    %273 = vector.broadcast %cst_104 : f32 to vector<1x128xf32>
    %274 = arith.maximumf %272, %273 : vector<1x128xf32>
    %275 = vector.extract_strided_slice %274 {offsets = [0, 0], sizes = [1, 120], strides = [1, 1]} : vector<1x128xf32> to vector<1x120xf32>
    %276 = vector.shape_cast %275 : vector<1x120xf32> to vector<1x1x120xf32>
    %cst_105 = arith.constant dense<0.000000e+00> : vector<1xf32>
    %277 = vector.multi_reduction <add>, %276, %cst_105 [1, 2] : vector<1x1x120xf32> to vector<1xf32>
    %278 = vector.shape_cast %277 : vector<1xf32> to vector<1x1x1xf32>
    %279 = vector.extract %278[0, 0, 0] : f32 from vector<1x1x1xf32>
    %280 = vector.broadcast %279 : f32 to vector<1x1xf32>
    %cst_106 = arith.constant 1.200000e+02 : f32
    %281 = vector.broadcast %cst_106 : f32 to vector<1x1xf32>
    %282 = arith.divf %280, %281 : vector<1x1xf32>
    %283 = vector.broadcast %282 : vector<1x1xf32> to vector<1x120xf32>
    %284 = arith.subf %275, %283 : vector<1x120xf32>
    %285 = arith.mulf %284, %284 : vector<1x120xf32>
    %286 = vector.shape_cast %285 : vector<1x120xf32> to vector<1x1x120xf32>
    %cst_107 = arith.constant dense<0.000000e+00> : vector<1xf32>
    %287 = vector.multi_reduction <add>, %286, %cst_107 [1, 2] : vector<1x1x120xf32> to vector<1xf32>
    %288 = vector.shape_cast %287 : vector<1xf32> to vector<1x1x1xf32>
    %289 = vector.extract %288[0, 0, 0] : f32 from vector<1x1x1xf32>
    %290 = vector.broadcast %289 : f32 to vector<1x1xf32>
    %cst_108 = arith.constant 1.200000e+02 : f32
    %291 = vector.broadcast %cst_108 : f32 to vector<1x1xf32>
    %292 = arith.divf %290, %291 : vector<1x1xf32>
    %293 = vector.broadcast %282 : vector<1x1xf32> to vector<1x128xf32>
    %294 = arith.subf %274, %293 : vector<1x128xf32>
    %cst_109 = arith.constant 9.99999974E-6 : f32
    %295 = vector.broadcast %cst_109 : f32 to vector<1x1xf32>
    %296 = arith.addf %292, %295 : vector<1x1xf32>
    %297 = math.rsqrt %296 : vector<1x1xf32>
    %298 = vector.broadcast %297 : vector<1x1xf32> to vector<1x128xf32>
    %299 = arith.mulf %294, %298 : vector<1x128xf32>
    %300 = arith.truncf %299 : vector<1x128xf32> to vector<1x128xbf16>
    %c0_110 = arith.constant 0 : index
    %c0_111 = arith.constant 0 : index
    %301 = vector.load %arg10[%c0_110, %c0_111] : memref<128x128xbf16, #tpu.memory_space<vmem>>, vector<128x128xbf16>
    %cst_112 = arith.constant dense<0.000000e+00> : vector<1x128xf32>
    %302 = tpu.matmul %300, %301, %cst_112 {dimension_numbers = #tpu.dot_dimension_numbers<[1], [0], [0], [1], [0, 0, 1, 1], [], []>} : vector<1x128xbf16>, vector<128x128xbf16>, vector<1x128xf32> -> vector<1x128xf32>
    %c0_113 = arith.constant 0 : index
    %c0_114 = arith.constant 0 : index
    %303 = vector.load %arg11[%c0_113, %c0_114] : memref<1x128xf32, #tpu.memory_space<vmem>>, vector<1x128xf32>
    %304 = arith.addf %302, %303 : vector<1x128xf32>
    %cst_115 = arith.constant 0.000000e+00 : f32
    %305 = vector.broadcast %cst_115 : f32 to vector<1x128xf32>
    %306 = arith.maximumf %304, %305 : vector<1x128xf32>
    %307 = vector.extract_strided_slice %306 {offsets = [0, 0], sizes = [1, 84], strides = [1, 1]} : vector<1x128xf32> to vector<1x84xf32>
    %308 = vector.shape_cast %307 : vector<1x84xf32> to vector<1x1x84xf32>
    %cst_116 = arith.constant dense<0.000000e+00> : vector<1xf32>
    %309 = vector.multi_reduction <add>, %308, %cst_116 [1, 2] : vector<1x1x84xf32> to vector<1xf32>
    %310 = vector.shape_cast %309 : vector<1xf32> to vector<1x1x1xf32>
    %311 = vector.extract %310[0, 0, 0] : f32 from vector<1x1x1xf32>
    %312 = vector.broadcast %311 : f32 to vector<1x1xf32>
    %cst_117 = arith.constant 8.400000e+01 : f32
    %313 = vector.broadcast %cst_117 : f32 to vector<1x1xf32>
    %314 = arith.divf %312, %313 : vector<1x1xf32>
    %315 = vector.broadcast %314 : vector<1x1xf32> to vector<1x84xf32>
    %316 = arith.subf %307, %315 : vector<1x84xf32>
    %317 = arith.mulf %316, %316 : vector<1x84xf32>
    %318 = vector.shape_cast %317 : vector<1x84xf32> to vector<1x1x84xf32>
    %cst_118 = arith.constant dense<0.000000e+00> : vector<1xf32>
    %319 = vector.multi_reduction <add>, %318, %cst_118 [1, 2] : vector<1x1x84xf32> to vector<1xf32>
    %320 = vector.shape_cast %319 : vector<1xf32> to vector<1x1x1xf32>
    %321 = vector.extract %320[0, 0, 0] : f32 from vector<1x1x1xf32>
    %322 = vector.broadcast %321 : f32 to vector<1x1xf32>
    %cst_119 = arith.constant 8.400000e+01 : f32
    %323 = vector.broadcast %cst_119 : f32 to vector<1x1xf32>
    %324 = arith.divf %322, %323 : vector<1x1xf32>
    %325 = vector.broadcast %314 : vector<1x1xf32> to vector<1x128xf32>
    %326 = arith.subf %306, %325 : vector<1x128xf32>
    %cst_120 = arith.constant 9.99999974E-6 : f32
    %327 = vector.broadcast %cst_120 : f32 to vector<1x1xf32>
    %328 = arith.addf %324, %327 : vector<1x1xf32>
    %329 = math.rsqrt %328 : vector<1x1xf32>
    %330 = vector.broadcast %329 : vector<1x1xf32> to vector<1x128xf32>
    %331 = arith.mulf %326, %330 : vector<1x128xf32>
    %332 = arith.truncf %331 : vector<1x128xf32> to vector<1x128xbf16>
    %c0_121 = arith.constant 0 : index
    %c0_122 = arith.constant 0 : index
    %333 = vector.load %arg12[%c0_121, %c0_122] : memref<128x128xbf16, #tpu.memory_space<vmem>>, vector<128x128xbf16>
    %cst_123 = arith.constant dense<0.000000e+00> : vector<1x128xf32>
    %334 = tpu.matmul %332, %333, %cst_123 {dimension_numbers = #tpu.dot_dimension_numbers<[1], [0], [0], [1], [0, 0, 1, 1], [], []>} : vector<1x128xbf16>, vector<128x128xbf16>, vector<1x128xf32> -> vector<1x128xf32>
    %c0_124 = arith.constant 0 : index
    %c0_125 = arith.constant 0 : index
    %335 = vector.load %arg13[%c0_124, %c0_125] : memref<1x128xf32, #tpu.memory_space<vmem>>, vector<1x128xf32>
    %336 = arith.addf %334, %335 : vector<1x128xf32>
    %c0_126 = arith.constant 0 : index
    %c0_127 = arith.constant 0 : index
    %c0_128 = arith.constant 0 : index
    %337 = vector.load %arg14[%c0_126, %c0_127, %c0_128] : memref<1x1x128xf32, #tpu.memory_space<vmem>>, vector<1x1x128xf32>
    %338 = vector.shape_cast %337 : vector<1x1x128xf32> to vector<1x128xf32>
    %339 = vector.shape_cast %336 : vector<1x128xf32> to vector<1x1x128xf32>
    tpu.vector_store %arg14[%c0_126, %c0_127, %c0_128], %339 {strides = array<i32>} : memref<1x1x128xf32, #tpu.memory_space<vmem>>, vector<1x1x128xf32>,
    return
  }
  func.func @transform_0(%arg0: i32) -> (i32, i32, i32) {
    %c0_i32 = arith.constant 0 : i32
    %c0_i32_0 = arith.constant 0 : i32
    %c0_i32_1 = arith.constant 0 : i32
    return %arg0, %c0_i32, %c0_i32_0 : i32, i32, i32
  }
  func.func @transform_1(%arg0: i32) -> (i32, i32) {
    %c0_i32 = arith.constant 0 : i32
    %c0_i32_0 = arith.constant 0 : i32
    %c0_i32_1 = arith.constant 0 : i32
    return %c0_i32, %c0_i32_0 : i32, i32
  }
  func.func @transform_2(%arg0: i32) -> (i32, i32) {
    %c0_i32 = arith.constant 0 : i32
    %c0_i32_0 = arith.constant 0 : i32
    %c0_i32_1 = arith.constant 0 : i32
    return %c0_i32, %c0_i32_0 : i32, i32
  }
  func.func @transform_3(%arg0: i32) -> (i32, i32) {
    %c0_i32 = arith.constant 0 : i32
    %c0_i32_0 = arith.constant 0 : i32
    %c0_i32_1 = arith.constant 0 : i32
    return %c0_i32, %c0_i32_0 : i32, i32
  }
  func.func @transform_4(%arg0: i32) -> (i32, i32) {
    %c0_i32 = arith.constant 0 : i32
    %c0_i32_0 = arith.constant 0 : i32
    %c0_i32_1 = arith.constant 0 : i32
    return %c0_i32, %c0_i32_0 : i32, i32
  }
  func.func @transform_5(%arg0: i32) -> (i32, i32) {
    %c0_i32 = arith.constant 0 : i32
    %c0_i32_0 = arith.constant 0 : i32
    %c0_i32_1 = arith.constant 0 : i32
    return %c0_i32, %c0_i32_0 : i32, i32
  }
  func.func @transform_6(%arg0: i32) -> (i32, i32) {
    %c0_i32 = arith.constant 0 : i32
    %c0_i32_0 = arith.constant 0 : i32
    %c0_i32_1 = arith.constant 0 : i32
    return %c0_i32, %c0_i32_0 : i32, i32
  }
  func.func @transform_7(%arg0: i32) -> (i32, i32, i32) {
    %c0_i32 = arith.constant 0 : i32
    %c0_i32_0 = arith.constant 0 : i32
    %c0_i32_1 = arith.constant 0 : i32
    %c0_i32_2 = arith.constant 0 : i32
    return %c0_i32, %c0_i32_0, %c0_i32_1 : i32, i32, i32
  }
  func.func @transform_8(%arg0: i32) -> (i32, i32) {
    %c0_i32 = arith.constant 0 : i32
    %c0_i32_0 = arith.constant 0 : i32
    %c0_i32_1 = arith.constant 0 : i32
    return %c0_i32, %c0_i32_0 : i32, i32
  }
  func.func @transform_9(%arg0: i32) -> (i32, i32) {
    %c0_i32 = arith.constant 0 : i32
    %c0_i32_0 = arith.constant 0 : i32
    %c0_i32_1 = arith.constant 0 : i32
    return %c0_i32, %c0_i32_0 : i32, i32
  }
  func.func @transform_10(%arg0: i32) -> (i32, i32) {
    %c0_i32 = arith.constant 0 : i32
    %c0_i32_0 = arith.constant 0 : i32
    %c0_i32_1 = arith.constant 0 : i32
    return %c0_i32, %c0_i32_0 : i32, i32
  }
  func.func @transform_11(%arg0: i32) -> (i32, i32) {
    %c0_i32 = arith.constant 0 : i32
    %c0_i32_0 = arith.constant 0 : i32
    %c0_i32_1 = arith.constant 0 : i32
    return %c0_i32, %c0_i32_0 : i32, i32
  }
  func.func @transform_12(%arg0: i32) -> (i32, i32) {
    %c0_i32 = arith.constant 0 : i32
    %c0_i32_0 = arith.constant 0 : i32
    %c0_i32_1 = arith.constant 0 : i32
    return %c0_i32, %c0_i32_0 : i32, i32
  }
  func.func @transform_13(%arg0: i32) -> (i32, i32, i32) {
    %c0_i32 = arith.constant 0 : i32
    %c0_i32_0 = arith.constant 0 : i32
    %c0_i32_1 = arith.constant 0 : i32
    return %arg0, %c0_i32, %c0_i32_0 : i32, i32, i32
  }
}

</mosaic_0001>

<llo_original>
// kernel: lenet5_forward.1
$region0: #{lenet5_forward.1}
  #allocation0 [shape = 'u32[]', space=smem, size = 0x4, offset = 0x4, fixed_abs, tag = 'smem constant byte address 0x4 - core index']
  #allocation1 [shape = 'u32[144,128]{1,0:T(1,128)}', space=vmem, size = 0x12000, scoped, tag = 'internal scratch']
  %s0 = inlined_call_operand.vmem [shape: bf16[2,25,1024], index: 0, kind: input, shape index: {}]
  %s1 = inlined_call_operand.vmem [shape: bf16[6,25], index: 1, kind: input, shape index: {}]
  %s2 = inlined_call_operand.vmem [shape: f32[6,1], index: 2, kind: input, shape index: {}]
  %s3 = inlined_call_operand.vmem [shape: f32[1,1024], index: 3, kind: input, shape index: {}]
  %s4 = inlined_call_operand.vmem [shape: bf16[16,150], index: 4, kind: input, shape index: {}]
  %s5 = inlined_call_operand.vmem [shape: f32[16,1], index: 5, kind: input, shape index: {}]
  %s6 = inlined_call_operand.vmem [shape: f32[1,196], index: 6, kind: input, shape index: {}]
  %s7 = inlined_call_operand.vmem [shape: bf16[16,128,128], index: 7, kind: input, shape index: {}]
  %s8 = inlined_call_operand.vmem [shape: f32[1,128], index: 8, kind: input, shape index: {}]
  %s9 = inlined_call_operand.vmem [shape: bf16[128,128], index: 9, kind: input, shape index: {}]
  %s10 = inlined_call_operand.vmem [shape: f32[1,128], index: 10, kind: input, shape index: {}]
  %s11 = inlined_call_operand.vmem [shape: bf16[128,128], index: 11, kind: input, shape index: {}]
  %s12 = inlined_call_operand.vmem [shape: f32[1,128], index: 12, kind: input, shape index: {}]
  %s13 = inlined_call_operand.hbm [shape: f32[2,1,128], index: 13, kind: output, shape index: {}]
  %s14 = sld [smem:[#allocation0]]
  $region85: #{lenet5_forward.1} parent=0
    _
  %s16 = ssub.s32 1, %s14
  %s17 = scalar_select 0, %s16, %s14
  $region1: #{lenet5_forward.1} parent=0
    #allocation2 [shape = 'u8[1024]{0}', space=vmem, size = 0x400, scoped, tag = 'output window, operand 0']
    #allocation3 [shape = 's32[2]{0}', space=sflag, size = 0x8, scoped, tag = 'scoped memory for lenet5_forward.1']
    %18 = vsyncpa [#allocation3], 0
    %s19 = scalar_lea.sflag [#allocation3], 1
    %20 = vsyncpa %s19, 0
    loop: start=0, step=1, limit=4
    $region2: #{lenet5_forward.1} parent=1 // loop_pre_header
      _
    $region3: #{lenet5_forward.1} parent=1 // loop_header
      %s22 = sphi 0, %s26
      %p23 = scmp.ge.s32.totalorder %s22, 4
      %s32 = sphi 0, %s34
      %s35 = sphi 0, %s32
      %s36 = sphi 0, %s35
      %s52 = sphi 0, %s36
      %s56 = sphi 0, %s56
      %s58 = sphi 0, %s56
      %s59 = sphi 0, %s58
      %s73 = sphi 0, %s59
      %s77 = sphi 0, %s77
      %s79 = sphi 0, %s77
      %s80 = sphi 0, %s79
      %s94 = sphi 0, %s80
      %s98 = sphi 0, %s98
      %s100 = sphi 0, %s98
      %s101 = sphi 0, %s100
      %s115 = sphi 0, %s101
      %s119 = sphi 0, %s119
      %s121 = sphi 0, %s119
      %s122 = sphi 0, %s121
      %s136 = sphi 0, %s122
      %s140 = sphi 0, %s140
      %s142 = sphi 0, %s140
      %s143 = sphi 0, %s142
      %s157 = sphi 0, %s143
      %s161 = sphi 0, %s161
      %s163 = sphi 0, %s161
      %s164 = sphi 0, %s163
      %s178 = sphi 0, %s164
      %s182 = sphi 0, %s182
      %s184 = sphi 0, %s182
      %s185 = sphi 0, %s184
      %s199 = sphi 0, %s185
      %s203 = sphi 0, %s203
      %s205 = sphi 0, %s203
      %s206 = sphi 0, %s205
      %s220 = sphi 0, %s206
      %s224 = sphi 0, %s224
      %s226 = sphi 0, %s224
      %s227 = sphi 0, %s226
      %s241 = sphi 0, %s227
      %s245 = sphi 0, %s245
      %s247 = sphi 0, %s245
      %s248 = sphi 0, %s247
      %s262 = sphi 0, %s248
      %s266 = sphi 0, %s266
      %s268 = sphi 0, %s266
      %s269 = sphi 0, %s268
      %s283 = sphi 0, %s269
      %s287 = sphi 0, %s287
      %s289 = sphi 0, %s287
      %s290 = sphi 0, %s289
      %s304 = sphi 0, %s290
      %s310 = sphi 0, %s312
      %s313 = sphi 0, %s310
      %s314 = sphi 0, %s313
      %s330 = sphi 0, %s314
    $region4: #{lenet5_forward.1} parent=1 // loop_header_branch
      %25 = sbr.rel (%p23) target = $region8
    $region5: #{lenet5_forward.1} parent=1 // loop_body
      %s27 = ssub.s32 %s22, 1
      %s28 = ssub.s32 %s22, 2
      %s29 = sadd.s32 %s22, 1
      %s30 = ssub.s32 %s22, %s29
      %p31 = scmp.eq.s32.totalorder %s30, 0
      %s33 = sadd.s32 %s32, 1
      %s34 = scalar_select %p31, %s32, %s33
      %p37 = pneg %p31
      %p38 = scmp.eq.s32.totalorder %s22, 1
      %p39 = por %p37, %p38
      %p40 = scmp.ne.s32.totalorder %s32, %s35
      %p41 = scmp.eq.s32.totalorder %s22, 0
      %p42 = por %p40, %p41
      %p43 = scmp.ne.s32.totalorder %s32, %s35
      %p44 = scmp.eq.s32.totalorder %s27, 1
      %p45 = por %p43, %p44
      %p46 = scmp.ne.s32.totalorder %s35, %s36
      %p47 = scmp.eq.s32.totalorder %s27, 0
      %p48 = por %p46, %p47
      %p49 = scmp.ne.s32.totalorder %s35, %s36
      %p50 = scmp.eq.s32.totalorder %s28, 1
      %p51 = por %p49, %p50
      %p53 = scmp.ne.s32.totalorder %s36, %s52
      %p54 = scmp.eq.s32.totalorder %s28, 0
      %p55 = por %p53, %p54
      %s57 = sadd.s32 %s56, 1
      %p60 = scmp.eq.s32.totalorder %s22, 1
      %p61 = scmp.ne.s32.totalorder %s56, %s58
      %p62 = scmp.eq.s32.totalorder %s22, 0
      %p63 = por %p61, %p62
      %p64 = scmp.ne.s32.totalorder %s56, %s58
      %p65 = scmp.eq.s32.totalorder %s27, 1
      %p66 = por %p64, %p65
      %p67 = scmp.ne.s32.totalorder %s58, %s59
      %p68 = scmp.eq.s32.totalorder %s27, 0
      %p69 = por %p67, %p68
      %p70 = scmp.ne.s32.totalorder %s58, %s59
      %p71 = scmp.eq.s32.totalorder %s28, 1
      %p72 = por %p70, %p71
      %p74 = scmp.ne.s32.totalorder %s59, %s73
      %p75 = scmp.eq.s32.totalorder %s28, 0
      %p76 = por %p74, %p75
      %s78 = sadd.s32 %s77, 1
      %p81 = scmp.eq.s32.totalorder %s22, 1
      %p82 = scmp.ne.s32.totalorder %s77, %s79
      %p83 = scmp.eq.s32.totalorder %s22, 0
      %p84 = por %p82, %p83
      %p85 = scmp.ne.s32.totalorder %s77, %s79
      %p86 = scmp.eq.s32.totalorder %s27, 1
      %p87 = por %p85, %p86
      %p88 = scmp.ne.s32.totalorder %s79, %s80
      %p89 = scmp.eq.s32.totalorder %s27, 0
      %p90 = por %p88, %p89
      %p91 = scmp.ne.s32.totalorder %s79, %s80
      %p92 = scmp.eq.s32.totalorder %s28, 1
      %p93 = por %p91, %p92
      %p95 = scmp.ne.s32.totalorder %s80, %s94
      %p96 = scmp.eq.s32.totalorder %s28, 0
      %p97 = por %p95, %p96
      %s99 = sadd.s32 %s98, 1
      %p102 = scmp.eq.s32.totalorder %s22, 1
      %p103 = scmp.ne.s32.totalorder %s98, %s100
      %p104 = scmp.eq.s32.totalorder %s22, 0
      %p105 = por %p103, %p104
      %p106 = scmp.ne.s32.totalorder %s98, %s100
      %p107 = scmp.eq.s32.totalorder %s27, 1
      %p108 = por %p106, %p107
      %p109 = scmp.ne.s32.totalorder %s100, %s101
      %p110 = scmp.eq.s32.totalorder %s27, 0
      %p111 = por %p109, %p110
      %p112 = scmp.ne.s32.totalorder %s100, %s101
      %p113 = scmp.eq.s32.totalorder %s28, 1
      %p114 = por %p112, %p113
      %p116 = scmp.ne.s32.totalorder %s101, %s115
      %p117 = scmp.eq.s32.totalorder %s28, 0
      %p118 = por %p116, %p117
      %s120 = sadd.s32 %s119, 1
      %p123 = scmp.eq.s32.totalorder %s22, 1
      %p124 = scmp.ne.s32.totalorder %s119, %s121
      %p125 = scmp.eq.s32.totalorder %s22, 0
      %p126 = por %p124, %p125
      %p127 = scmp.ne.s32.totalorder %s119, %s121
      %p128 = scmp.eq.s32.totalorder %s27, 1
      %p129 = por %p127, %p128
      %p130 = scmp.ne.s32.totalorder %s121, %s122
      %p131 = scmp.eq.s32.totalorder %s27, 0
      %p132 = por %p130, %p131
      %p133 = scmp.ne.s32.totalorder %s121, %s122
      %p134 = scmp.eq.s32.totalorder %s28, 1
      %p135 = por %p133, %p134
      %p137 = scmp.ne.s32.totalorder %s122, %s136
      %p138 = scmp.eq.s32.totalorder %s28, 0
      %p139 = por %p137, %p138
      %s141 = sadd.s32 %s140, 1
      %p144 = scmp.eq.s32.totalorder %s22, 1
      %p145 = scmp.ne.s32.totalorder %s140, %s142
      %p146 = scmp.eq.s32.totalorder %s22, 0
      %p147 = por %p145, %p146
      %p148 = scmp.ne.s32.totalorder %s140, %s142
      %p149 = scmp.eq.s32.totalorder %s27, 1
      %p150 = por %p148, %p149
      %p151 = scmp.ne.s32.totalorder %s142, %s143
      %p152 = scmp.eq.s32.totalorder %s27, 0
      %p153 = por %p151, %p152
      %p154 = scmp.ne.s32.totalorder %s142, %s143
      %p155 = scmp.eq.s32.totalorder %s28, 1
      %p156 = por %p154, %p155
      %p158 = scmp.ne.s32.totalorder %s143, %s157
      %p159 = scmp.eq.s32.totalorder %s28, 0
      %p160 = por %p158, %p159
      %s162 = sadd.s32 %s161, 1
      %p165 = scmp.eq.s32.totalorder %s22, 1
      %p166 = scmp.ne.s32.totalorder %s161, %s163
      %p167 = scmp.eq.s32.totalorder %s22, 0
      %p168 = por %p166, %p167
      %p169 = scmp.ne.s32.totalorder %s161, %s163
      %p170 = scmp.eq.s32.totalorder %s27, 1
      %p171 = por %p169, %p170
      %p172 = scmp.ne.s32.totalorder %s163, %s164
      %p173 = scmp.eq.s32.totalorder %s27, 0
      %p174 = por %p172, %p173
      %p175 = scmp.ne.s32.totalorder %s163, %s164
      %p176 = scmp.eq.s32.totalorder %s28, 1
      %p177 = por %p175, %p176
      %p179 = scmp.ne.s32.totalorder %s164, %s178
      %p180 = scmp.eq.s32.totalorder %s28, 0
      %p181 = por %p179, %p180
      %s183 = sadd.s32 %s182, 1
      %p186 = scmp.eq.s32.totalorder %s22, 1
      %p187 = scmp.ne.s32.totalorder %s182, %s184
      %p188 = scmp.eq.s32.totalorder %s22, 0
      %p189 = por %p187, %p188
      %p190 = scmp.ne.s32.totalorder %s182, %s184
      %p191 = scmp.eq.s32.totalorder %s27, 1
      %p192 = por %p190, %p191
      %p193 = scmp.ne.s32.totalorder %s184, %s185
      %p194 = scmp.eq.s32.totalorder %s27, 0
      %p195 = por %p193, %p194
      %p196 = scmp.ne.s32.totalorder %s184, %s185
      %p197 = scmp.eq.s32.totalorder %s28, 1
      %p198 = por %p196, %p197
      %p200 = scmp.ne.s32.totalorder %s185, %s199
      %p201 = scmp.eq.s32.totalorder %s28, 0
      %p202 = por %p200, %p201
      %s204 = sadd.s32 %s203, 1
      %p207 = scmp.eq.s32.totalorder %s22, 1
      %p208 = scmp.ne.s32.totalorder %s203, %s205
      %p209 = scmp.eq.s32.totalorder %s22, 0
      %p210 = por %p208, %p209
      %p211 = scmp.ne.s32.totalorder %s203, %s205
      %p212 = scmp.eq.s32.totalorder %s27, 1
      %p213 = por %p211, %p212
      %p214 = scmp.ne.s32.totalorder %s205, %s206
      %p215 = scmp.eq.s32.totalorder %s27, 0
      %p216 = por %p214, %p215
      %p217 = scmp.ne.s32.totalorder %s205, %s206
      %p218 = scmp.eq.s32.totalorder %s28, 1
      %p219 = por %p217, %p218
      %p221 = scmp.ne.s32.totalorder %s206, %s220
      %p222 = scmp.eq.s32.totalorder %s28, 0
      %p223 = por %p221, %p222
      %s225 = sadd.s32 %s224, 1
      %p228 = scmp.eq.s32.totalorder %s22, 1
      %p229 = scmp.ne.s32.totalorder %s224, %s226
      %p230 = scmp.eq.s32.totalorder %s22, 0
      %p231 = por %p229, %p230
      %p232 = scmp.ne.s32.totalorder %s224, %s226
      %p233 = scmp.eq.s32.totalorder %s27, 1
      %p234 = por %p232, %p233
      %p235 = scmp.ne.s32.totalorder %s226, %s227
      %p236 = scmp.eq.s32.totalorder %s27, 0
      %p237 = por %p235, %p236
      %p238 = scmp.ne.s32.totalorder %s226, %s227
      %p239 = scmp.eq.s32.totalorder %s28, 1
      %p240 = por %p238, %p239
      %p242 = scmp.ne.s32.totalorder %s227, %s241
      %p243 = scmp.eq.s32.totalorder %s28, 0
      %p244 = por %p242, %p243
      %s246 = sadd.s32 %s245, 1
      %p249 = scmp.eq.s32.totalorder %s22, 1
      %p250 = scmp.ne.s32.totalorder %s245, %s247
      %p251 = scmp.eq.s32.totalorder %s22, 0
      %p252 = por %p250, %p251
      %p253 = scmp.ne.s32.totalorder %s245, %s247
      %p254 = scmp.eq.s32.totalorder %s27, 1
      %p255 = por %p253, %p254
      %p256 = scmp.ne.s32.totalorder %s247, %s248
      %p257 = scmp.eq.s32.totalorder %s27, 0
      %p258 = por %p256, %p257
      %p259 = scmp.ne.s32.totalorder %s247, %s248
      %p260 = scmp.eq.s32.totalorder %s28, 1
      %p261 = por %p259, %p260
      %p263 = scmp.ne.s32.totalorder %s248, %s262
      %p264 = scmp.eq.s32.totalorder %s28, 0
      %p265 = por %p263, %p264
      %s267 = sadd.s32 %s266, 1
      %p270 = scmp.eq.s32.totalorder %s22, 1
      %p271 = scmp.ne.s32.totalorder %s266, %s268
      %p272 = scmp.eq.s32.totalorder %s22, 0
      %p273 = por %p271, %p272
      %p274 = scmp.ne.s32.totalorder %s266, %s268
      %p275 = scmp.eq.s32.totalorder %s27, 1
      %p276 = por %p274, %p275
      %p277 = scmp.ne.s32.totalorder %s268, %s269
      %p278 = scmp.eq.s32.totalorder %s27, 0
      %p279 = por %p277, %p278
      %p280 = scmp.ne.s32.totalorder %s268, %s269
      %p281 = scmp.eq.s32.totalorder %s28, 1
      %p282 = por %p280, %p281
      %p284 = scmp.ne.s32.totalorder %s269, %s283
      %p285 = scmp.eq.s32.totalorder %s28, 0
      %p286 = por %p284, %p285
      %s288 = sadd.s32 %s287, 1
      %p291 = scmp.eq.s32.totalorder %s22, 1
      %p292 = scmp.ne.s32.totalorder %s287, %s289
      %p293 = scmp.eq.s32.totalorder %s22, 0
      %p294 = por %p292, %p293
      %p295 = scmp.ne.s32.totalorder %s287, %s289
      %p296 = scmp.eq.s32.totalorder %s27, 1
      %p297 = por %p295, %p296
      %p298 = scmp.ne.s32.totalorder %s289, %s290
      %p299 = scmp.eq.s32.totalorder %s27, 0
      %p300 = por %p298, %p299
      %p301 = scmp.ne.s32.totalorder %s289, %s290
      %p302 = scmp.eq.s32.totalorder %s28, 1
      %p303 = por %p301, %p302
      %p305 = scmp.ne.s32.totalorder %s290, %s304
      %p306 = scmp.eq.s32.totalorder %s28, 0
      %p307 = por %p305, %p306
      %s308 = ssub.s32 %s22, %s29
      %p309 = scmp.eq.s32.totalorder %s308, 0
      %s311 = sadd.s32 %s310, 1
      %s312 = scalar_select %p309, %s310, %s311
      %p315 = pneg %p309
      %p316 = scmp.eq.s32.totalorder %s22, 1
      %p317 = por %p315, %p316
      %p318 = scmp.ne.s32.totalorder %s310, %s313
      %p319 = scmp.eq.s32.totalorder %s22, 0
      %p320 = por %p318, %p319
      %p321 = scmp.ne.s32.totalorder %s310, %s313
      %p322 = scmp.eq.s32.totalorder %s27, 1
      %p323 = por %p321, %p322
      %p324 = scmp.ne.s32.totalorder %s313, %s314
      %p325 = scmp.eq.s32.totalorder %s27, 0
      %p326 = por %p324, %p325
      %p327 = scmp.ne.s32.totalorder %s313, %s314
      %p328 = scmp.eq.s32.totalorder %s28, 1
      %p329 = por %p327, %p328
      %p331 = scmp.ne.s32.totalorder %s314, %s330
      %p332 = scmp.eq.s32.totalorder %s28, 0
      %p333 = por %p331, %p332
      %p334 = scmp.le.s32.totalorder 1, %s22
      %p335 = scmp.lt.s32.totalorder %s22, 3
      %p336 = pnand %p334, %p335
      %p337 = pneg %p336
      // Predicated region
      $region9: #{lenet5_forward.1} parent=5 // pred_check
        _
      $region10: #{lenet5_forward.1} parent=5 // pred_check_branch
        %339 = sbr.rel (%p336) target = $region12
      $region11: #{lenet5_forward.1} parent=5 // pred_region
        %s340 = ssub.s32 %s22, 1
        // Predicated region
        $region13: #{lenet5_forward.1} parent=11 // pred_check
          %p341 = pneg %p69
        $region14: #{lenet5_forward.1} parent=11 // pred_check_branch
          %343 = sbr.rel (%p341) target = $region16
        $region15: #{lenet5_forward.1} parent=11 // pred_region
          _
        $region16: #{lenet5_forward.1} parent=11 // pred_fallthru
          _
        // Predicated region
        $region17: #{lenet5_forward.1} parent=11 // pred_check
          %p344 = pneg %p90
        $region18: #{lenet5_forward.1} parent=11 // pred_check_branch
          %346 = sbr.rel (%p344) target = $region20
        $region19: #{lenet5_forward.1} parent=11 // pred_region
          _
        $region20: #{lenet5_forward.1} parent=11 // pred_fallthru
          _
        // Predicated region
        $region21: #{lenet5_forward.1} parent=11 // pred_check
          %p347 = pneg %p111
        $region22: #{lenet5_forward.1} parent=11 // pred_check_branch
          %349 = sbr.rel (%p347) target = $region24
        $region23: #{lenet5_forward.1} parent=11 // pred_region
          _
        $region24: #{lenet5_forward.1} parent=11 // pred_fallthru
          _
        // Predicated region
        $region25: #{lenet5_forward.1} parent=11 // pred_check
          %p350 = pneg %p132
        $region26: #{lenet5_forward.1} parent=11 // pred_check_branch
          %352 = sbr.rel (%p350) target = $region28
        $region27: #{lenet5_forward.1} parent=11 // pred_region
          _
        $region28: #{lenet5_forward.1} parent=11 // pred_fallthru
          _
        // Predicated region
        $region29: #{lenet5_forward.1} parent=11 // pred_check
          %p353 = pneg %p153
        $region30: #{lenet5_forward.1} parent=11 // pred_check_branch
          %355 = sbr.rel (%p353) target = $region32
        $region31: #{lenet5_forward.1} parent=11 // pred_region
          _
        $region32: #{lenet5_forward.1} parent=11 // pred_fallthru
          _
        // Predicated region
        $region33: #{lenet5_forward.1} parent=11 // pred_check
          %p356 = pneg %p174
        $region34: #{lenet5_forward.1} parent=11 // pred_check_branch
          %358 = sbr.rel (%p356) target = $region36
        $region35: #{lenet5_forward.1} parent=11 // pred_region
          _
        $region36: #{lenet5_forward.1} parent=11 // pred_fallthru
          _
        // Predicated region
        $region37: #{lenet5_forward.1} parent=11 // pred_check
          %p359 = pneg %p195
        $region38: #{lenet5_forward.1} parent=11 // pred_check_branch
          %361 = sbr.rel (%p359) target = $region40
        $region39: #{lenet5_forward.1} parent=11 // pred_region
          _
        $region40: #{lenet5_forward.1} parent=11 // pred_fallthru
          _
        // Predicated region
        $region41: #{lenet5_forward.1} parent=11 // pred_check
          %p362 = pneg %p216
        $region42: #{lenet5_forward.1} parent=11 // pred_check_branch
          %364 = sbr.rel (%p362) target = $region44
        $region43: #{lenet5_forward.1} parent=11 // pred_region
          _
        $region44: #{lenet5_forward.1} parent=11 // pred_fallthru
          _
        // Predicated region
        $region45: #{lenet5_forward.1} parent=11 // pred_check
          %p365 = pneg %p237
        $region46: #{lenet5_forward.1} parent=11 // pred_check_branch
          %367 = sbr.rel (%p365) target = $region48
        $region47: #{lenet5_forward.1} parent=11 // pred_region
          _
        $region48: #{lenet5_forward.1} parent=11 // pred_fallthru
          _
        // Predicated region
        $region49: #{lenet5_forward.1} parent=11 // pred_check
          %p368 = pneg %p258
        $region50: #{lenet5_forward.1} parent=11 // pred_check_branch
          %370 = sbr.rel (%p368) target = $region52
        $region51: #{lenet5_forward.1} parent=11 // pred_region
          _
        $region52: #{lenet5_forward.1} parent=11 // pred_fallthru
          _
        // Predicated region
        $region53: #{lenet5_forward.1} parent=11 // pred_check
          %p371 = pneg %p279
        $region54: #{lenet5_forward.1} parent=11 // pred_check_branch
          %373 = sbr.rel (%p371) target = $region56
        $region55: #{lenet5_forward.1} parent=11 // pred_region
          _
        $region56: #{lenet5_forward.1} parent=11 // pred_fallthru
          _
        // Predicated region
        $region57: #{lenet5_forward.1} parent=11 // pred_check
          %p374 = pneg %p300
        $region58: #{lenet5_forward.1} parent=11 // pred_check_branch
          %376 = sbr.rel (%p374) target = $region60
        $region59: #{lenet5_forward.1} parent=11 // pred_region
          _
        $region60: #{lenet5_forward.1} parent=11 // pred_fallthru
          _
      $region12: #{lenet5_forward.1} parent=5 // pred_fallthru
        _
      %p377 = scmp.lt.s32.totalorder %s22, 2
      // Predicated region
      $region61: #{lenet5_forward.1} parent=5 // pred_check
        %p378 = pneg %p377
      $region62: #{lenet5_forward.1} parent=5 // pred_check_branch
        %380 = sbr.rel (%p378) target = $region64
      $region63: #{lenet5_forward.1} parent=5 // pred_region
        // Predicated region
        $region65: #{lenet5_forward.1} parent=63 // pred_check
          %p381 = pneg %p42
        $region66: #{lenet5_forward.1} parent=63 // pred_check_branch
          %383 = sbr.rel (%p381) target = $region68
        $region67: #{lenet5_forward.1} parent=63 // pred_region
          %p384 = scmp.lt.s32.totalorder %s22, 1
          %s385 = scalar_select %p384, %s22, 1
          %s386 = smul.addr %s385, 32
          %s387 = smul.addr %s386, 4
          %s388 = scalar_lea.vmem %s0, %s387
        $region68: #{lenet5_forward.1} parent=63 // pred_fallthru
          _
      $region64: #{lenet5_forward.1} parent=5 // pred_fallthru
        _
      %p389 = scmp.le.s32.totalorder 1, %s22
      %p390 = scmp.lt.s32.totalorder %s22, 3
      %p391 = pnand %p389, %p390
      %p392 = pneg %p391
      // Predicated region
      $region69: #{lenet5_forward.1} parent=5 // pred_check
        _
      $region70: #{lenet5_forward.1} parent=5 // pred_check_branch
        %394 = sbr.rel (%p391) target = $region72
      $region71: #{lenet5_forward.1} parent=5 // pred_region
        %s395 = ssub.s32 %s22, 1
        %p396 = scmp.lt.s32.totalorder %s27, 1
        %s397 = scalar_select %p396, %s27, 1
        %s398 = smul.addr %s397, 32
        %s399 = smul.addr %s398, 4
        %s400 = scalar_lea.vmem %s0, %s399
        %p401 = pneg %p48
        %p402 = pneg %p45
        %p403 = pneg %p69
        %p404 = pneg %p66
        %p405 = pneg %p90
        %p406 = pneg %p87
        %p407 = pneg %p111
        %p408 = pneg %p108
        %p409 = pneg %p132
        %p410 = pneg %p129
        %p411 = pneg %p153
        %p412 = pneg %p150
        %p413 = pneg %p174
        %p414 = pneg %p171
        %p415 = pneg %p195
        %p416 = pneg %p192
        %p417 = pneg %p216
        %p418 = pneg %p213
        %p419 = pneg %p237
        %p420 = pneg %p234
        %p421 = pneg %p258
        %p422 = pneg %p255
        %p423 = pneg %p279
        %p424 = pneg %p276
        %p425 = pneg %p300
        %p426 = pneg %p297
        %p427 = pneg %p326
        %p428 = pneg %p323
        %s429 = sand.u32 %s313, 1
        %s430 = scalar_lea.sflag [#allocation3], %s429
        %s431 = sand.u32 %s313, 1
        %s432 = scalar_lea.vmem [#allocation2], %s431
        %p433 = scmp.lt.s32.totalorder %s27, 1
        %s434 = scalar_select %p433, %s27, 1
        %s435 = smul.addr %s434, 32
        %s436 = smul.addr %s435, 4
        %s437 = scalar_lea.vmem %s0, %s436
        %v439 = vld [vmem:[%s1] sm:$0x7]
        %v440 = vld [vmem:[%s437] sm:$0xff]
        %v441 = vld [vmem:[%s437 + $0x8] sm:$0xff]
        %v442 = vld [vmem:[%s437 + $0x10] sm:$0xff]
        %v443 = vld [vmem:[%s437 + $0x18] sm:$0xff]
        %v444 = vld [vmem:[%s437 + $0x20] sm:$0xff]
        %v445 = vld [vmem:[%s437 + $0x28] sm:$0xff]
        %v446 = vld [vmem:[%s437 + $0x30] sm:$0xff]
        %v447 = vld [vmem:[%s437 + $0x38] sm:$0xff]
        %v448 = vld [vmem:[%s437 + $0x40] sm:$0xff]
        %v449 = vld [vmem:[%s437 + $0x48] sm:$0xff]
        %v450 = vld [vmem:[%s437 + $0x50] sm:$0xff]
        %v451 = vld [vmem:[%s437 + $0x58] sm:$0xff]
        %v452 = vld [vmem:[%s437 + $0x60] sm:$0x11]
        %v453 = vld [vmem:[%s437 + $0x68] sm:$0x11]
        %v454 = vld [vmem:[%s437 + $0x70] sm:$0x11]
        %v455 = vld [vmem:[%s437 + $0x78] sm:$0x11]
        %v456 = vld [vmem:[%s2] sm:$0x3f]
        %458 = vset.pattern.permute.xlu0 0
        %459 = vperm.xlu0 %458, %v456
        %v460 = vpop.permute.xlu0 %459
        %v478 = vunpack.c.l.b16 %v440
        %v479 = vunpack.c.h.b16 %v440
        %v480 = vunpack.c.l.b16 %v441
        %v481 = vunpack.c.h.b16 %v441
        %v482 = vunpack.c.l.b16 %v442
        %v483 = vunpack.c.h.b16 %v442
        %v484 = vunpack.c.l.b16 %v443
        %v485 = vunpack.c.h.b16 %v443
        %v486 = vunpack.c.l.b16 %v444
        %v487 = vunpack.c.h.b16 %v444
        %v488 = vunpack.c.l.b16 %v445
        %v489 = vunpack.c.h.b16 %v445
        %v490 = vunpack.c.l.b16 %v446
        %v491 = vunpack.c.h.b16 %v446
        %v492 = vunpack.c.l.b16 %v447
        %v493 = vunpack.c.h.b16 %v447
        %v494 = vunpack.c.l.b16 %v448
        %v495 = vunpack.c.h.b16 %v448
        %v496 = vunpack.c.l.b16 %v449
        %v497 = vunpack.c.h.b16 %v449
        %v498 = vunpack.c.l.b16 %v450
        %v499 = vunpack.c.h.b16 %v450
        %v500 = vunpack.c.l.b16 %v451
        %v501 = vunpack.c.h.b16 %v451
        %v502 = vunpack.c.l.b16 %v452
        %v503 = vunpack.c.h.b16 %v452
        %v504 = vunpack.c.l.b16 %v453
        %v505 = vunpack.c.h.b16 %v453
        %v506 = vunpack.c.l.b16 %v454
        %v507 = vunpack.c.h.b16 %v454
        %v508 = vunpack.c.l.b16 %v455
        %v509 = vunpack.c.h.b16 %v455
        %v510 = vpack.c.b16 %v486, %v478
        %v511 = vpack.c.b16 %v487, %v479
        %v512 = vpack.c.b16 %v488, %v480
        %v513 = vpack.c.b16 %v489, %v481
        %v514 = vpack.c.b16 %v490, %v482
        %v515 = vpack.c.b16 %v491, %v483
        %v516 = vpack.c.b16 %v492, %v484
        %v517 = vpack.c.b16 %v493, %v485
        %v518 = vpack.c.b16 %v502, %v494
        %v519 = vpack.c.b16 %v503, %v495
        %v520 = vpack.c.b16 %v504, %v496
        %v521 = vpack.c.b16 %v505, %v497
        %v522 = vpack.c.b16 %v506, %v498
        %v523 = vpack.c.b16 %v507, %v499
        %v524 = vpack.c.b16 %v508, %v500
        %v525 = vpack.c.b16 %v509, %v501
        %vm534 = vcmask 203776
        %v536 = vsel %vm534, %v439, 0
        %vm538 = vcmask 1043456
        %vm539 = vcmask 1044480
        %v540 = vsel %vm538, 4294967295, 65535
        %v541 = vsel %vm539, %v540, 0
        %v543 = vand.u32 %v518, %v541
        %v546 = vand.u32 %v519, %v541
        %v549 = vand.u32 %v520, %v541
        %v552 = vand.u32 %v521, %v541
        %v555 = vand.u32 %v522, %v541
        %v558 = vand.u32 %v523, %v541
        %v561 = vand.u32 %v524, %v541
        %v564 = vand.u32 %v525, %v541
        %566 = vmatprep.subr.bf16.mxu0 %v511
        %567 = vmatpush1.bf16.msra.mxu0 %v510
        %568 = vmatprep.subr.bf16.mxu0 %v546
        %569 = vmatpush1.bf16.msra.mxu0 %v543
        %570 = vmatprep.subr.bf16.mxu0 0
        %571 = vmatpush1.bf16.msra.mxu0 0
        %572 = vmatprep.subr.bf16.mxu0 0
        %573 = vmatpush1.bf16.msra.mxu0 0
        %574 = vmatprep.subr.bf16.mxu0 0
        %575 = vmatpush1.bf16.msra.mxu0 0
        %576 = vmatprep.subr.bf16.mxu0 0
        %577 = vmatpush1.bf16.msra.mxu0 0
        %578 = vmatprep.subr.bf16.mxu0 0
        %579 = vmatpush1.bf16.msra.mxu0 0
        %580 = vmatprep.subr.bf16.mxu0 0
        %581 = vmatpush1.bf16.msra.mxu0 0
        %582 = vmatprep.subr.bf16.mxu0 0
        %583 = vmatpush1.bf16.msra.mxu0 0
        %584 = vmatprep.subr.bf16.mxu0 0
        %585 = vmatpush1.bf16.msra.mxu0 0
        %586 = vmatprep.subr.bf16.mxu0 0
        %587 = vmatpush1.bf16.msra.mxu0 0
        %588 = vmatprep.subr.bf16.mxu0 0
        %589 = vmatpush1.bf16.msra.mxu0 0
        %590 = vmatprep.subr.bf16.mxu0 0
        %591 = vmatpush1.bf16.msra.mxu0 0
        %592 = vmatprep.subr.bf16.mxu0 0
        %593 = vmatpush1.bf16.msra.mxu0 0
        %594 = vmatprep.subr.bf16.mxu0 0
        %595 = vmatpush1.bf16.msra.mxu0 0
        %596 = vmatprep.subr.bf16.mxu0 0
        %597 = vmatpush1.bf16.msra.mxu0 0
        %598 = vmatprep.mubr.bf16.mxu0 0
        %599 = vmatmul.mubr.bf16.gmra.mrb[0].mxu0 %v536
        %v600 = vpop.f32.mrb[0].mxu0
        %v601 = vadd.f32 %v460, %v600
        %v602 = vpop.f32.mrb[0].mxu0
        %v603 = vadd.f32 %v460, %v602
        %v604 = vpop.f32.mrb[0].mxu0
        %v605 = vpop.f32.mrb[0].mxu0
        %606 = vdwg.mxu0
        %607 = vmatprep.subr.bf16.mxu0 %v513
        %608 = vmatpush1.bf16.msra.mxu0 %v512
        %609 = vmatprep.subr.bf16.mxu0 %v552
        %610 = vmatpush1.bf16.msra.mxu0 %v549
        %611 = vmatprep.subr.bf16.mxu0 0
        %612 = vmatpush1.bf16.msra.mxu0 0
        %613 = vmatprep.subr.bf16.mxu0 0
        %614 = vmatpush1.bf16.msra.mxu0 0
        %615 = vmatprep.subr.bf16.mxu0 0
        %616 = vmatpush1.bf16.msra.mxu0 0
        %617 = vmatprep.subr.bf16.mxu0 0
        %618 = vmatpush1.bf16.msra.mxu0 0
        %619 = vmatprep.subr.bf16.mxu0 0
        %620 = vmatpush1.bf16.msra.mxu0 0
        %621 = vmatprep.subr.bf16.mxu0 0
        %622 = vmatpush1.bf16.msra.mxu0 0
        %623 = vmatprep.subr.bf16.mxu0 0
        %624 = vmatpush1.bf16.msra.mxu0 0
        %625 = vmatprep.subr.bf16.mxu0 0
        %626 = vmatpush1.bf16.msra.mxu0 0
        %627 = vmatprep.subr.bf16.mxu0 0
        %628 = vmatpush1.bf16.msra.mxu0 0
        %629 = vmatprep.subr.bf16.mxu0 0
        %630 = vmatpush1.bf16.msra.mxu0 0
        %631 = vmatprep.subr.bf16.mxu0 0
        %632 = vmatpush1.bf16.msra.mxu0 0
        %633 = vmatprep.subr.bf16.mxu0 0
        %634 = vmatpush1.bf16.msra.mxu0 0
        %635 = vmatprep.subr.bf16.mxu0 0
        %636 = vmatpush1.bf16.msra.mxu0 0
        %637 = vmatprep.subr.bf16.mxu0 0
        %638 = vmatpush1.bf16.msra.mxu0 0
        %639 = vmatprep.mubr.bf16.mxu0 0
        %640 = vmatmul.mubr.bf16.gmra.mrb[0].mxu0 %v536
        %v641 = vpop.f32.mrb[0].mxu0
        %v642 = vadd.f32 %v460, %v641
        %v643 = vpop.f32.mrb[0].mxu0
        %v644 = vadd.f32 %v460, %v643
        %v645 = vpop.f32.mrb[0].mxu0
        %v646 = vpop.f32.mrb[0].mxu0
        %647 = vdwg.mxu0
        %648 = vmatprep.subr.bf16.mxu0 %v515
        %649 = vmatpush1.bf16.msra.mxu0 %v514
        %650 = vmatprep.subr.bf16.mxu0 %v558
        %651 = vmatpush1.bf16.msra.mxu0 %v555
        %652 = vmatprep.subr.bf16.mxu0 0
        %653 = vmatpush1.bf16.msra.mxu0 0
        %654 = vmatprep.subr.bf16.mxu0 0
        %655 = vmatpush1.bf16.msra.mxu0 0
        %656 = vmatprep.subr.bf16.mxu0 0
        %657 = vmatpush1.bf16.msra.mxu0 0
        %658 = vmatprep.subr.bf16.mxu0 0
        %659 = vmatpush1.bf16.msra.mxu0 0
        %660 = vmatprep.subr.bf16.mxu0 0
        %661 = vmatpush1.bf16.msra.mxu0 0
        %662 = vmatprep.subr.bf16.mxu0 0
        %663 = vmatpush1.bf16.msra.mxu0 0
        %664 = vmatprep.subr.bf16.mxu0 0
        %665 = vmatpush1.bf16.msra.mxu0 0
        %666 = vmatprep.subr.bf16.mxu0 0
        %667 = vmatpush1.bf16.msra.mxu0 0
        %668 = vmatprep.subr.bf16.mxu0 0
        %669 = vmatpush1.bf16.msra.mxu0 0
        %670 = vmatprep.subr.bf16.mxu0 0
        %671 = vmatpush1.bf16.msra.mxu0 0
        %672 = vmatprep.subr.bf16.mxu0 0
        %673 = vmatpush1.bf16.msra.mxu0 0
        %674 = vmatprep.subr.bf16.mxu0 0
        %675 = vmatpush1.bf16.msra.mxu0 0
        %676 = vmatprep.subr.bf16.mxu0 0
        %677 = vmatpush1.bf16.msra.mxu0 0
        %678 = vmatprep.subr.bf16.mxu0 0
        %679 = vmatpush1.bf16.msra.mxu0 0
        %680 = vmatprep.mubr.bf16.mxu0 0
        %681 = vmatmul.mubr.bf16.gmra.mrb[0].mxu0 %v536
        %v682 = vpop.f32.mrb[0].mxu0
        %v683 = vadd.f32 %v460, %v682
        %v684 = vpop.f32.mrb[0].mxu0
        %v685 = vadd.f32 %v460, %v684
        %v686 = vpop.f32.mrb[0].mxu0
        %v687 = vpop.f32.mrb[0].mxu0
        %688 = vdwg.mxu0
        %689 = vmatprep.subr.bf16.mxu0 %v517
        %690 = vmatpush1.bf16.msra.mxu0 %v516
        %691 = vmatprep.subr.bf16.mxu0 %v564
        %692 = vmatpush1.bf16.msra.mxu0 %v561
        %693 = vmatprep.subr.bf16.mxu0 0
        %694 = vmatpush1.bf16.msra.mxu0 0
        %695 = vmatprep.subr.bf16.mxu0 0
        %696 = vmatpush1.bf16.msra.mxu0 0
        %697 = vmatprep.subr.bf16.mxu0 0
        %698 = vmatpush1.bf16.msra.mxu0 0
        %699 = vmatprep.subr.bf16.mxu0 0
        %700 = vmatpush1.bf16.msra.mxu0 0
        %701 = vmatprep.subr.bf16.mxu0 0
        %702 = vmatpush1.bf16.msra.mxu0 0
        %703 = vmatprep.subr.bf16.mxu0 0
        %704 = vmatpush1.bf16.msra.mxu0 0
        %705 = vmatprep.subr.bf16.mxu0 0
        %706 = vmatpush1.bf16.msra.mxu0 0
        %707 = vmatprep.subr.bf16.mxu0 0
        %708 = vmatpush1.bf16.msra.mxu0 0
        %709 = vmatprep.subr.bf16.mxu0 0
        %710 = vmatpush1.bf16.msra.mxu0 0
        %711 = vmatprep.subr.bf16.mxu0 0
        %712 = vmatpush1.bf16.msra.mxu0 0
        %713 = vmatprep.subr.bf16.mxu0 0
        %714 = vmatpush1.bf16.msra.mxu0 0
        %715 = vmatprep.subr.bf16.mxu0 0
        %716 = vmatpush1.bf16.msra.mxu0 0
        %717 = vmatprep.subr.bf16.mxu0 0
        %718 = vmatpush1.bf16.msra.mxu0 0
        %719 = vmatprep.subr.bf16.mxu0 0
        %720 = vmatpush1.bf16.msra.mxu0 0
        %721 = vmatprep.mubr.bf16.mxu0 0
        %722 = vmatmul.mubr.bf16.gmra.mrb[0].mxu0 %v536
        %v723 = vpop.f32.mrb[0].mxu0
        %v724 = vadd.f32 %v460, %v723
        %v725 = vpop.f32.mrb[0].mxu0
        %v726 = vadd.f32 %v460, %v725
        %v727 = vpop.f32.mrb[0].mxu0
        %v728 = vpop.f32.mrb[0].mxu0
        %729 = vdwg.mxu0
        %v730 = vmax.f32 %v601, 0.0
        %v731 = vmax.f32 %v603, 0.0
        %v732 = vmax.f32 %v642, 0.0
        %v733 = vmax.f32 %v644, 0.0
        %v734 = vmax.f32 %v683, 0.0
        %v735 = vmax.f32 %v685, 0.0
        %v736 = vmax.f32 %v724, 0.0
        %v737 = vmax.f32 %v726, 0.0
        %v738 = vmax.f32 %v730, %v732
        %v739 = vmax.f32 %v731, %v733
        %v740 = vmax.f32 %v734, %v736
        %v741 = vmax.f32 %v735, %v737
        %v742 = vmax.f32 %v738, %v740
        %v743 = vmax.f32 %v739, %v741
        %v744 = vld [vmem:[%s3] sm:$0xff]
        %v746 = vlaneseq
        %v747 = vshrl.u32 %v746, 7
        %v748 = vsub.s32 0, %v747
        %v749 = vrot.slane %v744, %v748
        %v750 = vlaneseq
        %v751 = vshrl.u32 %v750, 7
        %v752 = vsub.s32 1, %v751
        %v753 = vrot.slane %v744, %v752
        %v754 = vlaneseq
        %v755 = vshrl.u32 %v754, 7
        %v756 = vsub.s32 2, %v755
        %v757 = vrot.slane %v744, %v756
        %v758 = vlaneseq
        %v759 = vshrl.u32 %v758, 7
        %v760 = vsub.s32 3, %v759
        %v761 = vrot.slane %v744, %v760
        %v762 = vlaneseq
        %v763 = vshrl.u32 %v762, 7
        %v764 = vsub.s32 4, %v763
        %v765 = vrot.slane %v744, %v764
        %v766 = vlaneseq
        %v767 = vshrl.u32 %v766, 7
        %v768 = vsub.s32 5, %v767
        %v769 = vrot.slane %v744, %v768
        %v770 = vlaneseq
        %v771 = vshrl.u32 %v770, 7
        %v772 = vsub.s32 6, %v771
        %v773 = vrot.slane %v744, %v772
        %v774 = vlaneseq
        %v775 = vshrl.u32 %v774, 7
        %v776 = vsub.s32 7, %v775
        %v777 = vrot.slane %v744, %v776
        %v786 = vmul.f32 %v730, %v749
        %v787 = vmul.f32 %v731, %v753
        %v788 = vmul.f32 %v732, %v757
        %v789 = vmul.f32 %v733, %v761
        %v790 = vmul.f32 %v734, %v765
        %v791 = vmul.f32 %v735, %v769
        %v792 = vmul.f32 %v736, %v773
        %v793 = vmul.f32 %v737, %v777
        %vm794 = vcmask 1045504
        %v795 = vsel %vm794, %v786, 0.0
        %v796 = vsel %vm794, %v787, 0.0
        %v797 = vadd.f32 %v795, %v796
        %v798 = vsel %vm794, %v788, 0.0
        %v799 = vadd.f32 %v797, %v798
        %v800 = vsel %vm794, %v789, 0.0
        %v801 = vadd.f32 %v799, %v800
        %v802 = vsel %vm794, %v790, 0.0
        %v803 = vadd.f32 %v801, %v802
        %v804 = vsel %vm794, %v791, 0.0
        %v805 = vadd.f32 %v803, %v804
        %v806 = vsel %vm794, %v792, 0.0
        %v807 = vadd.f32 %v805, %v806
        %v808 = vsel %vm794, %v793, 0.0
        %v809 = vadd.f32 %v807, %v808
        %810 = vadd.xlane.f32.xlu0 %v809
        %v811 = vpop.xlane.xlu0 %810
        %v812 = vrot.slane %v811, 4
        %v813 = vadd.f32 %v811, %v812
        %v814 = vrot.slane %v813, 2
        %v815 = vadd.f32 %v813, %v814
        %v816 = vrot.slane %v815, 1
        %v817 = vadd.f32 %v815, %v816
        %s818 = vtos %v817
        %v819 = vstv %s818
        %v820 = vrcp.pop 4704.0
        %v821 = vmul.f32 %v819, %v820
        %v822 = vsub.f32 %v730, %v821
        %v823 = vsub.f32 %v731, %v821
        %v824 = vsub.f32 %v732, %v821
        %v825 = vsub.f32 %v733, %v821
        %v826 = vsub.f32 %v734, %v821
        %v827 = vsub.f32 %v735, %v821
        %v828 = vsub.f32 %v736, %v821
        %v829 = vsub.f32 %v737, %v821
        %v830 = vmul.f32 %v822, %v749
        %v831 = vmul.f32 %v823, %v753
        %v832 = vmul.f32 %v824, %v757
        %v833 = vmul.f32 %v825, %v761
        %v834 = vmul.f32 %v826, %v765
        %v835 = vmul.f32 %v827, %v769
        %v836 = vmul.f32 %v828, %v773
        %v837 = vmul.f32 %v829, %v777
        %v838 = vmul.f32 %v830, %v830
        %v839 = vmul.f32 %v831, %v831
        %v840 = vmul.f32 %v832, %v832
        %v841 = vmul.f32 %v833, %v833
        %v842 = vmul.f32 %v834, %v834
        %v843 = vmul.f32 %v835, %v835
        %v844 = vmul.f32 %v836, %v836
        %v845 = vmul.f32 %v837, %v837
        %v846 = vsel %vm794, %v838, 0.0
        %v847 = vsel %vm794, %v839, 0.0
        %v848 = vadd.f32 %v846, %v847
        %v849 = vsel %vm794, %v840, 0.0
        %v850 = vadd.f32 %v848, %v849
        %v851 = vsel %vm794, %v841, 0.0
        %v852 = vadd.f32 %v850, %v851
        %v853 = vsel %vm794, %v842, 0.0
        %v854 = vadd.f32 %v852, %v853
        %v855 = vsel %vm794, %v843, 0.0
        %v856 = vadd.f32 %v854, %v855
        %v857 = vsel %vm794, %v844, 0.0
        %v858 = vadd.f32 %v856, %v857
        %v859 = vsel %vm794, %v845, 0.0
        %v860 = vadd.f32 %v858, %v859
        %861 = vadd.xlane.f32.xlu0 %v860
        %v862 = vpop.xlane.xlu0 %861
        %v863 = vrot.slane %v862, 4
        %v864 = vadd.f32 %v862, %v863
        %v865 = vrot.slane %v864, 2
        %v866 = vadd.f32 %v864, %v865
        %v867 = vrot.slane %v866, 1
        %v868 = vadd.f32 %v866, %v867
        %s869 = vtos %v868
        %v870 = vstv %s869
        %v871 = vmul.f32 %v870, %v820
        %v872 = vsub.f32 %v742, %v821
        %v873 = vsub.f32 %v743, %v821
        %v874 = vadd.f32 %v871, 1e-05
        %v875 = vrsqrt.pop %v874
        %v876 = vmul.f32 %v872, %v875
        %v877 = vmul.f32 %v873, %v875
        %v878 = vpack.c.bf16 %v876, %v876
        %v879 = vpack.c.bf16 %v877, %v877
        %v880 = vld [vmem:[%s4] sm:$0xff]
        %v881 = vld [vmem:[%s4 + $0x8] sm:$0xff]
        %v884 = vunpack.c.l.b16 %v880
        %v885 = vunpack.c.l.b16 %v881
        %v886 = vpack.c.b16 %v885, %v884
        %887 = vrot.lane.b32.xlu0 %v886, 122
        %v888 = vpop.permute.xlu0 %887
        %891 = vrot.lane.b32.xlu0 %v878, 127
        %v892 = vpop.permute.xlu0 %891
        %893 = vrot.lane.b32.xlu0 %v879, 127
        %v894 = vpop.permute.xlu0 %893
        %vm895 = vcmask 1039360
        %v896 = vsel %vm895, %v892, %v894
        %vm897 = vcmask 48128
        %v899 = vsel %vm897, %v888, 0
        %vm901 = vcmask 1042432
        %v903 = vsel %vm901, %v896, 0
        %v906 = vsel %vm901, %v894, 0
        %908 = vmatprep.subr.bf16.mxu0 %v906
        %909 = vmatpush1.bf16.msra.mxu0 %v903
        %910 = vmatprep.subr.bf16.mxu0 0
        %911 = vmatpush1.bf16.msra.mxu0 0
        %912 = vmatprep.subr.bf16.mxu0 0
        %913 = vmatpush1.bf16.msra.mxu0 0
        %914 = vmatprep.subr.bf16.mxu0 0
        %915 = vmatpush1.bf16.msra.mxu0 0
        %916 = vmatprep.subr.bf16.mxu0 0
        %917 = vmatpush1.bf16.msra.mxu0 0
        %918 = vmatprep.subr.bf16.mxu0 0
        %919 = vmatpush1.bf16.msra.mxu0 0
        %920 = vmatprep.subr.bf16.mxu0 0
        %921 = vmatpush1.bf16.msra.mxu0 0
        %922 = vmatprep.subr.bf16.mxu0 0
        %923 = vmatpush1.bf16.msra.mxu0 0
        %924 = vmatprep.subr.bf16.mxu0 0
        %925 = vmatpush1.bf16.msra.mxu0 0
        %926 = vmatprep.subr.bf16.mxu0 0
        %927 = vmatpush1.bf16.msra.mxu0 0
        %928 = vmatprep.subr.bf16.mxu0 0
        %929 = vmatpush1.bf16.msra.mxu0 0
        %930 = vmatprep.subr.bf16.mxu0 0
        %931 = vmatpush1.bf16.msra.mxu0 0
        %932 = vmatprep.subr.bf16.mxu0 0
        %933 = vmatpush1.bf16.msra.mxu0 0
        %934 = vmatprep.subr.bf16.mxu0 0
        %935 = vmatpush1.bf16.msra.mxu0 0
        %936 = vmatprep.subr.bf16.mxu0 0
        %937 = vmatpush1.bf16.msra.mxu0 0
        %938 = vmatprep.subr.bf16.mxu0 0
        %939 = vmatpush1.bf16.msra.mxu0 0
        %940 = vmatprep.mubr.bf16.mxu0 0
        %941 = vmatmul.mubr.bf16.gmra.mrb[0].mxu0 %v899
        %v942 = vpop.f32.mrb[0].mxu0
        %v943 = vadd.f32 0.0, %v942
        %v944 = vpop.f32.mrb[0].mxu0
        %v945 = vadd.f32 0.0, %v944
        %v946 = vpop.f32.mrb[0].mxu0
        %v947 = vadd.f32 0.0, %v946
        %v948 = vpop.f32.mrb[0].mxu0
        %v949 = vadd.f32 0.0, %v948
        %950 = vdwg.mxu0
        %v952 = vsel %vm897, %v886, 0
        %v955 = vsel %vm901, %v878, 0
        %v958 = vsel %vm901, %v879, 0
        %960 = vmatprep.subr.bf16.mxu0 %v958
        %961 = vmatpush1.bf16.msra.mxu0 %v955
        %962 = vmatprep.subr.bf16.mxu0 0
        %963 = vmatpush1.bf16.msra.mxu0 0
        %964 = vmatprep.subr.bf16.mxu0 0
        %965 = vmatpush1.bf16.msra.mxu0 0
        %966 = vmatprep.subr.bf16.mxu0 0
        %967 = vmatpush1.bf16.msra.mxu0 0
        %968 = vmatprep.subr.bf16.mxu0 0
        %969 = vmatpush1.bf16.msra.mxu0 0
        %970 = vmatprep.subr.bf16.mxu0 0
        %971 = vmatpush1.bf16.msra.mxu0 0
        %972 = vmatprep.subr.bf16.mxu0 0
        %973 = vmatpush1.bf16.msra.mxu0 0
        %974 = vmatprep.subr.bf16.mxu0 0
        %975 = vmatpush1.bf16.msra.mxu0 0
        %976 = vmatprep.subr.bf16.mxu0 0
        %977 = vmatpush1.bf16.msra.mxu0 0
        %978 = vmatprep.subr.bf16.mxu0 0
        %979 = vmatpush1.bf16.msra.mxu0 0
        %980 = vmatprep.subr.bf16.mxu0 0
        %981 = vmatpush1.bf16.msra.mxu0 0
        %982 = vmatprep.subr.bf16.mxu0 0
        %983 = vmatpush1.bf16.msra.mxu0 0
        %984 = vmatprep.subr.bf16.mxu0 0
        %985 = vmatpush1.bf16.msra.mxu0 0
        %986 = vmatprep.subr.bf16.mxu0 0
        %987 = vmatpush1.bf16.msra.mxu0 0
        %988 = vmatprep.subr.bf16.mxu0 0
        %989 = vmatpush1.bf16.msra.mxu0 0
        %990 = vmatprep.subr.bf16.mxu0 0
        %991 = vmatpush1.bf16.msra.mxu0 0
        %992 = vmatprep.mubr.bf16.mxu0 0
        %993 = vmatmul.mubr.bf16.gmra.mrb[0].mxu0 %v952
        %v994 = vpop.f32.mrb[0].mxu0
        %v995 = vadd.f32 %v943, %v994
        %v996 = vpop.f32.mrb[0].mxu0
        %v997 = vadd.f32 %v945, %v996
        %v998 = vpop.f32.mrb[0].mxu0
        %v999 = vadd.f32 %v947, %v998
        %v1000 = vpop.f32.mrb[0].mxu0
        %v1001 = vadd.f32 %v949, %v1000
        %1002 = vdwg.mxu0
        %1003 = vrot.lane.b32.xlu0 %v886, 116
        %v1004 = vpop.permute.xlu0 %1003
        %1005 = vrot.lane.b32.xlu0 %v878, 126
        %v1006 = vpop.permute.xlu0 %1005
        %1007 = vrot.lane.b32.xlu0 %v879, 126
        %v1008 = vpop.permute.xlu0 %1007
        %vm1009 = vcmask 1031168
        %v1010 = vsel %vm1009, %v1006, %v1008
        %v1012 = vsel %vm897, %v1004, 0
        %v1015 = vsel %vm901, %v1010, 0
        %v1018 = vsel %vm901, %v1008, 0
        %1020 = vmatprep.subr.bf16.mxu0 %v1018
        %1021 = vmatpush1.bf16.msra.mxu0 %v1015
        %1022 = vmatprep.subr.bf16.mxu0 0
        %1023 = vmatpush1.bf16.msra.mxu0 0
        %1024 = vmatprep.subr.bf16.mxu0 0
        %1025 = vmatpush1.bf16.msra.mxu0 0
        %1026 = vmatprep.subr.bf16.mxu0 0
        %1027 = vmatpush1.bf16.msra.mxu0 0
        %1028 = vmatprep.subr.bf16.mxu0 0
        %1029 = vmatpush1.bf16.msra.mxu0 0
        %1030 = vmatprep.subr.bf16.mxu0 0
        %1031 = vmatpush1.bf16.msra.mxu0 0
        %1032 = vmatprep.subr.bf16.mxu0 0
        %1033 = vmatpush1.bf16.msra.mxu0 0
        %1034 = vmatprep.subr.bf16.mxu0 0
        %1035 = vmatpush1.bf16.msra.mxu0 0
        %1036 = vmatprep.subr.bf16.mxu0 0
        %1037 = vmatpush1.bf16.msra.mxu0 0
        %1038 = vmatprep.subr.bf16.mxu0 0
        %1039 = vmatpush1.bf16.msra.mxu0 0
        %1040 = vmatprep.subr.bf16.mxu0 0
        %1041 = vmatpush1.bf16.msra.mxu0 0
        %1042 = vmatprep.subr.bf16.mxu0 0
        %1043 = vmatpush1.bf16.msra.mxu0 0
        %1044 = vmatprep.subr.bf16.mxu0 0
        %1045 = vmatpush1.bf16.msra.mxu0 0
        %1046 = vmatprep.subr.bf16.mxu0 0
        %1047 = vmatpush1.bf16.msra.mxu0 0
        %1048 = vmatprep.subr.bf16.mxu0 0
        %1049 = vmatpush1.bf16.msra.mxu0 0
        %1050 = vmatprep.subr.bf16.mxu0 0
        %1051 = vmatpush1.bf16.msra.mxu0 0
        %1052 = vmatprep.mubr.bf16.mxu0 0
        %1053 = vmatmul.mubr.bf16.gmra.mrb[0].mxu0 %v1012
        %v1054 = vpop.f32.mrb[0].mxu0
        %v1055 = vadd.f32 0.0, %v1054
        %v1056 = vpop.f32.mrb[0].mxu0
        %v1057 = vadd.f32 0.0, %v1056
        %v1058 = vpop.f32.mrb[0].mxu0
        %v1059 = vadd.f32 0.0, %v1058
        %v1060 = vpop.f32.mrb[0].mxu0
        %v1061 = vadd.f32 0.0, %v1060
        %1062 = vdwg.mxu0
        %v1063 = vadd.f32 %v995, %v1055
        %v1064 = vadd.f32 %v997, %v1057
        %v1065 = vadd.f32 %v999, %v1059
        %v1066 = vadd.f32 %v1001, %v1061
        %1067 = vrot.lane.b32.xlu0 %v886, 110
        %v1068 = vpop.permute.xlu0 %1067
        %1069 = vrot.lane.b32.xlu0 %v878, 125
        %v1070 = vpop.permute.xlu0 %1069
        %1071 = vrot.lane.b32.xlu0 %v879, 125
        %v1072 = vpop.permute.xlu0 %1071
        %vm1073 = vcmask 1022976
        %v1074 = vsel %vm1073, %v1070, %v1072
        %v1076 = vsel %vm897, %v1068, 0
        %v1079 = vsel %vm901, %v1074, 0
        %v1082 = vsel %vm901, %v1072, 0
        %1084 = vmatprep.subr.bf16.mxu0 %v1082
        %1085 = vmatpush1.bf16.msra.mxu0 %v1079
        %1086 = vmatprep.subr.bf16.mxu0 0
        %1087 = vmatpush1.bf16.msra.mxu0 0
        %1088 = vmatprep.subr.bf16.mxu0 0
        %1089 = vmatpush1.bf16.msra.mxu0 0
        %1090 = vmatprep.subr.bf16.mxu0 0
        %1091 = vmatpush1.bf16.msra.mxu0 0
        %1092 = vmatprep.subr.bf16.mxu0 0
        %1093 = vmatpush1.bf16.msra.mxu0 0
        %1094 = vmatprep.subr.bf16.mxu0 0
        %1095 = vmatpush1.bf16.msra.mxu0 0
        %1096 = vmatprep.subr.bf16.mxu0 0
        %1097 = vmatpush1.bf16.msra.mxu0 0
        %1098 = vmatprep.subr.bf16.mxu0 0
        %1099 = vmatpush1.bf16.msra.mxu0 0
        %1100 = vmatprep.subr.bf16.mxu0 0
        %1101 = vmatpush1.bf16.msra.mxu0 0
        %1102 = vmatprep.subr.bf16.mxu0 0
        %1103 = vmatpush1.bf16.msra.mxu0 0
        %1104 = vmatprep.subr.bf16.mxu0 0
        %1105 = vmatpush1.bf16.msra.mxu0 0
        %1106 = vmatprep.subr.bf16.mxu0 0
        %1107 = vmatpush1.bf16.msra.mxu0 0
        %1108 = vmatprep.subr.bf16.mxu0 0
        %1109 = vmatpush1.bf16.msra.mxu0 0
        %1110 = vmatprep.subr.bf16.mxu0 0
        %1111 = vmatpush1.bf16.msra.mxu0 0
        %1112 = vmatprep.subr.bf16.mxu0 0
        %1113 = vmatpush1.bf16.msra.mxu0 0
        %1114 = vmatprep.subr.bf16.mxu0 0
        %1115 = vmatpush1.bf16.msra.mxu0 0
        %1116 = vmatprep.mubr.bf16.mxu0 0
        %1117 = vmatmul.mubr.bf16.gmra.mrb[0].mxu0 %v1076
        %v1118 = vpop.f32.mrb[0].mxu0
        %v1119 = vadd.f32 0.0, %v1118
        %v1120 = vpop.f32.mrb[0].mxu0
        %v1121 = vadd.f32 0.0, %v1120
        %v1122 = vpop.f32.mrb[0].mxu0
        %v1123 = vadd.f32 0.0, %v1122
        %v1124 = vpop.f32.mrb[0].mxu0
        %v1125 = vadd.f32 0.0, %v1124
        %1126 = vdwg.mxu0
        %v1127 = vadd.f32 %v1063, %v1119
        %v1128 = vadd.f32 %v1064, %v1121
        %v1129 = vadd.f32 %v1065, %v1123
        %v1130 = vadd.f32 %v1066, %v1125
        %1131 = vrot.lane.b32.xlu0 %v886, 104
        %v1132 = vpop.permute.xlu0 %1131
        %1133 = vrot.lane.b32.xlu0 %v878, 124
        %v1134 = vpop.permute.xlu0 %1133
        %1135 = vrot.lane.b32.xlu0 %v879, 124
        %v1136 = vpop.permute.xlu0 %1135
        %vm1137 = vcmask 1014784
        %v1138 = vsel %vm1137, %v1134, %v1136
        %v1140 = vsel %vm897, %v1132, 0
        %v1143 = vsel %vm901, %v1138, 0
        %v1146 = vsel %vm901, %v1136, 0
        %1148 = vmatprep.subr.bf16.mxu0 %v1146
        %1149 = vmatpush1.bf16.msra.mxu0 %v1143
        %1150 = vmatprep.subr.bf16.mxu0 0
        %1151 = vmatpush1.bf16.msra.mxu0 0
        %1152 = vmatprep.subr.bf16.mxu0 0
        %1153 = vmatpush1.bf16.msra.mxu0 0
        %1154 = vmatprep.subr.bf16.mxu0 0
        %1155 = vmatpush1.bf16.msra.mxu0 0
        %1156 = vmatprep.subr.bf16.mxu0 0
        %1157 = vmatpush1.bf16.msra.mxu0 0
        %1158 = vmatprep.subr.bf16.mxu0 0
        %1159 = vmatpush1.bf16.msra.mxu0 0
        %1160 = vmatprep.subr.bf16.mxu0 0
        %1161 = vmatpush1.bf16.msra.mxu0 0
        %1162 = vmatprep.subr.bf16.mxu0 0
        %1163 = vmatpush1.bf16.msra.mxu0 0
        %1164 = vmatprep.subr.bf16.mxu0 0
        %1165 = vmatpush1.bf16.msra.mxu0 0
        %1166 = vmatprep.subr.bf16.mxu0 0
        %1167 = vmatpush1.bf16.msra.mxu0 0
        %1168 = vmatprep.subr.bf16.mxu0 0
        %1169 = vmatpush1.bf16.msra.mxu0 0
        %1170 = vmatprep.subr.bf16.mxu0 0
        %1171 = vmatpush1.bf16.msra.mxu0 0
        %1172 = vmatprep.subr.bf16.mxu0 0
        %1173 = vmatpush1.bf16.msra.mxu0 0
        %1174 = vmatprep.subr.bf16.mxu0 0
        %1175 = vmatpush1.bf16.msra.mxu0 0
        %1176 = vmatprep.subr.bf16.mxu0 0
        %1177 = vmatpush1.bf16.msra.mxu0 0
        %1178 = vmatprep.subr.bf16.mxu0 0
        %1179 = vmatpush1.bf16.msra.mxu0 0
        %1180 = vmatprep.mubr.bf16.mxu0 0
        %1181 = vmatmul.mubr.bf16.gmra.mrb[0].mxu0 %v1140
        %v1182 = vpop.f32.mrb[0].mxu0
        %v1183 = vadd.f32 0.0, %v1182
        %v1184 = vpop.f32.mrb[0].mxu0
        %v1185 = vadd.f32 0.0, %v1184
        %v1186 = vpop.f32.mrb[0].mxu0
        %v1187 = vadd.f32 0.0, %v1186
        %v1188 = vpop.f32.mrb[0].mxu0
        %v1189 = vadd.f32 0.0, %v1188
        %1190 = vdwg.mxu0
        %v1191 = vadd.f32 %v1127, %v1183
        %v1192 = vadd.f32 %v1128, %v1185
        %v1193 = vadd.f32 %v1129, %v1187
        %v1194 = vadd.f32 %v1130, %v1189
        %1195 = vrot.lane.b32.xlu0 %v886, 98
        %v1196 = vpop.permute.xlu0 %1195
        %1197 = vrot.lane.b32.xlu0 %v878, 114
        %v1198 = vpop.permute.xlu0 %1197
        %1199 = vrot.lane.b32.xlu0 %v879, 114
        %v1200 = vpop.permute.xlu0 %1199
        %vm1201 = vcmask 932864
        %v1202 = vsel %vm1201, %v1198, %v1200
        %v1204 = vsel %vm897, %v1196, 0
        %v1207 = vsel %vm901, %v1202, 0
        %v1210 = vsel %vm901, %v1200, 0
        %1212 = vmatprep.subr.bf16.mxu0 %v1210
        %1213 = vmatpush1.bf16.msra.mxu0 %v1207
        %1214 = vmatprep.subr.bf16.mxu0 0
        %1215 = vmatpush1.bf16.msra.mxu0 0
        %1216 = vmatprep.subr.bf16.mxu0 0
        %1217 = vmatpush1.bf16.msra.mxu0 0
        %1218 = vmatprep.subr.bf16.mxu0 0
        %1219 = vmatpush1.bf16.msra.mxu0 0
        %1220 = vmatprep.subr.bf16.mxu0 0
        %1221 = vmatpush1.bf16.msra.mxu0 0
        %1222 = vmatprep.subr.bf16.mxu0 0
        %1223 = vmatpush1.bf16.msra.mxu0 0
        %1224 = vmatprep.subr.bf16.mxu0 0
        %1225 = vmatpush1.bf16.msra.mxu0 0
        %1226 = vmatprep.subr.bf16.mxu0 0
        %1227 = vmatpush1.bf16.msra.mxu0 0
        %1228 = vmatprep.subr.bf16.mxu0 0
        %1229 = vmatpush1.bf16.msra.mxu0 0
        %1230 = vmatprep.subr.bf16.mxu0 0
        %1231 = vmatpush1.bf16.msra.mxu0 0
        %1232 = vmatprep.subr.bf16.mxu0 0
        %1233 = vmatpush1.bf16.msra.mxu0 0
        %1234 = vmatprep.subr.bf16.mxu0 0
        %1235 = vmatpush1.bf16.msra.mxu0 0
        %1236 = vmatprep.subr.bf16.mxu0 0
        %1237 = vmatpush1.bf16.msra.mxu0 0
        %1238 = vmatprep.subr.bf16.mxu0 0
        %1239 = vmatpush1.bf16.msra.mxu0 0
        %1240 = vmatprep.subr.bf16.mxu0 0
        %1241 = vmatpush1.bf16.msra.mxu0 0
        %1242 = vmatprep.subr.bf16.mxu0 0
        %1243 = vmatpush1.bf16.msra.mxu0 0
        %1244 = vmatprep.mubr.bf16.mxu0 0
        %1245 = vmatmul.mubr.bf16.gmra.mrb[0].mxu0 %v1204
        %v1246 = vpop.f32.mrb[0].mxu0
        %v1247 = vadd.f32 0.0, %v1246
        %v1248 = vpop.f32.mrb[0].mxu0
        %v1249 = vadd.f32 0.0, %v1248
        %v1250 = vpop.f32.mrb[0].mxu0
        %v1251 = vadd.f32 0.0, %v1250
        %v1252 = vpop.f32.mrb[0].mxu0
        %v1253 = vadd.f32 0.0, %v1252
        %1254 = vdwg.mxu0
        %v1255 = vadd.f32 %v1191, %v1247
        %v1256 = vadd.f32 %v1192, %v1249
        %v1257 = vadd.f32 %v1193, %v1251
        %v1258 = vadd.f32 %v1194, %v1253
        %1259 = vrot.lane.b32.xlu0 %v886, 92
        %v1260 = vpop.permute.xlu0 %1259
        %1261 = vrot.lane.b32.xlu0 %v878, 113
        %v1262 = vpop.permute.xlu0 %1261
        %1263 = vrot.lane.b32.xlu0 %v879, 113
        %v1264 = vpop.permute.xlu0 %1263
        %vm1265 = vcmask 924672
        %v1266 = vsel %vm1265, %v1262, %v1264
        %v1268 = vsel %vm897, %v1260, 0
        %v1271 = vsel %vm901, %v1266, 0
        %v1274 = vsel %vm901, %v1264, 0
        %1276 = vmatprep.subr.bf16.mxu0 %v1274
        %1277 = vmatpush1.bf16.msra.mxu0 %v1271
        %1278 = vmatprep.subr.bf16.mxu0 0
        %1279 = vmatpush1.bf16.msra.mxu0 0
        %1280 = vmatprep.subr.bf16.mxu0 0
        %1281 = vmatpush1.bf16.msra.mxu0 0
        %1282 = vmatprep.subr.bf16.mxu0 0
        %1283 = vmatpush1.bf16.msra.mxu0 0
        %1284 = vmatprep.subr.bf16.mxu0 0
        %1285 = vmatpush1.bf16.msra.mxu0 0
        %1286 = vmatprep.subr.bf16.mxu0 0
        %1287 = vmatpush1.bf16.msra.mxu0 0
        %1288 = vmatprep.subr.bf16.mxu0 0
        %1289 = vmatpush1.bf16.msra.mxu0 0
        %1290 = vmatprep.subr.bf16.mxu0 0
        %1291 = vmatpush1.bf16.msra.mxu0 0
        %1292 = vmatprep.subr.bf16.mxu0 0
        %1293 = vmatpush1.bf16.msra.mxu0 0
        %1294 = vmatprep.subr.bf16.mxu0 0
        %1295 = vmatpush1.bf16.msra.mxu0 0
        %1296 = vmatprep.subr.bf16.mxu0 0
        %1297 = vmatpush1.bf16.msra.mxu0 0
        %1298 = vmatprep.subr.bf16.mxu0 0
        %1299 = vmatpush1.bf16.msra.mxu0 0
        %1300 = vmatprep.subr.bf16.mxu0 0
        %1301 = vmatpush1.bf16.msra.mxu0 0
        %1302 = vmatprep.subr.bf16.mxu0 0
        %1303 = vmatpush1.bf16.msra.mxu0 0
        %1304 = vmatprep.subr.bf16.mxu0 0
        %1305 = vmatpush1.bf16.msra.mxu0 0
        %1306 = vmatprep.subr.bf16.mxu0 0
        %1307 = vmatpush1.bf16.msra.mxu0 0
        %1308 = vmatprep.mubr.bf16.mxu0 0
        %1309 = vmatmul.mubr.bf16.gmra.mrb[0].mxu0 %v1268
        %v1310 = vpop.f32.mrb[0].mxu0
        %v1311 = vadd.f32 0.0, %v1310
        %v1312 = vpop.f32.mrb[0].mxu0
        %v1313 = vadd.f32 0.0, %v1312
        %v1314 = vpop.f32.mrb[0].mxu0
        %v1315 = vadd.f32 0.0, %v1314
        %v1316 = vpop.f32.mrb[0].mxu0
        %v1317 = vadd.f32 0.0, %v1316
        %1318 = vdwg.mxu0
        %v1319 = vadd.f32 %v1255, %v1311
        %v1320 = vadd.f32 %v1256, %v1313
        %v1321 = vadd.f32 %v1257, %v1315
        %v1322 = vadd.f32 %v1258, %v1317
        %1323 = vrot.lane.b32.xlu0 %v886, 86
        %v1324 = vpop.permute.xlu0 %1323
        %1325 = vrot.lane.b32.xlu0 %v878, 112
        %v1326 = vpop.permute.xlu0 %1325
        %1327 = vrot.lane.b32.xlu0 %v879, 112
        %v1328 = vpop.permute.xlu0 %1327
        %vm1329 = vcmask 916480
        %v1330 = vsel %vm1329, %v1326, %v1328
        %v1332 = vsel %vm897, %v1324, 0
        %v1335 = vsel %vm901, %v1330, 0
        %v1338 = vsel %vm901, %v1328, 0
        %1340 = vmatprep.subr.bf16.mxu0 %v1338
        %1341 = vmatpush1.bf16.msra.mxu0 %v1335
        %1342 = vmatprep.subr.bf16.mxu0 0
        %1343 = vmatpush1.bf16.msra.mxu0 0
        %1344 = vmatprep.subr.bf16.mxu0 0
        %1345 = vmatpush1.bf16.msra.mxu0 0
        %1346 = vmatprep.subr.bf16.mxu0 0
        %1347 = vmatpush1.bf16.msra.mxu0 0
        %1348 = vmatprep.subr.bf16.mxu0 0
        %1349 = vmatpush1.bf16.msra.mxu0 0
        %1350 = vmatprep.subr.bf16.mxu0 0
        %1351 = vmatpush1.bf16.msra.mxu0 0
        %1352 = vmatprep.subr.bf16.mxu0 0
        %1353 = vmatpush1.bf16.msra.mxu0 0
        %1354 = vmatprep.subr.bf16.mxu0 0
        %1355 = vmatpush1.bf16.msra.mxu0 0
        %1356 = vmatprep.subr.bf16.mxu0 0
        %1357 = vmatpush1.bf16.msra.mxu0 0
        %1358 = vmatprep.subr.bf16.mxu0 0
        %1359 = vmatpush1.bf16.msra.mxu0 0
        %1360 = vmatprep.subr.bf16.mxu0 0
        %1361 = vmatpush1.bf16.msra.mxu0 0
        %1362 = vmatprep.subr.bf16.mxu0 0
        %1363 = vmatpush1.bf16.msra.mxu0 0
        %1364 = vmatprep.subr.bf16.mxu0 0
        %1365 = vmatpush1.bf16.msra.mxu0 0
        %1366 = vmatprep.subr.bf16.mxu0 0
        %1367 = vmatpush1.bf16.msra.mxu0 0
        %1368 = vmatprep.subr.bf16.mxu0 0
        %1369 = vmatpush1.bf16.msra.mxu0 0
        %1370 = vmatprep.subr.bf16.mxu0 0
        %1371 = vmatpush1.bf16.msra.mxu0 0
        %1372 = vmatprep.mubr.bf16.mxu0 0
        %1373 = vmatmul.mubr.bf16.gmra.mrb[0].mxu0 %v1332
        %v1374 = vpop.f32.mrb[0].mxu0
        %v1375 = vadd.f32 0.0, %v1374
        %v1376 = vpop.f32.mrb[0].mxu0
        %v1377 = vadd.f32 0.0, %v1376
        %v1378 = vpop.f32.mrb[0].mxu0
        %v1379 = vadd.f32 0.0, %v1378
        %v1380 = vpop.f32.mrb[0].mxu0
        %v1381 = vadd.f32 0.0, %v1380
        %1382 = vdwg.mxu0
        %v1383 = vadd.f32 %v1319, %v1375
        %v1384 = vadd.f32 %v1320, %v1377
        %v1385 = vadd.f32 %v1321, %v1379
        %v1386 = vadd.f32 %v1322, %v1381
        %1387 = vrot.lane.b32.xlu0 %v886, 80
        %v1388 = vpop.permute.xlu0 %1387
        %1389 = vrot.lane.b32.xlu0 %v878, 111
        %v1390 = vpop.permute.xlu0 %1389
        %1391 = vrot.lane.b32.xlu0 %v879, 111
        %v1392 = vpop.permute.xlu0 %1391
        %vm1393 = vcmask 908288
        %v1394 = vsel %vm1393, %v1390, %v1392
        %v1396 = vsel %vm897, %v1388, 0
        %v1399 = vsel %vm901, %v1394, 0
        %v1402 = vsel %vm901, %v1392, 0
        %1404 = vmatprep.subr.bf16.mxu0 %v1402
        %1405 = vmatpush1.bf16.msra.mxu0 %v1399
        %1406 = vmatprep.subr.bf16.mxu0 0
        %1407 = vmatpush1.bf16.msra.mxu0 0
        %1408 = vmatprep.subr.bf16.mxu0 0
        %1409 = vmatpush1.bf16.msra.mxu0 0
        %1410 = vmatprep.subr.bf16.mxu0 0
        %1411 = vmatpush1.bf16.msra.mxu0 0
        %1412 = vmatprep.subr.bf16.mxu0 0
        %1413 = vmatpush1.bf16.msra.mxu0 0
        %1414 = vmatprep.subr.bf16.mxu0 0
        %1415 = vmatpush1.bf16.msra.mxu0 0
        %1416 = vmatprep.subr.bf16.mxu0 0
        %1417 = vmatpush1.bf16.msra.mxu0 0
        %1418 = vmatprep.subr.bf16.mxu0 0
        %1419 = vmatpush1.bf16.msra.mxu0 0
        %1420 = vmatprep.subr.bf16.mxu0 0
        %1421 = vmatpush1.bf16.msra.mxu0 0
        %1422 = vmatprep.subr.bf16.mxu0 0
        %1423 = vmatpush1.bf16.msra.mxu0 0
        %1424 = vmatprep.subr.bf16.mxu0 0
        %1425 = vmatpush1.bf16.msra.mxu0 0
        %1426 = vmatprep.subr.bf16.mxu0 0
        %1427 = vmatpush1.bf16.msra.mxu0 0
        %1428 = vmatprep.subr.bf16.mxu0 0
        %1429 = vmatpush1.bf16.msra.mxu0 0
        %1430 = vmatprep.subr.bf16.mxu0 0
        %1431 = vmatpush1.bf16.msra.mxu0 0
        %1432 = vmatprep.subr.bf16.mxu0 0
        %1433 = vmatpush1.bf16.msra.mxu0 0
        %1434 = vmatprep.subr.bf16.mxu0 0
        %1435 = vmatpush1.bf16.msra.mxu0 0
        %1436 = vmatprep.mubr.bf16.mxu0 0
        %1437 = vmatmul.mubr.bf16.gmra.mrb[0].mxu0 %v1396
        %v1438 = vpop.f32.mrb[0].mxu0
        %v1439 = vadd.f32 0.0, %v1438
        %v1440 = vpop.f32.mrb[0].mxu0
        %v1441 = vadd.f32 0.0, %v1440
        %v1442 = vpop.f32.mrb[0].mxu0
        %v1443 = vadd.f32 0.0, %v1442
        %v1444 = vpop.f32.mrb[0].mxu0
        %v1445 = vadd.f32 0.0, %v1444
        %1446 = vdwg.mxu0
        %v1447 = vadd.f32 %v1383, %v1439
        %v1448 = vadd.f32 %v1384, %v1441
        %v1449 = vadd.f32 %v1385, %v1443
        %v1450 = vadd.f32 %v1386, %v1445
        %1451 = vrot.lane.b32.xlu0 %v886, 74
        %v1452 = vpop.permute.xlu0 %1451
        %1453 = vrot.lane.b32.xlu0 %v878, 110
        %v1454 = vpop.permute.xlu0 %1453
        %1455 = vrot.lane.b32.xlu0 %v879, 110
        %v1456 = vpop.permute.xlu0 %1455
        %vm1457 = vcmask 900096
        %v1458 = vsel %vm1457, %v1454, %v1456
        %v1460 = vsel %vm897, %v1452, 0
        %v1463 = vsel %vm901, %v1458, 0
        %v1466 = vsel %vm901, %v1456, 0
        %1468 = vmatprep.subr.bf16.mxu0 %v1466
        %1469 = vmatpush1.bf16.msra.mxu0 %v1463
        %1470 = vmatprep.subr.bf16.mxu0 0
        %1471 = vmatpush1.bf16.msra.mxu0 0
        %1472 = vmatprep.subr.bf16.mxu0 0
        %1473 = vmatpush1.bf16.msra.mxu0 0
        %1474 = vmatprep.subr.bf16.mxu0 0
        %1475 = vmatpush1.bf16.msra.mxu0 0
        %1476 = vmatprep.subr.bf16.mxu0 0
        %1477 = vmatpush1.bf16.msra.mxu0 0
        %1478 = vmatprep.subr.bf16.mxu0 0
        %1479 = vmatpush1.bf16.msra.mxu0 0
        %1480 = vmatprep.subr.bf16.mxu0 0
        %1481 = vmatpush1.bf16.msra.mxu0 0
        %1482 = vmatprep.subr.bf16.mxu0 0
        %1483 = vmatpush1.bf16.msra.mxu0 0
        %1484 = vmatprep.subr.bf16.mxu0 0
        %1485 = vmatpush1.bf16.msra.mxu0 0
        %1486 = vmatprep.subr.bf16.mxu0 0
        %1487 = vmatpush1.bf16.msra.mxu0 0
        %1488 = vmatprep.subr.bf16.mxu0 0
        %1489 = vmatpush1.bf16.msra.mxu0 0
        %1490 = vmatprep.subr.bf16.mxu0 0
        %1491 = vmatpush1.bf16.msra.mxu0 0
        %1492 = vmatprep.subr.bf16.mxu0 0
        %1493 = vmatpush1.bf16.msra.mxu0 0
        %1494 = vmatprep.subr.bf16.mxu0 0
        %1495 = vmatpush1.bf16.msra.mxu0 0
        %1496 = vmatprep.subr.bf16.mxu0 0
        %1497 = vmatpush1.bf16.msra.mxu0 0
        %1498 = vmatprep.subr.bf16.mxu0 0
        %1499 = vmatpush1.bf16.msra.mxu0 0
        %1500 = vmatprep.mubr.bf16.mxu0 0
        %1501 = vmatmul.mubr.bf16.gmra.mrb[0].mxu0 %v1460
        %v1502 = vpop.f32.mrb[0].mxu0
        %v1503 = vadd.f32 0.0, %v1502
        %v1504 = vpop.f32.mrb[0].mxu0
        %v1505 = vadd.f32 0.0, %v1504
        %v1506 = vpop.f32.mrb[0].mxu0
        %v1507 = vadd.f32 0.0, %v1506
        %v1508 = vpop.f32.mrb[0].mxu0
        %v1509 = vadd.f32 0.0, %v1508
        %1510 = vdwg.mxu0
        %v1511 = vadd.f32 %v1447, %v1503
        %v1512 = vadd.f32 %v1448, %v1505
        %v1513 = vadd.f32 %v1449, %v1507
        %v1514 = vadd.f32 %v1450, %v1509
        %1515 = vrot.lane.b32.xlu0 %v886, 68
        %v1516 = vpop.permute.xlu0 %1515
        %1517 = vrot.lane.b32.xlu0 %v878, 100
        %v1518 = vpop.permute.xlu0 %1517
        %1519 = vrot.lane.b32.xlu0 %v879, 100
        %v1520 = vpop.permute.xlu0 %1519
        %vm1521 = vcmask 818176
        %v1522 = vsel %vm1521, %v1518, %v1520
        %v1524 = vsel %vm897, %v1516, 0
        %v1527 = vsel %vm901, %v1522, 0
        %v1530 = vsel %vm901, %v1520, 0
        %1532 = vmatprep.subr.bf16.mxu0 %v1530
        %1533 = vmatpush1.bf16.msra.mxu0 %v1527
        %1534 = vmatprep.subr.bf16.mxu0 0
        %1535 = vmatpush1.bf16.msra.mxu0 0
        %1536 = vmatprep.subr.bf16.mxu0 0
        %1537 = vmatpush1.bf16.msra.mxu0 0
        %1538 = vmatprep.subr.bf16.mxu0 0
        %1539 = vmatpush1.bf16.msra.mxu0 0
        %1540 = vmatprep.subr.bf16.mxu0 0
        %1541 = vmatpush1.bf16.msra.mxu0 0
        %1542 = vmatprep.subr.bf16.mxu0 0
        %1543 = vmatpush1.bf16.msra.mxu0 0
        %1544 = vmatprep.subr.bf16.mxu0 0
        %1545 = vmatpush1.bf16.msra.mxu0 0
        %1546 = vmatprep.subr.bf16.mxu0 0
        %1547 = vmatpush1.bf16.msra.mxu0 0
        %1548 = vmatprep.subr.bf16.mxu0 0
        %1549 = vmatpush1.bf16.msra.mxu0 0
        %1550 = vmatprep.subr.bf16.mxu0 0
        %1551 = vmatpush1.bf16.msra.mxu0 0
        %1552 = vmatprep.subr.bf16.mxu0 0
        %1553 = vmatpush1.bf16.msra.mxu0 0
        %1554 = vmatprep.subr.bf16.mxu0 0
        %1555 = vmatpush1.bf16.msra.mxu0 0
        %1556 = vmatprep.subr.bf16.mxu0 0
        %1557 = vmatpush1.bf16.msra.mxu0 0
        %1558 = vmatprep.subr.bf16.mxu0 0
        %1559 = vmatpush1.bf16.msra.mxu0 0
        %1560 = vmatprep.subr.bf16.mxu0 0
        %1561 = vmatpush1.bf16.msra.mxu0 0
        %1562 = vmatprep.subr.bf16.mxu0 0
        %1563 = vmatpush1.bf16.msra.mxu0 0
        %1564 = vmatprep.mubr.bf16.mxu0 0
        %1565 = vmatmul.mubr.bf16.gmra.mrb[0].mxu0 %v1524
        %v1566 = vpop.f32.mrb[0].mxu0
        %v1567 = vadd.f32 0.0, %v1566
        %v1568 = vpop.f32.mrb[0].mxu0
        %v1569 = vadd.f32 0.0, %v1568
        %v1570 = vpop.f32.mrb[0].mxu0
        %v1571 = vadd.f32 0.0, %v1570
        %v1572 = vpop.f32.mrb[0].mxu0
        %v1573 = vadd.f32 0.0, %v1572
        %1574 = vdwg.mxu0
        %v1575 = vadd.f32 %v1511, %v1567
        %v1576 = vadd.f32 %v1512, %v1569
        %v1577 = vadd.f32 %v1513, %v1571
        %v1578 = vadd.f32 %v1514, %v1573
        %1579 = vrot.lane.b32.xlu0 %v886, 62
        %v1580 = vpop.permute.xlu0 %1579
        %1581 = vrot.lane.b32.xlu0 %v878, 99
        %v1582 = vpop.permute.xlu0 %1581
        %1583 = vrot.lane.b32.xlu0 %v879, 99
        %v1584 = vpop.permute.xlu0 %1583
        %vm1585 = vcmask 809984
        %v1586 = vsel %vm1585, %v1582, %v1584
        %v1588 = vsel %vm897, %v1580, 0
        %v1591 = vsel %vm901, %v1586, 0
        %v1594 = vsel %vm901, %v1584, 0
        %1596 = vmatprep.subr.bf16.mxu0 %v1594
        %1597 = vmatpush1.bf16.msra.mxu0 %v1591
        %1598 = vmatprep.subr.bf16.mxu0 0
        %1599 = vmatpush1.bf16.msra.mxu0 0
        %1600 = vmatprep.subr.bf16.mxu0 0
        %1601 = vmatpush1.bf16.msra.mxu0 0
        %1602 = vmatprep.subr.bf16.mxu0 0
        %1603 = vmatpush1.bf16.msra.mxu0 0
        %1604 = vmatprep.subr.bf16.mxu0 0
        %1605 = vmatpush1.bf16.msra.mxu0 0
        %1606 = vmatprep.subr.bf16.mxu0 0
        %1607 = vmatpush1.bf16.msra.mxu0 0
        %1608 = vmatprep.subr.bf16.mxu0 0
        %1609 = vmatpush1.bf16.msra.mxu0 0
        %1610 = vmatprep.subr.bf16.mxu0 0
        %1611 = vmatpush1.bf16.msra.mxu0 0
        %1612 = vmatprep.subr.bf16.mxu0 0
        %1613 = vmatpush1.bf16.msra.mxu0 0
        %1614 = vmatprep.subr.bf16.mxu0 0
        %1615 = vmatpush1.bf16.msra.mxu0 0
        %1616 = vmatprep.subr.bf16.mxu0 0
        %1617 = vmatpush1.bf16.msra.mxu0 0
        %1618 = vmatprep.subr.bf16.mxu0 0
        %1619 = vmatpush1.bf16.msra.mxu0 0
        %1620 = vmatprep.subr.bf16.mxu0 0
        %1621 = vmatpush1.bf16.msra.mxu0 0
        %1622 = vmatprep.subr.bf16.mxu0 0
        %1623 = vmatpush1.bf16.msra.mxu0 0
        %1624 = vmatprep.subr.bf16.mxu0 0
        %1625 = vmatpush1.bf16.msra.mxu0 0
        %1626 = vmatprep.subr.bf16.mxu0 0
        %1627 = vmatpush1.bf16.msra.mxu0 0
        %1628 = vmatprep.mubr.bf16.mxu0 0
        %1629 = vmatmul.mubr.bf16.gmra.mrb[0].mxu0 %v1588
        %v1630 = vpop.f32.mrb[0].mxu0
        %v1631 = vadd.f32 0.0, %v1630
        %v1632 = vpop.f32.mrb[0].mxu0
        %v1633 = vadd.f32 0.0, %v1632
        %v1634 = vpop.f32.mrb[0].mxu0
        %v1635 = vadd.f32 0.0, %v1634
        %v1636 = vpop.f32.mrb[0].mxu0
        %v1637 = vadd.f32 0.0, %v1636
        %1638 = vdwg.mxu0
        %v1639 = vadd.f32 %v1575, %v1631
        %v1640 = vadd.f32 %v1576, %v1633
        %v1641 = vadd.f32 %v1577, %v1635
        %v1642 = vadd.f32 %v1578, %v1637
        %1643 = vrot.lane.b32.xlu0 %v886, 56
        %v1644 = vpop.permute.xlu0 %1643
        %1645 = vrot.lane.b32.xlu0 %v878, 98
        %v1646 = vpop.permute.xlu0 %1645
        %1647 = vrot.lane.b32.xlu0 %v879, 98
        %v1648 = vpop.permute.xlu0 %1647
        %vm1649 = vcmask 801792
        %v1650 = vsel %vm1649, %v1646, %v1648
        %v1652 = vsel %vm897, %v1644, 0
        %v1655 = vsel %vm901, %v1650, 0
        %v1658 = vsel %vm901, %v1648, 0
        %1660 = vmatprep.subr.bf16.mxu0 %v1658
        %1661 = vmatpush1.bf16.msra.mxu0 %v1655
        %1662 = vmatprep.subr.bf16.mxu0 0
        %1663 = vmatpush1.bf16.msra.mxu0 0
        %1664 = vmatprep.subr.bf16.mxu0 0
        %1665 = vmatpush1.bf16.msra.mxu0 0
        %1666 = vmatprep.subr.bf16.mxu0 0
        %1667 = vmatpush1.bf16.msra.mxu0 0
        %1668 = vmatprep.subr.bf16.mxu0 0
        %1669 = vmatpush1.bf16.msra.mxu0 0
        %1670 = vmatprep.subr.bf16.mxu0 0
        %1671 = vmatpush1.bf16.msra.mxu0 0
        %1672 = vmatprep.subr.bf16.mxu0 0
        %1673 = vmatpush1.bf16.msra.mxu0 0
        %1674 = vmatprep.subr.bf16.mxu0 0
        %1675 = vmatpush1.bf16.msra.mxu0 0
        %1676 = vmatprep.subr.bf16.mxu0 0
        %1677 = vmatpush1.bf16.msra.mxu0 0
        %1678 = vmatprep.subr.bf16.mxu0 0
        %1679 = vmatpush1.bf16.msra.mxu0 0
        %1680 = vmatprep.subr.bf16.mxu0 0
        %1681 = vmatpush1.bf16.msra.mxu0 0
        %1682 = vmatprep.subr.bf16.mxu0 0
        %1683 = vmatpush1.bf16.msra.mxu0 0
        %1684 = vmatprep.subr.bf16.mxu0 0
        %1685 = vmatpush1.bf16.msra.mxu0 0
        %1686 = vmatprep.subr.bf16.mxu0 0
        %1687 = vmatpush1.bf16.msra.mxu0 0
        %1688 = vmatprep.subr.bf16.mxu0 0
        %1689 = vmatpush1.bf16.msra.mxu0 0
        %1690 = vmatprep.subr.bf16.mxu0 0
        %1691 = vmatpush1.bf16.msra.mxu0 0
        %1692 = vmatprep.mubr.bf16.mxu0 0
        %1693 = vmatmul.mubr.bf16.gmra.mrb[0].mxu0 %v1652
        %v1694 = vpop.f32.mrb[0].mxu0
        %v1695 = vadd.f32 0.0, %v1694
        %v1696 = vpop.f32.mrb[0].mxu0
        %v1697 = vadd.f32 0.0, %v1696
        %v1698 = vpop.f32.mrb[0].mxu0
        %v1699 = vadd.f32 0.0, %v1698
        %v1700 = vpop.f32.mrb[0].mxu0
        %v1701 = vadd.f32 0.0, %v1700
        %1702 = vdwg.mxu0
        %v1703 = vadd.f32 %v1639, %v1695
        %v1704 = vadd.f32 %v1640, %v1697
        %v1705 = vadd.f32 %v1641, %v1699
        %v1706 = vadd.f32 %v1642, %v1701
        %1707 = vrot.lane.b32.xlu0 %v886, 50
        %v1708 = vpop.permute.xlu0 %1707
        %1709 = vrot.lane.b32.xlu0 %v878, 97
        %v1710 = vpop.permute.xlu0 %1709
        %1711 = vrot.lane.b32.xlu0 %v879, 97
        %v1712 = vpop.permute.xlu0 %1711
        %vm1713 = vcmask 793600
        %v1714 = vsel %vm1713, %v1710, %v1712
        %v1716 = vsel %vm897, %v1708, 0
        %v1719 = vsel %vm901, %v1714, 0
        %v1722 = vsel %vm901, %v1712, 0
        %1724 = vmatprep.subr.bf16.mxu0 %v1722
        %1725 = vmatpush1.bf16.msra.mxu0 %v1719
        %1726 = vmatprep.subr.bf16.mxu0 0
        %1727 = vmatpush1.bf16.msra.mxu0 0
        %1728 = vmatprep.subr.bf16.mxu0 0
        %1729 = vmatpush1.bf16.msra.mxu0 0
        %1730 = vmatprep.subr.bf16.mxu0 0
        %1731 = vmatpush1.bf16.msra.mxu0 0
        %1732 = vmatprep.subr.bf16.mxu0 0
        %1733 = vmatpush1.bf16.msra.mxu0 0
        %1734 = vmatprep.subr.bf16.mxu0 0
        %1735 = vmatpush1.bf16.msra.mxu0 0
        %1736 = vmatprep.subr.bf16.mxu0 0
        %1737 = vmatpush1.bf16.msra.mxu0 0
        %1738 = vmatprep.subr.bf16.mxu0 0
        %1739 = vmatpush1.bf16.msra.mxu0 0
        %1740 = vmatprep.subr.bf16.mxu0 0
        %1741 = vmatpush1.bf16.msra.mxu0 0
        %1742 = vmatprep.subr.bf16.mxu0 0
        %1743 = vmatpush1.bf16.msra.mxu0 0
        %1744 = vmatprep.subr.bf16.mxu0 0
        %1745 = vmatpush1.bf16.msra.mxu0 0
        %1746 = vmatprep.subr.bf16.mxu0 0
        %1747 = vmatpush1.bf16.msra.mxu0 0
        %1748 = vmatprep.subr.bf16.mxu0 0
        %1749 = vmatpush1.bf16.msra.mxu0 0
        %1750 = vmatprep.subr.bf16.mxu0 0
        %1751 = vmatpush1.bf16.msra.mxu0 0
        %1752 = vmatprep.subr.bf16.mxu0 0
        %1753 = vmatpush1.bf16.msra.mxu0 0
        %1754 = vmatprep.subr.bf16.mxu0 0
        %1755 = vmatpush1.bf16.msra.mxu0 0
        %1756 = vmatprep.mubr.bf16.mxu0 0
        %1757 = vmatmul.mubr.bf16.gmra.mrb[0].mxu0 %v1716
        %v1758 = vpop.f32.mrb[0].mxu0
        %v1759 = vadd.f32 0.0, %v1758
        %v1760 = vpop.f32.mrb[0].mxu0
        %v1761 = vadd.f32 0.0, %v1760
        %v1762 = vpop.f32.mrb[0].mxu0
        %v1763 = vadd.f32 0.0, %v1762
        %v1764 = vpop.f32.mrb[0].mxu0
        %v1765 = vadd.f32 0.0, %v1764
        %1766 = vdwg.mxu0
        %v1767 = vadd.f32 %v1703, %v1759
        %v1768 = vadd.f32 %v1704, %v1761
        %v1769 = vadd.f32 %v1705, %v1763
        %v1770 = vadd.f32 %v1706, %v1765
        %1771 = vrot.lane.b32.xlu0 %v886, 44
        %v1772 = vpop.permute.xlu0 %1771
        %1773 = vrot.lane.b32.xlu0 %v878, 96
        %v1774 = vpop.permute.xlu0 %1773
        %1775 = vrot.lane.b32.xlu0 %v879, 96
        %v1776 = vpop.permute.xlu0 %1775
        %vm1777 = vcmask 785408
        %v1778 = vsel %vm1777, %v1774, %v1776
        %v1780 = vsel %vm897, %v1772, 0
        %v1783 = vsel %vm901, %v1778, 0
        %v1786 = vsel %vm901, %v1776, 0
        %1788 = vmatprep.subr.bf16.mxu0 %v1786
        %1789 = vmatpush1.bf16.msra.mxu0 %v1783
        %1790 = vmatprep.subr.bf16.mxu0 0
        %1791 = vmatpush1.bf16.msra.mxu0 0
        %1792 = vmatprep.subr.bf16.mxu0 0
        %1793 = vmatpush1.bf16.msra.mxu0 0
        %1794 = vmatprep.subr.bf16.mxu0 0
        %1795 = vmatpush1.bf16.msra.mxu0 0
        %1796 = vmatprep.subr.bf16.mxu0 0
        %1797 = vmatpush1.bf16.msra.mxu0 0
        %1798 = vmatprep.subr.bf16.mxu0 0
        %1799 = vmatpush1.bf16.msra.mxu0 0
        %1800 = vmatprep.subr.bf16.mxu0 0
        %1801 = vmatpush1.bf16.msra.mxu0 0
        %1802 = vmatprep.subr.bf16.mxu0 0
        %1803 = vmatpush1.bf16.msra.mxu0 0
        %1804 = vmatprep.subr.bf16.mxu0 0
        %1805 = vmatpush1.bf16.msra.mxu0 0
        %1806 = vmatprep.subr.bf16.mxu0 0
        %1807 = vmatpush1.bf16.msra.mxu0 0
        %1808 = vmatprep.subr.bf16.mxu0 0
        %1809 = vmatpush1.bf16.msra.mxu0 0
        %1810 = vmatprep.subr.bf16.mxu0 0
        %1811 = vmatpush1.bf16.msra.mxu0 0
        %1812 = vmatprep.subr.bf16.mxu0 0
        %1813 = vmatpush1.bf16.msra.mxu0 0
        %1814 = vmatprep.subr.bf16.mxu0 0
        %1815 = vmatpush1.bf16.msra.mxu0 0
        %1816 = vmatprep.subr.bf16.mxu0 0
        %1817 = vmatpush1.bf16.msra.mxu0 0
        %1818 = vmatprep.subr.bf16.mxu0 0
        %1819 = vmatpush1.bf16.msra.mxu0 0
        %1820 = vmatprep.mubr.bf16.mxu0 0
        %1821 = vmatmul.mubr.bf16.gmra.mrb[0].mxu0 %v1780
        %v1822 = vpop.f32.mrb[0].mxu0
        %v1823 = vadd.f32 0.0, %v1822
        %v1824 = vpop.f32.mrb[0].mxu0
        %v1825 = vadd.f32 0.0, %v1824
        %v1826 = vpop.f32.mrb[0].mxu0
        %v1827 = vadd.f32 0.0, %v1826
        %v1828 = vpop.f32.mrb[0].mxu0
        %v1829 = vadd.f32 0.0, %v1828
        %1830 = vdwg.mxu0
        %v1831 = vadd.f32 %v1767, %v1823
        %v1832 = vadd.f32 %v1768, %v1825
        %v1833 = vadd.f32 %v1769, %v1827
        %v1834 = vadd.f32 %v1770, %v1829
        %1835 = vrot.lane.b32.xlu0 %v886, 38
        %v1836 = vpop.permute.xlu0 %1835
        %1837 = vrot.lane.b32.xlu0 %v878, 86
        %v1838 = vpop.permute.xlu0 %1837
        %1839 = vrot.lane.b32.xlu0 %v879, 86
        %v1840 = vpop.permute.xlu0 %1839
        %vm1841 = vcmask 703488
        %v1842 = vsel %vm1841, %v1838, %v1840
        %v1844 = vsel %vm897, %v1836, 0
        %v1847 = vsel %vm901, %v1842, 0
        %v1850 = vsel %vm901, %v1840, 0
        %1852 = vmatprep.subr.bf16.mxu0 %v1850
        %1853 = vmatpush1.bf16.msra.mxu0 %v1847
        %1854 = vmatprep.subr.bf16.mxu0 0
        %1855 = vmatpush1.bf16.msra.mxu0 0
        %1856 = vmatprep.subr.bf16.mxu0 0
        %1857 = vmatpush1.bf16.msra.mxu0 0
        %1858 = vmatprep.subr.bf16.mxu0 0
        %1859 = vmatpush1.bf16.msra.mxu0 0
        %1860 = vmatprep.subr.bf16.mxu0 0
        %1861 = vmatpush1.bf16.msra.mxu0 0
        %1862 = vmatprep.subr.bf16.mxu0 0
        %1863 = vmatpush1.bf16.msra.mxu0 0
        %1864 = vmatprep.subr.bf16.mxu0 0
        %1865 = vmatpush1.bf16.msra.mxu0 0
        %1866 = vmatprep.subr.bf16.mxu0 0
        %1867 = vmatpush1.bf16.msra.mxu0 0
        %1868 = vmatprep.subr.bf16.mxu0 0
        %1869 = vmatpush1.bf16.msra.mxu0 0
        %1870 = vmatprep.subr.bf16.mxu0 0
        %1871 = vmatpush1.bf16.msra.mxu0 0
        %1872 = vmatprep.subr.bf16.mxu0 0
        %1873 = vmatpush1.bf16.msra.mxu0 0
        %1874 = vmatprep.subr.bf16.mxu0 0
        %1875 = vmatpush1.bf16.msra.mxu0 0
        %1876 = vmatprep.subr.bf16.mxu0 0
        %1877 = vmatpush1.bf16.msra.mxu0 0
        %1878 = vmatprep.subr.bf16.mxu0 0
        %1879 = vmatpush1.bf16.msra.mxu0 0
        %1880 = vmatprep.subr.bf16.mxu0 0
        %1881 = vmatpush1.bf16.msra.mxu0 0
        %1882 = vmatprep.subr.bf16.mxu0 0
        %1883 = vmatpush1.bf16.msra.mxu0 0
        %1884 = vmatprep.mubr.bf16.mxu0 0
        %1885 = vmatmul.mubr.bf16.gmra.mrb[0].mxu0 %v1844
        %v1886 = vpop.f32.mrb[0].mxu0
        %v1887 = vadd.f32 0.0, %v1886
        %v1888 = vpop.f32.mrb[0].mxu0
        %v1889 = vadd.f32 0.0, %v1888
        %v1890 = vpop.f32.mrb[0].mxu0
        %v1891 = vadd.f32 0.0, %v1890
        %v1892 = vpop.f32.mrb[0].mxu0
        %v1893 = vadd.f32 0.0, %v1892
        %1894 = vdwg.mxu0
        %v1895 = vadd.f32 %v1831, %v1887
        %v1896 = vadd.f32 %v1832, %v1889
        %v1897 = vadd.f32 %v1833, %v1891
        %v1898 = vadd.f32 %v1834, %v1893
        %1899 = vrot.lane.b32.xlu0 %v886, 32
        %v1900 = vpop.permute.xlu0 %1899
        %1901 = vrot.lane.b32.xlu0 %v878, 85
        %v1902 = vpop.permute.xlu0 %1901
        %1903 = vrot.lane.b32.xlu0 %v879, 85
        %v1904 = vpop.permute.xlu0 %1903
        %vm1905 = vcmask 695296
        %v1906 = vsel %vm1905, %v1902, %v1904
        %v1908 = vsel %vm897, %v1900, 0
        %v1911 = vsel %vm901, %v1906, 0
        %v1914 = vsel %vm901, %v1904, 0
        %1916 = vmatprep.subr.bf16.mxu0 %v1914
        %1917 = vmatpush1.bf16.msra.mxu0 %v1911
        %1918 = vmatprep.subr.bf16.mxu0 0
        %1919 = vmatpush1.bf16.msra.mxu0 0
        %1920 = vmatprep.subr.bf16.mxu0 0
        %1921 = vmatpush1.bf16.msra.mxu0 0
        %1922 = vmatprep.subr.bf16.mxu0 0
        %1923 = vmatpush1.bf16.msra.mxu0 0
        %1924 = vmatprep.subr.bf16.mxu0 0
        %1925 = vmatpush1.bf16.msra.mxu0 0
        %1926 = vmatprep.subr.bf16.mxu0 0
        %1927 = vmatpush1.bf16.msra.mxu0 0
        %1928 = vmatprep.subr.bf16.mxu0 0
        %1929 = vmatpush1.bf16.msra.mxu0 0
        %1930 = vmatprep.subr.bf16.mxu0 0
        %1931 = vmatpush1.bf16.msra.mxu0 0
        %1932 = vmatprep.subr.bf16.mxu0 0
        %1933 = vmatpush1.bf16.msra.mxu0 0
        %1934 = vmatprep.subr.bf16.mxu0 0
        %1935 = vmatpush1.bf16.msra.mxu0 0
        %1936 = vmatprep.subr.bf16.mxu0 0
        %1937 = vmatpush1.bf16.msra.mxu0 0
        %1938 = vmatprep.subr.bf16.mxu0 0
        %1939 = vmatpush1.bf16.msra.mxu0 0
        %1940 = vmatprep.subr.bf16.mxu0 0
        %1941 = vmatpush1.bf16.msra.mxu0 0
        %1942 = vmatprep.subr.bf16.mxu0 0
        %1943 = vmatpush1.bf16.msra.mxu0 0
        %1944 = vmatprep.subr.bf16.mxu0 0
        %1945 = vmatpush1.bf16.msra.mxu0 0
        %1946 = vmatprep.subr.bf16.mxu0 0
        %1947 = vmatpush1.bf16.msra.mxu0 0
        %1948 = vmatprep.mubr.bf16.mxu0 0
        %1949 = vmatmul.mubr.bf16.gmra.mrb[0].mxu0 %v1908
        %v1950 = vpop.f32.mrb[0].mxu0
        %v1951 = vadd.f32 0.0, %v1950
        %v1952 = vpop.f32.mrb[0].mxu0
        %v1953 = vadd.f32 0.0, %v1952
        %v1954 = vpop.f32.mrb[0].mxu0
        %v1955 = vadd.f32 0.0, %v1954
        %v1956 = vpop.f32.mrb[0].mxu0
        %v1957 = vadd.f32 0.0, %v1956
        %1958 = vdwg.mxu0
        %v1959 = vadd.f32 %v1895, %v1951
        %v1960 = vadd.f32 %v1896, %v1953
        %v1961 = vadd.f32 %v1897, %v1955
        %v1962 = vadd.f32 %v1898, %v1957
        %1963 = vrot.lane.b32.xlu0 %v886, 26
        %v1964 = vpop.permute.xlu0 %1963
        %1965 = vrot.lane.b32.xlu0 %v878, 84
        %v1966 = vpop.permute.xlu0 %1965
        %1967 = vrot.lane.b32.xlu0 %v879, 84
        %v1968 = vpop.permute.xlu0 %1967
        %vm1969 = vcmask 687104
        %v1970 = vsel %vm1969, %v1966, %v1968
        %v1972 = vsel %vm897, %v1964, 0
        %v1975 = vsel %vm901, %v1970, 0
        %v1978 = vsel %vm901, %v1968, 0
        %1980 = vmatprep.subr.bf16.mxu0 %v1978
        %1981 = vmatpush1.bf16.msra.mxu0 %v1975
        %1982 = vmatprep.subr.bf16.mxu0 0
        %1983 = vmatpush1.bf16.msra.mxu0 0
        %1984 = vmatprep.subr.bf16.mxu0 0
        %1985 = vmatpush1.bf16.msra.mxu0 0
        %1986 = vmatprep.subr.bf16.mxu0 0
        %1987 = vmatpush1.bf16.msra.mxu0 0
        %1988 = vmatprep.subr.bf16.mxu0 0
        %1989 = vmatpush1.bf16.msra.mxu0 0
        %1990 = vmatprep.subr.bf16.mxu0 0
        %1991 = vmatpush1.bf16.msra.mxu0 0
        %1992 = vmatprep.subr.bf16.mxu0 0
        %1993 = vmatpush1.bf16.msra.mxu0 0
        %1994 = vmatprep.subr.bf16.mxu0 0
        %1995 = vmatpush1.bf16.msra.mxu0 0
        %1996 = vmatprep.subr.bf16.mxu0 0
        %1997 = vmatpush1.bf16.msra.mxu0 0
        %1998 = vmatprep.subr.bf16.mxu0 0
        %1999 = vmatpush1.bf16.msra.mxu0 0
        %2000 = vmatprep.subr.bf16.mxu0 0
        %2001 = vmatpush1.bf16.msra.mxu0 0
        %2002 = vmatprep.subr.bf16.mxu0 0
        %2003 = vmatpush1.bf16.msra.mxu0 0
        %2004 = vmatprep.subr.bf16.mxu0 0
        %2005 = vmatpush1.bf16.msra.mxu0 0
        %2006 = vmatprep.subr.bf16.mxu0 0
        %2007 = vmatpush1.bf16.msra.mxu0 0
        %2008 = vmatprep.subr.bf16.mxu0 0
        %2009 = vmatpush1.bf16.msra.mxu0 0
        %2010 = vmatprep.subr.bf16.mxu0 0
        %2011 = vmatpush1.bf16.msra.mxu0 0
        %2012 = vmatprep.mubr.bf16.mxu0 0
        %2013 = vmatmul.mubr.bf16.gmra.mrb[0].mxu0 %v1972
        %v2014 = vpop.f32.mrb[0].mxu0
        %v2015 = vadd.f32 0.0, %v2014
        %v2016 = vpop.f32.mrb[0].mxu0
        %v2017 = vadd.f32 0.0, %v2016
        %v2018 = vpop.f32.mrb[0].mxu0
        %v2019 = vadd.f32 0.0, %v2018
        %v2020 = vpop.f32.mrb[0].mxu0
        %v2021 = vadd.f32 0.0, %v2020
        %2022 = vdwg.mxu0
        %v2023 = vadd.f32 %v1959, %v2015
        %v2024 = vadd.f32 %v1960, %v2017
        %v2025 = vadd.f32 %v1961, %v2019
        %v2026 = vadd.f32 %v1962, %v2021
        %2027 = vrot.lane.b32.xlu0 %v886, 20
        %v2028 = vpop.permute.xlu0 %2027
        %2029 = vrot.lane.b32.xlu0 %v878, 83
        %v2030 = vpop.permute.xlu0 %2029
        %2031 = vrot.lane.b32.xlu0 %v879, 83
        %v2032 = vpop.permute.xlu0 %2031
        %vm2033 = vcmask 678912
        %v2034 = vsel %vm2033, %v2030, %v2032
        %v2036 = vsel %vm897, %v2028, 0
        %v2039 = vsel %vm901, %v2034, 0
        %v2042 = vsel %vm901, %v2032, 0
        %2044 = vmatprep.subr.bf16.mxu0 %v2042
        %2045 = vmatpush1.bf16.msra.mxu0 %v2039
        %2046 = vmatprep.subr.bf16.mxu0 0
        %2047 = vmatpush1.bf16.msra.mxu0 0
        %2048 = vmatprep.subr.bf16.mxu0 0
        %2049 = vmatpush1.bf16.msra.mxu0 0
        %2050 = vmatprep.subr.bf16.mxu0 0
        %2051 = vmatpush1.bf16.msra.mxu0 0
        %2052 = vmatprep.subr.bf16.mxu0 0
        %2053 = vmatpush1.bf16.msra.mxu0 0
        %2054 = vmatprep.subr.bf16.mxu0 0
        %2055 = vmatpush1.bf16.msra.mxu0 0
        %2056 = vmatprep.subr.bf16.mxu0 0
        %2057 = vmatpush1.bf16.msra.mxu0 0
        %2058 = vmatprep.subr.bf16.mxu0 0
        %2059 = vmatpush1.bf16.msra.mxu0 0
        %2060 = vmatprep.subr.bf16.mxu0 0
        %2061 = vmatpush1.bf16.msra.mxu0 0
        %2062 = vmatprep.subr.bf16.mxu0 0
        %2063 = vmatpush1.bf16.msra.mxu0 0
        %2064 = vmatprep.subr.bf16.mxu0 0
        %2065 = vmatpush1.bf16.msra.mxu0 0
        %2066 = vmatprep.subr.bf16.mxu0 0
        %2067 = vmatpush1.bf16.msra.mxu0 0
        %2068 = vmatprep.subr.bf16.mxu0 0
        %2069 = vmatpush1.bf16.msra.mxu0 0
        %2070 = vmatprep.subr.bf16.mxu0 0
        %2071 = vmatpush1.bf16.msra.mxu0 0
        %2072 = vmatprep.subr.bf16.mxu0 0
        %2073 = vmatpush1.bf16.msra.mxu0 0
        %2074 = vmatprep.subr.bf16.mxu0 0
        %2075 = vmatpush1.bf16.msra.mxu0 0
        %2076 = vmatprep.mubr.bf16.mxu0 0
        %2077 = vmatmul.mubr.bf16.gmra.mrb[0].mxu0 %v2036
        %v2078 = vpop.f32.mrb[0].mxu0
        %v2079 = vadd.f32 0.0, %v2078
        %v2080 = vpop.f32.mrb[0].mxu0
        %v2081 = vadd.f32 0.0, %v2080
        %v2082 = vpop.f32.mrb[0].mxu0
        %v2083 = vadd.f32 0.0, %v2082
        %v2084 = vpop.f32.mrb[0].mxu0
        %v2085 = vadd.f32 0.0, %v2084
        %2086 = vdwg.mxu0
        %v2087 = vadd.f32 %v2023, %v2079
        %v2088 = vadd.f32 %v2024, %v2081
        %v2089 = vadd.f32 %v2025, %v2083
        %v2090 = vadd.f32 %v2026, %v2085
        %2091 = vrot.lane.b32.xlu0 %v886, 14
        %v2092 = vpop.permute.xlu0 %2091
        %2093 = vrot.lane.b32.xlu0 %v878, 82
        %v2094 = vpop.permute.xlu0 %2093
        %2095 = vrot.lane.b32.xlu0 %v879, 82
        %v2096 = vpop.permute.xlu0 %2095
        %vm2097 = vcmask 670720
        %v2098 = vsel %vm2097, %v2094, %v2096
        %v2100 = vsel %vm897, %v2092, 0
        %v2103 = vsel %vm901, %v2098, 0
        %v2106 = vsel %vm901, %v2096, 0
        %2108 = vmatprep.subr.bf16.mxu0 %v2106
        %2109 = vmatpush1.bf16.msra.mxu0 %v2103
        %2110 = vmatprep.subr.bf16.mxu0 0
        %2111 = vmatpush1.bf16.msra.mxu0 0
        %2112 = vmatprep.subr.bf16.mxu0 0
        %2113 = vmatpush1.bf16.msra.mxu0 0
        %2114 = vmatprep.subr.bf16.mxu0 0
        %2115 = vmatpush1.bf16.msra.mxu0 0
        %2116 = vmatprep.subr.bf16.mxu0 0
        %2117 = vmatpush1.bf16.msra.mxu0 0
        %2118 = vmatprep.subr.bf16.mxu0 0
        %2119 = vmatpush1.bf16.msra.mxu0 0
        %2120 = vmatprep.subr.bf16.mxu0 0
        %2121 = vmatpush1.bf16.msra.mxu0 0
        %2122 = vmatprep.subr.bf16.mxu0 0
        %2123 = vmatpush1.bf16.msra.mxu0 0
        %2124 = vmatprep.subr.bf16.mxu0 0
        %2125 = vmatpush1.bf16.msra.mxu0 0
        %2126 = vmatprep.subr.bf16.mxu0 0
        %2127 = vmatpush1.bf16.msra.mxu0 0
        %2128 = vmatprep.subr.bf16.mxu0 0
        %2129 = vmatpush1.bf16.msra.mxu0 0
        %2130 = vmatprep.subr.bf16.mxu0 0
        %2131 = vmatpush1.bf16.msra.mxu0 0
        %2132 = vmatprep.subr.bf16.mxu0 0
        %2133 = vmatpush1.bf16.msra.mxu0 0
        %2134 = vmatprep.subr.bf16.mxu0 0
        %2135 = vmatpush1.bf16.msra.mxu0 0
        %2136 = vmatprep.subr.bf16.mxu0 0
        %2137 = vmatpush1.bf16.msra.mxu0 0
        %2138 = vmatprep.subr.bf16.mxu0 0
        %2139 = vmatpush1.bf16.msra.mxu0 0
        %2140 = vmatprep.mubr.bf16.mxu0 0
        %2141 = vmatmul.mubr.bf16.gmra.mrb[0].mxu0 %v2100
        %v2142 = vpop.f32.mrb[0].mxu0
        %v2143 = vadd.f32 0.0, %v2142
        %v2144 = vpop.f32.mrb[0].mxu0
        %v2145 = vadd.f32 0.0, %v2144
        %v2146 = vpop.f32.mrb[0].mxu0
        %v2147 = vadd.f32 0.0, %v2146
        %v2148 = vpop.f32.mrb[0].mxu0
        %v2149 = vadd.f32 0.0, %v2148
        %2150 = vdwg.mxu0
        %v2151 = vadd.f32 %v2087, %v2143
        %v2152 = vadd.f32 %v2088, %v2145
        %v2153 = vadd.f32 %v2089, %v2147
        %v2154 = vadd.f32 %v2090, %v2149
        %2155 = vrot.lane.b32.xlu0 %v886, 8
        %v2156 = vpop.permute.xlu0 %2155
        %2157 = vrot.lane.b32.xlu0 %v878, 72
        %v2158 = vpop.permute.xlu0 %2157
        %2159 = vrot.lane.b32.xlu0 %v879, 72
        %v2160 = vpop.permute.xlu0 %2159
        %vm2161 = vcmask 588800
        %v2162 = vsel %vm2161, %v2158, %v2160
        %v2164 = vsel %vm897, %v2156, 0
        %v2167 = vsel %vm901, %v2162, 0
        %v2170 = vsel %vm901, %v2160, 0
        %2172 = vmatprep.subr.bf16.mxu0 %v2170
        %2173 = vmatpush1.bf16.msra.mxu0 %v2167
        %2174 = vmatprep.subr.bf16.mxu0 0
        %2175 = vmatpush1.bf16.msra.mxu0 0
        %2176 = vmatprep.subr.bf16.mxu0 0
        %2177 = vmatpush1.bf16.msra.mxu0 0
        %2178 = vmatprep.subr.bf16.mxu0 0
        %2179 = vmatpush1.bf16.msra.mxu0 0
        %2180 = vmatprep.subr.bf16.mxu0 0
        %2181 = vmatpush1.bf16.msra.mxu0 0
        %2182 = vmatprep.subr.bf16.mxu0 0
        %2183 = vmatpush1.bf16.msra.mxu0 0
        %2184 = vmatprep.subr.bf16.mxu0 0
        %2185 = vmatpush1.bf16.msra.mxu0 0
        %2186 = vmatprep.subr.bf16.mxu0 0
        %2187 = vmatpush1.bf16.msra.mxu0 0
        %2188 = vmatprep.subr.bf16.mxu0 0
        %2189 = vmatpush1.bf16.msra.mxu0 0
        %2190 = vmatprep.subr.bf16.mxu0 0
        %2191 = vmatpush1.bf16.msra.mxu0 0
        %2192 = vmatprep.subr.bf16.mxu0 0
        %2193 = vmatpush1.bf16.msra.mxu0 0
        %2194 = vmatprep.subr.bf16.mxu0 0
        %2195 = vmatpush1.bf16.msra.mxu0 0
        %2196 = vmatprep.subr.bf16.mxu0 0
        %2197 = vmatpush1.bf16.msra.mxu0 0
        %2198 = vmatprep.subr.bf16.mxu0 0
        %2199 = vmatpush1.bf16.msra.mxu0 0
        %2200 = vmatprep.subr.bf16.mxu0 0
        %2201 = vmatpush1.bf16.msra.mxu0 0
        %2202 = vmatprep.subr.bf16.mxu0 0
        %2203 = vmatpush1.bf16.msra.mxu0 0
        %2204 = vmatprep.mubr.bf16.mxu0 0
        %2205 = vmatmul.mubr.bf16.gmra.mrb[0].mxu0 %v2164
        %v2206 = vpop.f32.mrb[0].mxu0
        %v2207 = vadd.f32 0.0, %v2206
        %v2208 = vpop.f32.mrb[0].mxu0
        %v2209 = vadd.f32 0.0, %v2208
        %v2210 = vpop.f32.mrb[0].mxu0
        %v2211 = vadd.f32 0.0, %v2210
        %v2212 = vpop.f32.mrb[0].mxu0
        %v2213 = vadd.f32 0.0, %v2212
        %2214 = vdwg.mxu0
        %v2215 = vadd.f32 %v2151, %v2207
        %v2216 = vadd.f32 %v2152, %v2209
        %v2217 = vadd.f32 %v2153, %v2211
        %v2218 = vadd.f32 %v2154, %v2213
        %v2219 = vunpack.c.h.b16 %v880
        %v2220 = vunpack.c.h.b16 %v881
        %v2221 = vpack.c.b16 %v2220, %v2219
        %2222 = vrot.lane.b32.xlu0 %v886, 2
        %v2223 = vpop.permute.xlu0 %2222
        %2224 = vrot.lane.b32.xlu0 %v2221, 2
        %v2225 = vpop.permute.xlu0 %2224
        %vm2226 = vcmask 15360
        %v2227 = vsel %vm2226, %v2223, %v2225
        %2228 = vrot.lane.b32.xlu0 %v878, 71
        %v2229 = vpop.permute.xlu0 %2228
        %2230 = vrot.lane.b32.xlu0 %v879, 71
        %v2231 = vpop.permute.xlu0 %2230
        %vm2232 = vcmask 580608
        %v2233 = vsel %vm2232, %v2229, %v2231
        %v2235 = vsel %vm897, %v2227, 0
        %v2238 = vsel %vm901, %v2233, 0
        %v2241 = vsel %vm901, %v2231, 0
        %2243 = vmatprep.subr.bf16.mxu0 %v2241
        %2244 = vmatpush1.bf16.msra.mxu0 %v2238
        %2245 = vmatprep.subr.bf16.mxu0 0
        %2246 = vmatpush1.bf16.msra.mxu0 0
        %2247 = vmatprep.subr.bf16.mxu0 0
        %2248 = vmatpush1.bf16.msra.mxu0 0
        %2249 = vmatprep.subr.bf16.mxu0 0
        %2250 = vmatpush1.bf16.msra.mxu0 0
        %2251 = vmatprep.subr.bf16.mxu0 0
        %2252 = vmatpush1.bf16.msra.mxu0 0
        %2253 = vmatprep.subr.bf16.mxu0 0
        %2254 = vmatpush1.bf16.msra.mxu0 0
        %2255 = vmatprep.subr.bf16.mxu0 0
        %2256 = vmatpush1.bf16.msra.mxu0 0
        %2257 = vmatprep.subr.bf16.mxu0 0
        %2258 = vmatpush1.bf16.msra.mxu0 0
        %2259 = vmatprep.subr.bf16.mxu0 0
        %2260 = vmatpush1.bf16.msra.mxu0 0
        %2261 = vmatprep.subr.bf16.mxu0 0
        %2262 = vmatpush1.bf16.msra.mxu0 0
        %2263 = vmatprep.subr.bf16.mxu0 0
        %2264 = vmatpush1.bf16.msra.mxu0 0
        %2265 = vmatprep.subr.bf16.mxu0 0
        %2266 = vmatpush1.bf16.msra.mxu0 0
        %2267 = vmatprep.subr.bf16.mxu0 0
        %2268 = vmatpush1.bf16.msra.mxu0 0
        %2269 = vmatprep.subr.bf16.mxu0 0
        %2270 = vmatpush1.bf16.msra.mxu0 0
        %2271 = vmatprep.subr.bf16.mxu0 0
        %2272 = vmatpush1.bf16.msra.mxu0 0
        %2273 = vmatprep.subr.bf16.mxu0 0
        %2274 = vmatpush1.bf16.msra.mxu0 0
        %2275 = vmatprep.mubr.bf16.mxu0 0
        %2276 = vmatmul.mubr.bf16.gmra.mrb[0].mxu0 %v2235
        %v2277 = vpop.f32.mrb[0].mxu0
        %v2278 = vadd.f32 0.0, %v2277
        %v2279 = vpop.f32.mrb[0].mxu0
        %v2280 = vadd.f32 0.0, %v2279
        %v2281 = vpop.f32.mrb[0].mxu0
        %v2282 = vadd.f32 0.0, %v2281
        %v2283 = vpop.f32.mrb[0].mxu0
        %v2284 = vadd.f32 0.0, %v2283
        %2285 = vdwg.mxu0
        %v2286 = vadd.f32 %v2215, %v2278
        %v2287 = vadd.f32 %v2216, %v2280
        %v2288 = vadd.f32 %v2217, %v2282
        %v2289 = vadd.f32 %v2218, %v2284
        %2290 = vrot.lane.b32.xlu0 %v2221, 124
        %v2291 = vpop.permute.xlu0 %2290
        %2292 = vrot.lane.b32.xlu0 %v878, 70
        %v2293 = vpop.permute.xlu0 %2292
        %2294 = vrot.lane.b32.xlu0 %v879, 70
        %v2295 = vpop.permute.xlu0 %2294
        %vm2296 = vcmask 572416
        %v2297 = vsel %vm2296, %v2293, %v2295
        %v2299 = vsel %vm897, %v2291, 0
        %v2302 = vsel %vm901, %v2297, 0
        %v2305 = vsel %vm901, %v2295, 0
        %2307 = vmatprep.subr.bf16.mxu0 %v2305
        %2308 = vmatpush1.bf16.msra.mxu0 %v2302
        %2309 = vmatprep.subr.bf16.mxu0 0
        %2310 = vmatpush1.bf16.msra.mxu0 0
        %2311 = vmatprep.subr.bf16.mxu0 0
        %2312 = vmatpush1.bf16.msra.mxu0 0
        %2313 = vmatprep.subr.bf16.mxu0 0
        %2314 = vmatpush1.bf16.msra.mxu0 0
        %2315 = vmatprep.subr.bf16.mxu0 0
        %2316 = vmatpush1.bf16.msra.mxu0 0
        %2317 = vmatprep.subr.bf16.mxu0 0
        %2318 = vmatpush1.bf16.msra.mxu0 0
        %2319 = vmatprep.subr.bf16.mxu0 0
        %2320 = vmatpush1.bf16.msra.mxu0 0
        %2321 = vmatprep.subr.bf16.mxu0 0
        %2322 = vmatpush1.bf16.msra.mxu0 0
        %2323 = vmatprep.subr.bf16.mxu0 0
        %2324 = vmatpush1.bf16.msra.mxu0 0
        %2325 = vmatprep.subr.bf16.mxu0 0
        %2326 = vmatpush1.bf16.msra.mxu0 0
        %2327 = vmatprep.subr.bf16.mxu0 0
        %2328 = vmatpush1.bf16.msra.mxu0 0
        %2329 = vmatprep.subr.bf16.mxu0 0
        %2330 = vmatpush1.bf16.msra.mxu0 0
        %2331 = vmatprep.subr.bf16.mxu0 0
        %2332 = vmatpush1.bf16.msra.mxu0 0
        %2333 = vmatprep.subr.bf16.mxu0 0
        %2334 = vmatpush1.bf16.msra.mxu0 0
        %2335 = vmatprep.subr.bf16.mxu0 0
        %2336 = vmatpush1.bf16.msra.mxu0 0
        %2337 = vmatprep.subr.bf16.mxu0 0
        %2338 = vmatpush1.bf16.msra.mxu0 0
        %2339 = vmatprep.mubr.bf16.mxu0 0
        %2340 = vmatmul.mubr.bf16.gmra.mrb[0].mxu0 %v2299
        %v2341 = vpop.f32.mrb[0].mxu0
        %v2342 = vadd.f32 0.0, %v2341
        %v2343 = vpop.f32.mrb[0].mxu0
        %v2344 = vadd.f32 0.0, %v2343
        %v2345 = vpop.f32.mrb[0].mxu0
        %v2346 = vadd.f32 0.0, %v2345
        %v2347 = vpop.f32.mrb[0].mxu0
        %v2348 = vadd.f32 0.0, %v2347
        %2349 = vdwg.mxu0
        %v2350 = vadd.f32 %v2286, %v2342
        %v2351 = vadd.f32 %v2287, %v2344
        %v2352 = vadd.f32 %v2288, %v2346
        %v2353 = vadd.f32 %v2289, %v2348
        %2354 = vrot.lane.b32.xlu0 %v2221, 118
        %v2355 = vpop.permute.xlu0 %2354
        %2356 = vrot.lane.b32.xlu0 %v878, 69
        %v2357 = vpop.permute.xlu0 %2356
        %2358 = vrot.lane.b32.xlu0 %v879, 69
        %v2359 = vpop.permute.xlu0 %2358
        %vm2360 = vcmask 564224
        %v2361 = vsel %vm2360, %v2357, %v2359
        %v2363 = vsel %vm897, %v2355, 0
        %v2366 = vsel %vm901, %v2361, 0
        %v2369 = vsel %vm901, %v2359, 0
        %2371 = vmatprep.subr.bf16.mxu0 %v2369
        %2372 = vmatpush1.bf16.msra.mxu0 %v2366
        %2373 = vmatprep.subr.bf16.mxu0 0
        %2374 = vmatpush1.bf16.msra.mxu0 0
        %2375 = vmatprep.subr.bf16.mxu0 0
        %2376 = vmatpush1.bf16.msra.mxu0 0
        %2377 = vmatprep.subr.bf16.mxu0 0
        %2378 = vmatpush1.bf16.msra.mxu0 0
        %2379 = vmatprep.subr.bf16.mxu0 0
        %2380 = vmatpush1.bf16.msra.mxu0 0
        %2381 = vmatprep.subr.bf16.mxu0 0
        %2382 = vmatpush1.bf16.msra.mxu0 0
        %2383 = vmatprep.subr.bf16.mxu0 0
        %2384 = vmatpush1.bf16.msra.mxu0 0
        %2385 = vmatprep.subr.bf16.mxu0 0
        %2386 = vmatpush1.bf16.msra.mxu0 0
        %2387 = vmatprep.subr.bf16.mxu0 0
        %2388 = vmatpush1.bf16.msra.mxu0 0
        %2389 = vmatprep.subr.bf16.mxu0 0
        %2390 = vmatpush1.bf16.msra.mxu0 0
        %2391 = vmatprep.subr.bf16.mxu0 0
        %2392 = vmatpush1.bf16.msra.mxu0 0
        %2393 = vmatprep.subr.bf16.mxu0 0
        %2394 = vmatpush1.bf16.msra.mxu0 0
        %2395 = vmatprep.subr.bf16.mxu0 0
        %2396 = vmatpush1.bf16.msra.mxu0 0
        %2397 = vmatprep.subr.bf16.mxu0 0
        %2398 = vmatpush1.bf16.msra.mxu0 0
        %2399 = vmatprep.subr.bf16.mxu0 0
        %2400 = vmatpush1.bf16.msra.mxu0 0
        %2401 = vmatprep.subr.bf16.mxu0 0
        %2402 = vmatpush1.bf16.msra.mxu0 0
        %2403 = vmatprep.mubr.bf16.mxu0 0
        %2404 = vmatmul.mubr.bf16.gmra.mrb[0].mxu0 %v2363
        %v2405 = vpop.f32.mrb[0].mxu0
        %v2406 = vadd.f32 0.0, %v2405
        %v2407 = vpop.f32.mrb[0].mxu0
        %v2408 = vadd.f32 0.0, %v2407
        %v2409 = vpop.f32.mrb[0].mxu0
        %v2410 = vadd.f32 0.0, %v2409
        %v2411 = vpop.f32.mrb[0].mxu0
        %v2412 = vadd.f32 0.0, %v2411
        %2413 = vdwg.mxu0
        %v2414 = vadd.f32 %v2350, %v2406
        %v2415 = vadd.f32 %v2351, %v2408
        %v2416 = vadd.f32 %v2352, %v2410
        %v2417 = vadd.f32 %v2353, %v2412
        %2418 = vrot.lane.b32.xlu0 %v2221, 112
        %v2419 = vpop.permute.xlu0 %2418
        %2420 = vrot.lane.b32.xlu0 %v878, 68
        %v2421 = vpop.permute.xlu0 %2420
        %2422 = vrot.lane.b32.xlu0 %v879, 68
        %v2423 = vpop.permute.xlu0 %2422
        %vm2424 = vcmask 556032
        %v2425 = vsel %vm2424, %v2421, %v2423
        %v2427 = vsel %vm897, %v2419, 0
        %v2430 = vsel %vm901, %v2425, 0
        %v2433 = vsel %vm901, %v2423, 0
        %2435 = vmatprep.subr.bf16.mxu0 %v2433
        %2436 = vmatpush1.bf16.msra.mxu0 %v2430
        %2437 = vmatprep.subr.bf16.mxu0 0
        %2438 = vmatpush1.bf16.msra.mxu0 0
        %2439 = vmatprep.subr.bf16.mxu0 0
        %2440 = vmatpush1.bf16.msra.mxu0 0
        %2441 = vmatprep.subr.bf16.mxu0 0
        %2442 = vmatpush1.bf16.msra.mxu0 0
        %2443 = vmatprep.subr.bf16.mxu0 0
        %2444 = vmatpush1.bf16.msra.mxu0 0
        %2445 = vmatprep.subr.bf16.mxu0 0
        %2446 = vmatpush1.bf16.msra.mxu0 0
        %2447 = vmatprep.subr.bf16.mxu0 0
        %2448 = vmatpush1.bf16.msra.mxu0 0
        %2449 = vmatprep.subr.bf16.mxu0 0
        %2450 = vmatpush1.bf16.msra.mxu0 0
        %2451 = vmatprep.subr.bf16.mxu0 0
        %2452 = vmatpush1.bf16.msra.mxu0 0
        %2453 = vmatprep.subr.bf16.mxu0 0
        %2454 = vmatpush1.bf16.msra.mxu0 0
        %2455 = vmatprep.subr.bf16.mxu0 0
        %2456 = vmatpush1.bf16.msra.mxu0 0
        %2457 = vmatprep.subr.bf16.mxu0 0
        %2458 = vmatpush1.bf16.msra.mxu0 0
        %2459 = vmatprep.subr.bf16.mxu0 0
        %2460 = vmatpush1.bf16.msra.mxu0 0
        %2461 = vmatprep.subr.bf16.mxu0 0
        %2462 = vmatpush1.bf16.msra.mxu0 0
        %2463 = vmatprep.subr.bf16.mxu0 0
        %2464 = vmatpush1.bf16.msra.mxu0 0
        %2465 = vmatprep.subr.bf16.mxu0 0
        %2466 = vmatpush1.bf16.msra.mxu0 0
        %2467 = vmatprep.mubr.bf16.mxu0 0
        %2468 = vmatmul.mubr.bf16.gmra.mrb[0].mxu0 %v2427
        %v2469 = vpop.f32.mrb[0].mxu0
        %v2470 = vadd.f32 0.0, %v2469
        %v2471 = vpop.f32.mrb[0].mxu0
        %v2472 = vadd.f32 0.0, %v2471
        %v2473 = vpop.f32.mrb[0].mxu0
        %v2474 = vadd.f32 0.0, %v2473
        %v2475 = vpop.f32.mrb[0].mxu0
        %v2476 = vadd.f32 0.0, %v2475
        %2477 = vdwg.mxu0
        %v2478 = vadd.f32 %v2414, %v2470
        %v2479 = vadd.f32 %v2415, %v2472
        %v2480 = vadd.f32 %v2416, %v2474
        %v2481 = vadd.f32 %v2417, %v2476
        %v2482 = vld [vmem:[%s5] sm:$0xff]
        %v2483 = vld [vmem:[%s5 + $0x8] sm:$0xff]
        %2485 = vset.pattern.permute.xlu0 0
        %2486 = vperm.xlu0 %2485, %v2482
        %v2487 = vpop.permute.xlu0 %2486
        %2490 = vset.pattern.permute.xlu0 0
        %2491 = vperm.xlu0 %2490, %v2483
        %v2492 = vpop.permute.xlu0 %2491
        %v2494 = vadd.f32 %v2478, %v2487
        %v2495 = vadd.f32 %v2479, %v2487
        %v2496 = vadd.f32 %v2480, %v2492
        %v2497 = vadd.f32 %v2481, %v2492
        %v2498 = vmax.f32 %v2494, 0.0
        %v2499 = vmax.f32 %v2495, 0.0
        %v2500 = vmax.f32 %v2496, 0.0
        %v2501 = vmax.f32 %v2497, 0.0
        %2506 = vrot.lane.b32.xlu0 %v2498, 127
        %v2507 = vpop.permute.xlu0 %2506
        %2508 = vrot.lane.b32.xlu0 %v2499, 127
        %v2509 = vpop.permute.xlu0 %2508
        %2510 = vrot.lane.b32.xlu0 %v2500, 127
        %v2511 = vpop.permute.xlu0 %2510
        %2512 = vrot.lane.b32.xlu0 %v2501, 127
        %v2513 = vpop.permute.xlu0 %2512
        %vm2514 = vcmask 1039360
        %v2515 = vsel %vm2514, %v2507, %v2509
        %v2516 = vsel %vm2514, %v2511, %v2513
        %v2519 = vmax.f32 %v2498, %v2515
        %v2520 = vmax.f32 %v2500, %v2516
        %v2523 = vmax.f32 %v2499, %v2509
        %v2524 = vmax.f32 %v2501, %v2513
        %2529 = vrot.lane.b32.xlu0 %v2519, 114
        %v2530 = vpop.permute.xlu0 %2529
        %2531 = vrot.lane.b32.xlu0 %v2523, 114
        %v2532 = vpop.permute.xlu0 %2531
        %2533 = vrot.lane.b32.xlu0 %v2520, 114
        %v2534 = vpop.permute.xlu0 %2533
        %2535 = vrot.lane.b32.xlu0 %v2524, 114
        %v2536 = vpop.permute.xlu0 %2535
        %vm2537 = vcmask 932864
        %v2538 = vsel %vm2537, %v2530, %v2532
        %v2539 = vsel %vm2537, %v2534, %v2536
        %v2542 = vmax.f32 %v2519, %v2538
        %v2543 = vmax.f32 %v2520, %v2539
        %v2544 = vld [vmem:[%s6] sm:$0x3]
        %v2546 = vlaneseq
        %v2547 = vshrl.u32 %v2546, 7
        %v2548 = vsub.s32 0, %v2547
        %v2549 = vrot.slane %v2544, %v2548
        %v2550 = vlaneseq
        %v2551 = vshrl.u32 %v2550, 7
        %v2552 = vsub.s32 1, %v2551
        %v2553 = vrot.slane %v2544, %v2552
        %v2556 = vmul.f32 %v2498, %v2549
        %v2557 = vmul.f32 %v2499, %v2553
        %v2558 = vmul.f32 %v2500, %v2549
        %v2559 = vmul.f32 %v2501, %v2553
        %vm2560 = vcmask 556032
        %v2561 = vsel %vm2560, %v2557, 0.0
        %v2562 = vadd.f32 %v2556, %v2561
        %v2563 = vadd.f32 %v2562, %v2558
        %v2564 = vsel %vm2560, %v2559, 0.0
        %v2565 = vadd.f32 %v2563, %v2564
        %2566 = vadd.xlane.f32.xlu0 %v2565
        %v2567 = vpop.xlane.xlu0 %2566
        %v2568 = vrot.slane %v2567, 4
        %v2569 = vadd.f32 %v2567, %v2568
        %v2570 = vrot.slane %v2569, 2
        %v2571 = vadd.f32 %v2569, %v2570
        %v2572 = vrot.slane %v2571, 1
        %v2573 = vadd.f32 %v2571, %v2572
        %s2574 = vtos %v2573
        %v2575 = vstv %s2574
        %v2576 = vrcp.pop 1600.0
        %v2577 = vmul.f32 %v2575, %v2576
        %v2578 = vsub.f32 %v2498, %v2577
        %v2579 = vsub.f32 %v2499, %v2577
        %v2580 = vsub.f32 %v2500, %v2577
        %v2581 = vsub.f32 %v2501, %v2577
        %v2582 = vmul.f32 %v2578, %v2549
        %v2583 = vmul.f32 %v2579, %v2553
        %v2584 = vmul.f32 %v2580, %v2549
        %v2585 = vmul.f32 %v2581, %v2553
        %v2586 = vmul.f32 %v2582, %v2582
        %v2587 = vmul.f32 %v2583, %v2583
        %v2588 = vmul.f32 %v2584, %v2584
        %v2589 = vmul.f32 %v2585, %v2585
        %v2590 = vsel %vm2560, %v2587, 0.0
        %v2591 = vadd.f32 %v2586, %v2590
        %v2592 = vadd.f32 %v2591, %v2588
        %v2593 = vsel %vm2560, %v2589, 0.0
        %v2594 = vadd.f32 %v2592, %v2593
        %2595 = vadd.xlane.f32.xlu0 %v2594
        %v2596 = vpop.xlane.xlu0 %2595
        %v2597 = vrot.slane %v2596, 4
        %v2598 = vadd.f32 %v2596, %v2597
        %v2599 = vrot.slane %v2598, 2
        %v2600 = vadd.f32 %v2598, %v2599
        %v2601 = vrot.slane %v2600, 1
        %v2602 = vadd.f32 %v2600, %v2601
        %s2603 = vtos %v2602
        %v2604 = vstv %s2603
        %v2605 = vmul.f32 %v2604, %v2576
        %v2606 = vsub.f32 %v2542, %v2577
        %v2607 = vsub.f32 %v2543, %v2577
        %v2608 = vadd.f32 %v2605, 1e-05
        %v2609 = vrsqrt.pop %v2608
        %v2610 = vmul.f32 %v2606, %v2609
        %v2611 = vmul.f32 %v2607, %v2609
        %v2612 = vpack.c.bf16 %v2611, %v2610
        %v2613 = vld [vmem:[%s7] sm:$0xf]
        %v2614 = vld [vmem:[%s7 + $0x4] sm:$0xf]
        %v2615 = vld [vmem:[%s7 + $0x8] sm:$0xf]
        %v2616 = vld [vmem:[%s7 + $0xc] sm:$0xf]
        %v2617 = vld [vmem:[%s7 + $0x10] sm:$0xf]
        %v2618 = vld [vmem:[%s7 + $0x14] sm:$0xf]
        %v2619 = vld [vmem:[%s7 + $0x18] sm:$0xf]
        %v2620 = vld [vmem:[%s7 + $0x1c] sm:$0xf]
        %v2621 = vld [vmem:[%s7 + $0x20] sm:$0xf]
        %v2622 = vld [vmem:[%s7 + $0x24] sm:$0xf]
        %v2623 = vld [vmem:[%s7 + $0x28] sm:$0xf]
        %v2624 = vld [vmem:[%s7 + $0x2c] sm:$0xf]
        %v2625 = vld [vmem:[%s7 + $0x30] sm:$0xf]
        %v2626 = vld [vmem:[%s7 + $0x34] sm:$0xf]
        %v2627 = vld [vmem:[%s7 + $0x38] sm:$0xf]
        %v2628 = vld [vmem:[%s7 + $0x3c] sm:$0xf]
        %s2629 = scalar_lea.vmem %s7, 64
        %v2630 = vld [vmem:[%s2629] sm:$0xf]
        %v2631 = vld [vmem:[%s2629 + $0x4] sm:$0xf]
        %v2632 = vld [vmem:[%s2629 + $0x8] sm:$0xf]
        %v2633 = vld [vmem:[%s2629 + $0xc] sm:$0xf]
        %v2634 = vld [vmem:[%s2629 + $0x10] sm:$0xf]
        %v2635 = vld [vmem:[%s2629 + $0x14] sm:$0xf]
        %v2636 = vld [vmem:[%s2629 + $0x18] sm:$0xf]
        %v2637 = vld [vmem:[%s2629 + $0x1c] sm:$0xf]
        %v2638 = vld [vmem:[%s2629 + $0x20] sm:$0xf]
        %v2639 = vld [vmem:[%s2629 + $0x24] sm:$0xf]
        %v2640 = vld [vmem:[%s2629 + $0x28] sm:$0xf]
        %v2641 = vld [vmem:[%s2629 + $0x2c] sm:$0xf]
        %v2642 = vld [vmem:[%s2629 + $0x30] sm:$0xf]
        %v2643 = vld [vmem:[%s2629 + $0x34] sm:$0xf]
        %v2644 = vld [vmem:[%s2629 + $0x38] sm:$0xf]
        %v2645 = vld [vmem:[%s2629 + $0x3c] sm:$0xf]
        %v2647 = vshrl.u32 %v2612, 16
        %v2666 = vunpack.c.l.b16 %v2630
        %v2667 = vunpack.c.l.b16 %v2631
        %v2668 = vunpack.c.l.b16 %v2632
        %v2669 = vunpack.c.l.b16 %v2633
        %v2670 = vunpack.c.l.b16 %v2634
        %v2671 = vunpack.c.l.b16 %v2635
        %v2672 = vunpack.c.l.b16 %v2636
        %v2673 = vunpack.c.l.b16 %v2637
        %v2674 = vunpack.c.l.b16 %v2638
        %v2675 = vunpack.c.l.b16 %v2639
        %v2676 = vunpack.c.l.b16 %v2640
        %v2677 = vunpack.c.l.b16 %v2641
        %v2678 = vunpack.c.l.b16 %v2642
        %v2679 = vunpack.c.l.b16 %v2643
        %v2680 = vunpack.c.l.b16 %v2644
        %v2681 = vunpack.c.l.b16 %v2645
        %v2682 = vpack.c.b16 %v2667, %v2666
        %v2683 = vpack.c.b16 %v2669, %v2668
        %v2684 = vpack.c.b16 %v2671, %v2670
        %v2685 = vpack.c.b16 %v2673, %v2672
        %v2686 = vpack.c.b16 %v2675, %v2674
        %v2687 = vpack.c.b16 %v2677, %v2676
        %v2688 = vpack.c.b16 %v2679, %v2678
        %v2689 = vpack.c.b16 %v2681, %v2680
        %2698 = vmatprep.subr.bf16.mxu0 0
        %2699 = vmatpush1.bf16.msra.mxu0 %v2682
        %2700 = vmatprep.subr.bf16.mxu0 0
        %2701 = vmatpush1.bf16.msra.mxu0 %v2683
        %2702 = vmatprep.subr.bf16.mxu0 0
        %2703 = vmatpush1.bf16.msra.mxu0 %v2684
        %2704 = vmatprep.subr.bf16.mxu0 0
        %2705 = vmatpush1.bf16.msra.mxu0 %v2685
        %2706 = vmatprep.subr.bf16.mxu0 0
        %2707 = vmatpush1.bf16.msra.mxu0 %v2686
        %2708 = vmatprep.subr.bf16.mxu0 0
        %2709 = vmatpush1.bf16.msra.mxu0 %v2687
        %2710 = vmatprep.subr.bf16.mxu0 0
        %2711 = vmatpush1.bf16.msra.mxu0 %v2688
        %2712 = vmatprep.subr.bf16.mxu0 0
        %2713 = vmatpush1.bf16.msra.mxu0 %v2689
        %2714 = vmatprep.subr.bf16.mxu0 0
        %2715 = vmatpush1.bf16.msra.mxu0 0
        %2716 = vmatprep.subr.bf16.mxu0 0
        %2717 = vmatpush1.bf16.msra.mxu0 0
        %2718 = vmatprep.subr.bf16.mxu0 0
        %2719 = vmatpush1.bf16.msra.mxu0 0
        %2720 = vmatprep.subr.bf16.mxu0 0
        %2721 = vmatpush1.bf16.msra.mxu0 0
        %2722 = vmatprep.subr.bf16.mxu0 0
        %2723 = vmatpush1.bf16.msra.mxu0 0
        %2724 = vmatprep.subr.bf16.mxu0 0
        %2725 = vmatpush1.bf16.msra.mxu0 0
        %2726 = vmatprep.subr.bf16.mxu0 0
        %2727 = vmatpush1.bf16.msra.mxu0 0
        %2728 = vmatprep.subr.bf16.mxu0 0
        %2729 = vmatpush1.bf16.msra.mxu0 0
        %2730 = vmatprep.mubr.bf16.mxu0 0
        %2731 = vmatmul.mubr.bf16.gmra.mrb[0].mxu0 %v2647
        %v2732 = vpop.f32.mrb[0].mxu0
        %v2733 = vadd.f32 0.0, %v2732
        %v2734 = vpop.f32.mrb[0].mxu0
        %v2735 = vpop.f32.mrb[0].mxu0
        %v2736 = vpop.f32.mrb[0].mxu0
        %2737 = vdwg.mxu0
        %v2754 = vunpack.c.l.b16 %v2613
        %v2755 = vunpack.c.l.b16 %v2614
        %v2756 = vunpack.c.l.b16 %v2615
        %v2757 = vunpack.c.l.b16 %v2616
        %v2758 = vunpack.c.l.b16 %v2617
        %v2759 = vunpack.c.l.b16 %v2618
        %v2760 = vunpack.c.l.b16 %v2619
        %v2761 = vunpack.c.l.b16 %v2620
        %v2762 = vunpack.c.l.b16 %v2621
        %v2763 = vunpack.c.l.b16 %v2622
        %v2764 = vunpack.c.l.b16 %v2623
        %v2765 = vunpack.c.l.b16 %v2624
        %v2766 = vunpack.c.l.b16 %v2625
        %v2767 = vunpack.c.l.b16 %v2626
        %v2768 = vunpack.c.l.b16 %v2627
        %v2769 = vunpack.c.l.b16 %v2628
        %v2770 = vpack.c.b16 %v2755, %v2754
        %v2771 = vpack.c.b16 %v2757, %v2756
        %v2772 = vpack.c.b16 %v2759, %v2758
        %v2773 = vpack.c.b16 %v2761, %v2760
        %v2774 = vpack.c.b16 %v2763, %v2762
        %v2775 = vpack.c.b16 %v2765, %v2764
        %v2776 = vpack.c.b16 %v2767, %v2766
        %v2777 = vpack.c.b16 %v2769, %v2768
        %2786 = vmatprep.subr.bf16.mxu0 0
        %2787 = vmatpush1.bf16.msra.mxu0 %v2770
        %2788 = vmatprep.subr.bf16.mxu0 0
        %2789 = vmatpush1.bf16.msra.mxu0 %v2771
        %2790 = vmatprep.subr.bf16.mxu0 0
        %2791 = vmatpush1.bf16.msra.mxu0 %v2772
        %2792 = vmatprep.subr.bf16.mxu0 0
        %2793 = vmatpush1.bf16.msra.mxu0 %v2773
        %2794 = vmatprep.subr.bf16.mxu0 0
        %2795 = vmatpush1.bf16.msra.mxu0 %v2774
        %2796 = vmatprep.subr.bf16.mxu0 0
        %2797 = vmatpush1.bf16.msra.mxu0 %v2775
        %2798 = vmatprep.subr.bf16.mxu0 0
        %2799 = vmatpush1.bf16.msra.mxu0 %v2776
        %2800 = vmatprep.subr.bf16.mxu0 0
        %2801 = vmatpush1.bf16.msra.mxu0 %v2777
        %2802 = vmatprep.subr.bf16.mxu0 0
        %2803 = vmatpush1.bf16.msra.mxu0 0
        %2804 = vmatprep.subr.bf16.mxu0 0
        %2805 = vmatpush1.bf16.msra.mxu0 0
        %2806 = vmatprep.subr.bf16.mxu0 0
        %2807 = vmatpush1.bf16.msra.mxu0 0
        %2808 = vmatprep.subr.bf16.mxu0 0
        %2809 = vmatpush1.bf16.msra.mxu0 0
        %2810 = vmatprep.subr.bf16.mxu0 0
        %2811 = vmatpush1.bf16.msra.mxu0 0
        %2812 = vmatprep.subr.bf16.mxu0 0
        %2813 = vmatpush1.bf16.msra.mxu0 0
        %2814 = vmatprep.subr.bf16.mxu0 0
        %2815 = vmatpush1.bf16.msra.mxu0 0
        %2816 = vmatprep.subr.bf16.mxu0 0
        %2817 = vmatpush1.bf16.msra.mxu0 0
        %2818 = vmatprep.mubr.bf16.mxu0 0
        %2819 = vmatmul.mubr.bf16.gmra.mrb[0].mxu0 %v2612
        %v2820 = vpop.f32.mrb[0].mxu0
        %v2821 = vadd.f32 %v2733, %v2820
        %v2822 = vpop.f32.mrb[0].mxu0
        %v2823 = vpop.f32.mrb[0].mxu0
        %v2824 = vpop.f32.mrb[0].mxu0
        %2825 = vdwg.mxu0
        %s2826 = scalar_lea.vmem %s7, 128
        %v2827 = vld [vmem:[%s2826] sm:$0xf]
        %v2828 = vld [vmem:[%s2826 + $0x4] sm:$0xf]
        %v2829 = vld [vmem:[%s2826 + $0x8] sm:$0xf]
        %v2830 = vld [vmem:[%s2826 + $0xc] sm:$0xf]
        %v2831 = vld [vmem:[%s2826 + $0x10] sm:$0xf]
        %v2832 = vld [vmem:[%s2826 + $0x14] sm:$0xf]
        %v2833 = vld [vmem:[%s2826 + $0x18] sm:$0xf]
        %v2834 = vld [vmem:[%s2826 + $0x1c] sm:$0xf]
        %v2835 = vld [vmem:[%s2826 + $0x20] sm:$0xf]
        %v2836 = vld [vmem:[%s2826 + $0x24] sm:$0xf]
        %v2837 = vld [vmem:[%s2826 + $0x28] sm:$0xf]
        %v2838 = vld [vmem:[%s2826 + $0x2c] sm:$0xf]
        %v2839 = vld [vmem:[%s2826 + $0x30] sm:$0xf]
        %v2840 = vld [vmem:[%s2826 + $0x34] sm:$0xf]
        %v2841 = vld [vmem:[%s2826 + $0x38] sm:$0xf]
        %v2842 = vld [vmem:[%s2826 + $0x3c] sm:$0xf]
        %v2844 = vrot.slane %v2612, 1
        %v2862 = vunpack.c.l.b16 %v2827
        %v2863 = vunpack.c.l.b16 %v2828
        %v2864 = vunpack.c.l.b16 %v2829
        %v2865 = vunpack.c.l.b16 %v2830
        %v2866 = vunpack.c.l.b16 %v2831
        %v2867 = vunpack.c.l.b16 %v2832
        %v2868 = vunpack.c.l.b16 %v2833
        %v2869 = vunpack.c.l.b16 %v2834
        %v2870 = vunpack.c.l.b16 %v2835
        %v2871 = vunpack.c.l.b16 %v2836
        %v2872 = vunpack.c.l.b16 %v2837
        %v2873 = vunpack.c.l.b16 %v2838
        %v2874 = vunpack.c.l.b16 %v2839
        %v2875 = vunpack.c.l.b16 %v2840
        %v2876 = vunpack.c.l.b16 %v2841
        %v2877 = vunpack.c.l.b16 %v2842
        %v2878 = vpack.c.b16 %v2863, %v2862
        %v2879 = vpack.c.b16 %v2865, %v2864
        %v2880 = vpack.c.b16 %v2867, %v2866
        %v2881 = vpack.c.b16 %v2869, %v2868
        %v2882 = vpack.c.b16 %v2871, %v2870
        %v2883 = vpack.c.b16 %v2873, %v2872
        %v2884 = vpack.c.b16 %v2875, %v2874
        %v2885 = vpack.c.b16 %v2877, %v2876
        %2894 = vmatprep.subr.bf16.mxu0 0
        %2895 = vmatpush1.bf16.msra.mxu0 %v2878
        %2896 = vmatprep.subr.bf16.mxu0 0
        %2897 = vmatpush1.bf16.msra.mxu0 %v2879
        %2898 = vmatprep.subr.bf16.mxu0 0
        %2899 = vmatpush1.bf16.msra.mxu0 %v2880
        %2900 = vmatprep.subr.bf16.mxu0 0
        %2901 = vmatpush1.bf16.msra.mxu0 %v2881
        %2902 = vmatprep.subr.bf16.mxu0 0
        %2903 = vmatpush1.bf16.msra.mxu0 %v2882
        %2904 = vmatprep.subr.bf16.mxu0 0
        %2905 = vmatpush1.bf16.msra.mxu0 %v2883
        %2906 = vmatprep.subr.bf16.mxu0 0
        %2907 = vmatpush1.bf16.msra.mxu0 %v2884
        %2908 = vmatprep.subr.bf16.mxu0 0
        %2909 = vmatpush1.bf16.msra.mxu0 %v2885
        %2910 = vmatprep.subr.bf16.mxu0 0
        %2911 = vmatpush1.bf16.msra.mxu0 0
        %2912 = vmatprep.subr.bf16.mxu0 0
        %2913 = vmatpush1.bf16.msra.mxu0 0
        %2914 = vmatprep.subr.bf16.mxu0 0
        %2915 = vmatpush1.bf16.msra.mxu0 0
        %2916 = vmatprep.subr.bf16.mxu0 0
        %2917 = vmatpush1.bf16.msra.mxu0 0
        %2918 = vmatprep.subr.bf16.mxu0 0
        %2919 = vmatpush1.bf16.msra.mxu0 0
        %2920 = vmatprep.subr.bf16.mxu0 0
        %2921 = vmatpush1.bf16.msra.mxu0 0
        %2922 = vmatprep.subr.bf16.mxu0 0
        %2923 = vmatpush1.bf16.msra.mxu0 0
        %2924 = vmatprep.subr.bf16.mxu0 0
        %2925 = vmatpush1.bf16.msra.mxu0 0
        %2926 = vmatprep.mubr.bf16.mxu0 0
        %2927 = vmatmul.mubr.bf16.gmra.mrb[0].mxu0 %v2844
        %v2928 = vpop.f32.mrb[0].mxu0
        %v2929 = vadd.f32 0.0, %v2928
        %v2930 = vpop.f32.mrb[0].mxu0
        %v2931 = vpop.f32.mrb[0].mxu0
        %v2932 = vpop.f32.mrb[0].mxu0
        %2933 = vdwg.mxu0
        %v2934 = vadd.f32 %v2821, %v2929
        %s2935 = scalar_lea.vmem %s7, 192
        %v2936 = vld [vmem:[%s2935] sm:$0xf]
        %v2937 = vld [vmem:[%s2935 + $0x4] sm:$0xf]
        %v2938 = vld [vmem:[%s2935 + $0x8] sm:$0xf]
        %v2939 = vld [vmem:[%s2935 + $0xc] sm:$0xf]
        %v2940 = vld [vmem:[%s2935 + $0x10] sm:$0xf]
        %v2941 = vld [vmem:[%s2935 + $0x14] sm:$0xf]
        %v2942 = vld [vmem:[%s2935 + $0x18] sm:$0xf]
        %v2943 = vld [vmem:[%s2935 + $0x1c] sm:$0xf]
        %v2944 = vld [vmem:[%s2935 + $0x20] sm:$0xf]
        %v2945 = vld [vmem:[%s2935 + $0x24] sm:$0xf]
        %v2946 = vld [vmem:[%s2935 + $0x28] sm:$0xf]
        %v2947 = vld [vmem:[%s2935 + $0x2c] sm:$0xf]
        %v2948 = vld [vmem:[%s2935 + $0x30] sm:$0xf]
        %v2949 = vld [vmem:[%s2935 + $0x34] sm:$0xf]
        %v2950 = vld [vmem:[%s2935 + $0x38] sm:$0xf]
        %v2951 = vld [vmem:[%s2935 + $0x3c] sm:$0xf]
        %v2952 = vrot.slane %v2647, 1
        %v2970 = vunpack.c.l.b16 %v2936
        %v2971 = vunpack.c.l.b16 %v2937
        %v2972 = vunpack.c.l.b16 %v2938
        %v2973 = vunpack.c.l.b16 %v2939
        %v2974 = vunpack.c.l.b16 %v2940
        %v2975 = vunpack.c.l.b16 %v2941
        %v2976 = vunpack.c.l.b16 %v2942
        %v2977 = vunpack.c.l.b16 %v2943
        %v2978 = vunpack.c.l.b16 %v2944
        %v2979 = vunpack.c.l.b16 %v2945
        %v2980 = vunpack.c.l.b16 %v2946
        %v2981 = vunpack.c.l.b16 %v2947
        %v2982 = vunpack.c.l.b16 %v2948
        %v2983 = vunpack.c.l.b16 %v2949
        %v2984 = vunpack.c.l.b16 %v2950
        %v2985 = vunpack.c.l.b16 %v2951
        %v2986 = vpack.c.b16 %v2971, %v2970
        %v2987 = vpack.c.b16 %v2973, %v2972
        %v2988 = vpack.c.b16 %v2975, %v2974
        %v2989 = vpack.c.b16 %v2977, %v2976
        %v2990 = vpack.c.b16 %v2979, %v2978
        %v2991 = vpack.c.b16 %v2981, %v2980
        %v2992 = vpack.c.b16 %v2983, %v2982
        %v2993 = vpack.c.b16 %v2985, %v2984
        %3002 = vmatprep.subr.bf16.mxu0 0
        %3003 = vmatpush1.bf16.msra.mxu0 %v2986
        %3004 = vmatprep.subr.bf16.mxu0 0
        %3005 = vmatpush1.bf16.msra.mxu0 %v2987
        %3006 = vmatprep.subr.bf16.mxu0 0
        %3007 = vmatpush1.bf16.msra.mxu0 %v2988
        %3008 = vmatprep.subr.bf16.mxu0 0
        %3009 = vmatpush1.bf16.msra.mxu0 %v2989
        %3010 = vmatprep.subr.bf16.mxu0 0
        %3011 = vmatpush1.bf16.msra.mxu0 %v2990
        %3012 = vmatprep.subr.bf16.mxu0 0
        %3013 = vmatpush1.bf16.msra.mxu0 %v2991
        %3014 = vmatprep.subr.bf16.mxu0 0
        %3015 = vmatpush1.bf16.msra.mxu0 %v2992
        %3016 = vmatprep.subr.bf16.mxu0 0
        %3017 = vmatpush1.bf16.msra.mxu0 %v2993
        %3018 = vmatprep.subr.bf16.mxu0 0
        %3019 = vmatpush1.bf16.msra.mxu0 0
        %3020 = vmatprep.subr.bf16.mxu0 0
        %3021 = vmatpush1.bf16.msra.mxu0 0
        %3022 = vmatprep.subr.bf16.mxu0 0
        %3023 = vmatpush1.bf16.msra.mxu0 0
        %3024 = vmatprep.subr.bf16.mxu0 0
        %3025 = vmatpush1.bf16.msra.mxu0 0
        %3026 = vmatprep.subr.bf16.mxu0 0
        %3027 = vmatpush1.bf16.msra.mxu0 0
        %3028 = vmatprep.subr.bf16.mxu0 0
        %3029 = vmatpush1.bf16.msra.mxu0 0
        %3030 = vmatprep.subr.bf16.mxu0 0
        %3031 = vmatpush1.bf16.msra.mxu0 0
        %3032 = vmatprep.subr.bf16.mxu0 0
        %3033 = vmatpush1.bf16.msra.mxu0 0
        %3034 = vmatprep.mubr.bf16.mxu0 0
        %3035 = vmatmul.mubr.bf16.gmra.mrb[0].mxu0 %v2952
        %v3036 = vpop.f32.mrb[0].mxu0
        %v3037 = vadd.f32 0.0, %v3036
        %v3038 = vpop.f32.mrb[0].mxu0
        %v3039 = vpop.f32.mrb[0].mxu0
        %v3040 = vpop.f32.mrb[0].mxu0
        %3041 = vdwg.mxu0
        %v3042 = vadd.f32 %v2934, %v3037
        %s3043 = scalar_lea.vmem %s7, 256
        %v3044 = vld [vmem:[%s3043] sm:$0xf]
        %v3045 = vld [vmem:[%s3043 + $0x4] sm:$0xf]
        %v3046 = vld [vmem:[%s3043 + $0x8] sm:$0xf]
        %v3047 = vld [vmem:[%s3043 + $0xc] sm:$0xf]
        %v3048 = vld [vmem:[%s3043 + $0x10] sm:$0xf]
        %v3049 = vld [vmem:[%s3043 + $0x14] sm:$0xf]
        %v3050 = vld [vmem:[%s3043 + $0x18] sm:$0xf]
        %v3051 = vld [vmem:[%s3043 + $0x1c] sm:$0xf]
        %v3052 = vld [vmem:[%s3043 + $0x20] sm:$0xf]
        %v3053 = vld [vmem:[%s3043 + $0x24] sm:$0xf]
        %v3054 = vld [vmem:[%s3043 + $0x28] sm:$0xf]
        %v3055 = vld [vmem:[%s3043 + $0x2c] sm:$0xf]
        %v3056 = vld [vmem:[%s3043 + $0x30] sm:$0xf]
        %v3057 = vld [vmem:[%s3043 + $0x34] sm:$0xf]
        %v3058 = vld [vmem:[%s3043 + $0x38] sm:$0xf]
        %v3059 = vld [vmem:[%s3043 + $0x3c] sm:$0xf]
        %v3060 = vrot.slane %v2612, 2
        %v3078 = vunpack.c.l.b16 %v3044
        %v3079 = vunpack.c.l.b16 %v3045
        %v3080 = vunpack.c.l.b16 %v3046
        %v3081 = vunpack.c.l.b16 %v3047
        %v3082 = vunpack.c.l.b16 %v3048
        %v3083 = vunpack.c.l.b16 %v3049
        %v3084 = vunpack.c.l.b16 %v3050
        %v3085 = vunpack.c.l.b16 %v3051
        %v3086 = vunpack.c.l.b16 %v3052
        %v3087 = vunpack.c.l.b16 %v3053
        %v3088 = vunpack.c.l.b16 %v3054
        %v3089 = vunpack.c.l.b16 %v3055
        %v3090 = vunpack.c.l.b16 %v3056
        %v3091 = vunpack.c.l.b16 %v3057
        %v3092 = vunpack.c.l.b16 %v3058
        %v3093 = vunpack.c.l.b16 %v3059
        %v3094 = vpack.c.b16 %v3079, %v3078
        %v3095 = vpack.c.b16 %v3081, %v3080
        %v3096 = vpack.c.b16 %v3083, %v3082
        %v3097 = vpack.c.b16 %v3085, %v3084
        %v3098 = vpack.c.b16 %v3087, %v3086
        %v3099 = vpack.c.b16 %v3089, %v3088
        %v3100 = vpack.c.b16 %v3091, %v3090
        %v3101 = vpack.c.b16 %v3093, %v3092
        %3110 = vmatprep.subr.bf16.mxu0 0
        %3111 = vmatpush1.bf16.msra.mxu0 %v3094
        %3112 = vmatprep.subr.bf16.mxu0 0
        %3113 = vmatpush1.bf16.msra.mxu0 %v3095
        %3114 = vmatprep.subr.bf16.mxu0 0
        %3115 = vmatpush1.bf16.msra.mxu0 %v3096
        %3116 = vmatprep.subr.bf16.mxu0 0
        %3117 = vmatpush1.bf16.msra.mxu0 %v3097
        %3118 = vmatprep.subr.bf16.mxu0 0
        %3119 = vmatpush1.bf16.msra.mxu0 %v3098
        %3120 = vmatprep.subr.bf16.mxu0 0
        %3121 = vmatpush1.bf16.msra.mxu0 %v3099
        %3122 = vmatprep.subr.bf16.mxu0 0
        %3123 = vmatpush1.bf16.msra.mxu0 %v3100
        %3124 = vmatprep.subr.bf16.mxu0 0
        %3125 = vmatpush1.bf16.msra.mxu0 %v3101
        %3126 = vmatprep.subr.bf16.mxu0 0
        %3127 = vmatpush1.bf16.msra.mxu0 0
        %3128 = vmatprep.subr.bf16.mxu0 0
        %3129 = vmatpush1.bf16.msra.mxu0 0
        %3130 = vmatprep.subr.bf16.mxu0 0
        %3131 = vmatpush1.bf16.msra.mxu0 0
        %3132 = vmatprep.subr.bf16.mxu0 0
        %3133 = vmatpush1.bf16.msra.mxu0 0
        %3134 = vmatprep.subr.bf16.mxu0 0
        %3135 = vmatpush1.bf16.msra.mxu0 0
        %3136 = vmatprep.subr.bf16.mxu0 0
        %3137 = vmatpush1.bf16.msra.mxu0 0
        %3138 = vmatprep.subr.bf16.mxu0 0
        %3139 = vmatpush1.bf16.msra.mxu0 0
        %3140 = vmatprep.subr.bf16.mxu0 0
        %3141 = vmatpush1.bf16.msra.mxu0 0
        %3142 = vmatprep.mubr.bf16.mxu0 0
        %3143 = vmatmul.mubr.bf16.gmra.mrb[0].mxu0 %v3060
        %v3144 = vpop.f32.mrb[0].mxu0
        %v3145 = vadd.f32 0.0, %v3144
        %v3146 = vpop.f32.mrb[0].mxu0
        %v3147 = vpop.f32.mrb[0].mxu0
        %v3148 = vpop.f32.mrb[0].mxu0
        %3149 = vdwg.mxu0
        %v3150 = vadd.f32 %v3042, %v3145
        %s3151 = scalar_lea.vmem %s7, 320
        %v3152 = vld [vmem:[%s3151] sm:$0xf]
        %v3153 = vld [vmem:[%s3151 + $0x4] sm:$0xf]
        %v3154 = vld [vmem:[%s3151 + $0x8] sm:$0xf]
        %v3155 = vld [vmem:[%s3151 + $0xc] sm:$0xf]
        %v3156 = vld [vmem:[%s3151 + $0x10] sm:$0xf]
        %v3157 = vld [vmem:[%s3151 + $0x14] sm:$0xf]
        %v3158 = vld [vmem:[%s3151 + $0x18] sm:$0xf]
        %v3159 = vld [vmem:[%s3151 + $0x1c] sm:$0xf]
        %v3160 = vld [vmem:[%s3151 + $0x20] sm:$0xf]
        %v3161 = vld [vmem:[%s3151 + $0x24] sm:$0xf]
        %v3162 = vld [vmem:[%s3151 + $0x28] sm:$0xf]
        %v3163 = vld [vmem:[%s3151 + $0x2c] sm:$0xf]
        %v3164 = vld [vmem:[%s3151 + $0x30] sm:$0xf]
        %v3165 = vld [vmem:[%s3151 + $0x34] sm:$0xf]
        %v3166 = vld [vmem:[%s3151 + $0x38] sm:$0xf]
        %v3167 = vld [vmem:[%s3151 + $0x3c] sm:$0xf]
        %v3168 = vrot.slane %v2647, 2
        %v3186 = vunpack.c.l.b16 %v3152
        %v3187 = vunpack.c.l.b16 %v3153
        %v3188 = vunpack.c.l.b16 %v3154
        %v3189 = vunpack.c.l.b16 %v3155
        %v3190 = vunpack.c.l.b16 %v3156
        %v3191 = vunpack.c.l.b16 %v3157
        %v3192 = vunpack.c.l.b16 %v3158
        %v3193 = vunpack.c.l.b16 %v3159
        %v3194 = vunpack.c.l.b16 %v3160
        %v3195 = vunpack.c.l.b16 %v3161
        %v3196 = vunpack.c.l.b16 %v3162
        %v3197 = vunpack.c.l.b16 %v3163
        %v3198 = vunpack.c.l.b16 %v3164
        %v3199 = vunpack.c.l.b16 %v3165
        %v3200 = vunpack.c.l.b16 %v3166
        %v3201 = vunpack.c.l.b16 %v3167
        %v3202 = vpack.c.b16 %v3187, %v3186
        %v3203 = vpack.c.b16 %v3189, %v3188
        %v3204 = vpack.c.b16 %v3191, %v3190
        %v3205 = vpack.c.b16 %v3193, %v3192
        %v3206 = vpack.c.b16 %v3195, %v3194
        %v3207 = vpack.c.b16 %v3197, %v3196
        %v3208 = vpack.c.b16 %v3199, %v3198
        %v3209 = vpack.c.b16 %v3201, %v3200
        %3218 = vmatprep.subr.bf16.mxu0 0
        %3219 = vmatpush1.bf16.msra.mxu0 %v3202
        %3220 = vmatprep.subr.bf16.mxu0 0
        %3221 = vmatpush1.bf16.msra.mxu0 %v3203
        %3222 = vmatprep.subr.bf16.mxu0 0
        %3223 = vmatpush1.bf16.msra.mxu0 %v3204
        %3224 = vmatprep.subr.bf16.mxu0 0
        %3225 = vmatpush1.bf16.msra.mxu0 %v3205
        %3226 = vmatprep.subr.bf16.mxu0 0
        %3227 = vmatpush1.bf16.msra.mxu0 %v3206
        %3228 = vmatprep.subr.bf16.mxu0 0
        %3229 = vmatpush1.bf16.msra.mxu0 %v3207
        %3230 = vmatprep.subr.bf16.mxu0 0
        %3231 = vmatpush1.bf16.msra.mxu0 %v3208
        %3232 = vmatprep.subr.bf16.mxu0 0
        %3233 = vmatpush1.bf16.msra.mxu0 %v3209
        %3234 = vmatprep.subr.bf16.mxu0 0
        %3235 = vmatpush1.bf16.msra.mxu0 0
        %3236 = vmatprep.subr.bf16.mxu0 0
        %3237 = vmatpush1.bf16.msra.mxu0 0
        %3238 = vmatprep.subr.bf16.mxu0 0
        %3239 = vmatpush1.bf16.msra.mxu0 0
        %3240 = vmatprep.subr.bf16.mxu0 0
        %3241 = vmatpush1.bf16.msra.mxu0 0
        %3242 = vmatprep.subr.bf16.mxu0 0
        %3243 = vmatpush1.bf16.msra.mxu0 0
        %3244 = vmatprep.subr.bf16.mxu0 0
        %3245 = vmatpush1.bf16.msra.mxu0 0
        %3246 = vmatprep.subr.bf16.mxu0 0
        %3247 = vmatpush1.bf16.msra.mxu0 0
        %3248 = vmatprep.subr.bf16.mxu0 0
        %3249 = vmatpush1.bf16.msra.mxu0 0
        %3250 = vmatprep.mubr.bf16.mxu0 0
        %3251 = vmatmul.mubr.bf16.gmra.mrb[0].mxu0 %v3168
        %v3252 = vpop.f32.mrb[0].mxu0
        %v3253 = vadd.f32 0.0, %v3252
        %v3254 = vpop.f32.mrb[0].mxu0
        %v3255 = vpop.f32.mrb[0].mxu0
        %v3256 = vpop.f32.mrb[0].mxu0
        %3257 = vdwg.mxu0
        %v3258 = vadd.f32 %v3150, %v3253
        %s3259 = scalar_lea.vmem %s7, 384
        %v3260 = vld [vmem:[%s3259] sm:$0xf]
        %v3261 = vld [vmem:[%s3259 + $0x4] sm:$0xf]
        %v3262 = vld [vmem:[%s3259 + $0x8] sm:$0xf]
        %v3263 = vld [vmem:[%s3259 + $0xc] sm:$0xf]
        %v3264 = vld [vmem:[%s3259 + $0x10] sm:$0xf]
        %v3265 = vld [vmem:[%s3259 + $0x14] sm:$0xf]
        %v3266 = vld [vmem:[%s3259 + $0x18] sm:$0xf]
        %v3267 = vld [vmem:[%s3259 + $0x1c] sm:$0xf]
        %v3268 = vld [vmem:[%s3259 + $0x20] sm:$0xf]
        %v3269 = vld [vmem:[%s3259 + $0x24] sm:$0xf]
        %v3270 = vld [vmem:[%s3259 + $0x28] sm:$0xf]
        %v3271 = vld [vmem:[%s3259 + $0x2c] sm:$0xf]
        %v3272 = vld [vmem:[%s3259 + $0x30] sm:$0xf]
        %v3273 = vld [vmem:[%s3259 + $0x34] sm:$0xf]
        %v3274 = vld [vmem:[%s3259 + $0x38] sm:$0xf]
        %v3275 = vld [vmem:[%s3259 + $0x3c] sm:$0xf]
        %v3276 = vrot.slane %v2612, 3
        %v3294 = vunpack.c.l.b16 %v3260
        %v3295 = vunpack.c.l.b16 %v3261
        %v3296 = vunpack.c.l.b16 %v3262
        %v3297 = vunpack.c.l.b16 %v3263
        %v3298 = vunpack.c.l.b16 %v3264
        %v3299 = vunpack.c.l.b16 %v3265
        %v3300 = vunpack.c.l.b16 %v3266
        %v3301 = vunpack.c.l.b16 %v3267
        %v3302 = vunpack.c.l.b16 %v3268
        %v3303 = vunpack.c.l.b16 %v3269
        %v3304 = vunpack.c.l.b16 %v3270
        %v3305 = vunpack.c.l.b16 %v3271
        %v3306 = vunpack.c.l.b16 %v3272
        %v3307 = vunpack.c.l.b16 %v3273
        %v3308 = vunpack.c.l.b16 %v3274
        %v3309 = vunpack.c.l.b16 %v3275
        %v3310 = vpack.c.b16 %v3295, %v3294
        %v3311 = vpack.c.b16 %v3297, %v3296
        %v3312 = vpack.c.b16 %v3299, %v3298
        %v3313 = vpack.c.b16 %v3301, %v3300
        %v3314 = vpack.c.b16 %v3303, %v3302
        %v3315 = vpack.c.b16 %v3305, %v3304
        %v3316 = vpack.c.b16 %v3307, %v3306
        %v3317 = vpack.c.b16 %v3309, %v3308
        %3326 = vmatprep.subr.bf16.mxu0 0
        %3327 = vmatpush1.bf16.msra.mxu0 %v3310
        %3328 = vmatprep.subr.bf16.mxu0 0
        %3329 = vmatpush1.bf16.msra.mxu0 %v3311
        %3330 = vmatprep.subr.bf16.mxu0 0
        %3331 = vmatpush1.bf16.msra.mxu0 %v3312
        %3332 = vmatprep.subr.bf16.mxu0 0
        %3333 = vmatpush1.bf16.msra.mxu0 %v3313
        %3334 = vmatprep.subr.bf16.mxu0 0
        %3335 = vmatpush1.bf16.msra.mxu0 %v3314
        %3336 = vmatprep.subr.bf16.mxu0 0
        %3337 = vmatpush1.bf16.msra.mxu0 %v3315
        %3338 = vmatprep.subr.bf16.mxu0 0
        %3339 = vmatpush1.bf16.msra.mxu0 %v3316
        %3340 = vmatprep.subr.bf16.mxu0 0
        %3341 = vmatpush1.bf16.msra.mxu0 %v3317
        %3342 = vmatprep.subr.bf16.mxu0 0
        %3343 = vmatpush1.bf16.msra.mxu0 0
        %3344 = vmatprep.subr.bf16.mxu0 0
        %3345 = vmatpush1.bf16.msra.mxu0 0
        %3346 = vmatprep.subr.bf16.mxu0 0
        %3347 = vmatpush1.bf16.msra.mxu0 0
        %3348 = vmatprep.subr.bf16.mxu0 0
        %3349 = vmatpush1.bf16.msra.mxu0 0
        %3350 = vmatprep.subr.bf16.mxu0 0
        %3351 = vmatpush1.bf16.msra.mxu0 0
        %3352 = vmatprep.subr.bf16.mxu0 0
        %3353 = vmatpush1.bf16.msra.mxu0 0
        %3354 = vmatprep.subr.bf16.mxu0 0
        %3355 = vmatpush1.bf16.msra.mxu0 0
        %3356 = vmatprep.subr.bf16.mxu0 0
        %3357 = vmatpush1.bf16.msra.mxu0 0
        %3358 = vmatprep.mubr.bf16.mxu0 0
        %3359 = vmatmul.mubr.bf16.gmra.mrb[0].mxu0 %v3276
        %v3360 = vpop.f32.mrb[0].mxu0
        %v3361 = vadd.f32 0.0, %v3360
        %v3362 = vpop.f32.mrb[0].mxu0
        %v3363 = vpop.f32.mrb[0].mxu0
        %v3364 = vpop.f32.mrb[0].mxu0
        %3365 = vdwg.mxu0
        %v3366 = vadd.f32 %v3258, %v3361
        %s3367 = scalar_lea.vmem %s7, 448
        %v3368 = vld [vmem:[%s3367] sm:$0xf]
        %v3369 = vld [vmem:[%s3367 + $0x4] sm:$0xf]
        %v3370 = vld [vmem:[%s3367 + $0x8] sm:$0xf]
        %v3371 = vld [vmem:[%s3367 + $0xc] sm:$0xf]
        %v3372 = vld [vmem:[%s3367 + $0x10] sm:$0xf]
        %v3373 = vld [vmem:[%s3367 + $0x14] sm:$0xf]
        %v3374 = vld [vmem:[%s3367 + $0x18] sm:$0xf]
        %v3375 = vld [vmem:[%s3367 + $0x1c] sm:$0xf]
        %v3376 = vld [vmem:[%s3367 + $0x20] sm:$0xf]
        %v3377 = vld [vmem:[%s3367 + $0x24] sm:$0xf]
        %v3378 = vld [vmem:[%s3367 + $0x28] sm:$0xf]
        %v3379 = vld [vmem:[%s3367 + $0x2c] sm:$0xf]
        %v3380 = vld [vmem:[%s3367 + $0x30] sm:$0xf]
        %v3381 = vld [vmem:[%s3367 + $0x34] sm:$0xf]
        %v3382 = vld [vmem:[%s3367 + $0x38] sm:$0xf]
        %v3383 = vld [vmem:[%s3367 + $0x3c] sm:$0xf]
        %v3384 = vrot.slane %v2647, 3
        %v3402 = vunpack.c.l.b16 %v3368
        %v3403 = vunpack.c.l.b16 %v3369
        %v3404 = vunpack.c.l.b16 %v3370
        %v3405 = vunpack.c.l.b16 %v3371
        %v3406 = vunpack.c.l.b16 %v3372
        %v3407 = vunpack.c.l.b16 %v3373
        %v3408 = vunpack.c.l.b16 %v3374
        %v3409 = vunpack.c.l.b16 %v3375
        %v3410 = vunpack.c.l.b16 %v3376
        %v3411 = vunpack.c.l.b16 %v3377
        %v3412 = vunpack.c.l.b16 %v3378
        %v3413 = vunpack.c.l.b16 %v3379
        %v3414 = vunpack.c.l.b16 %v3380
        %v3415 = vunpack.c.l.b16 %v3381
        %v3416 = vunpack.c.l.b16 %v3382
        %v3417 = vunpack.c.l.b16 %v3383
        %v3418 = vpack.c.b16 %v3403, %v3402
        %v3419 = vpack.c.b16 %v3405, %v3404
        %v3420 = vpack.c.b16 %v3407, %v3406
        %v3421 = vpack.c.b16 %v3409, %v3408
        %v3422 = vpack.c.b16 %v3411, %v3410
        %v3423 = vpack.c.b16 %v3413, %v3412
        %v3424 = vpack.c.b16 %v3415, %v3414
        %v3425 = vpack.c.b16 %v3417, %v3416
        %3434 = vmatprep.subr.bf16.mxu0 0
        %3435 = vmatpush1.bf16.msra.mxu0 %v3418
        %3436 = vmatprep.subr.bf16.mxu0 0
        %3437 = vmatpush1.bf16.msra.mxu0 %v3419
        %3438 = vmatprep.subr.bf16.mxu0 0
        %3439 = vmatpush1.bf16.msra.mxu0 %v3420
        %3440 = vmatprep.subr.bf16.mxu0 0
        %3441 = vmatpush1.bf16.msra.mxu0 %v3421
        %3442 = vmatprep.subr.bf16.mxu0 0
        %3443 = vmatpush1.bf16.msra.mxu0 %v3422
        %3444 = vmatprep.subr.bf16.mxu0 0
        %3445 = vmatpush1.bf16.msra.mxu0 %v3423
        %3446 = vmatprep.subr.bf16.mxu0 0
        %3447 = vmatpush1.bf16.msra.mxu0 %v3424
        %3448 = vmatprep.subr.bf16.mxu0 0
        %3449 = vmatpush1.bf16.msra.mxu0 %v3425
        %3450 = vmatprep.subr.bf16.mxu0 0
        %3451 = vmatpush1.bf16.msra.mxu0 0
        %3452 = vmatprep.subr.bf16.mxu0 0
        %3453 = vmatpush1.bf16.msra.mxu0 0
        %3454 = vmatprep.subr.bf16.mxu0 0
        %3455 = vmatpush1.bf16.msra.mxu0 0
        %3456 = vmatprep.subr.bf16.mxu0 0
        %3457 = vmatpush1.bf16.msra.mxu0 0
        %3458 = vmatprep.subr.bf16.mxu0 0
        %3459 = vmatpush1.bf16.msra.mxu0 0
        %3460 = vmatprep.subr.bf16.mxu0 0
        %3461 = vmatpush1.bf16.msra.mxu0 0
        %3462 = vmatprep.subr.bf16.mxu0 0
        %3463 = vmatpush1.bf16.msra.mxu0 0
        %3464 = vmatprep.subr.bf16.mxu0 0
        %3465 = vmatpush1.bf16.msra.mxu0 0
        %3466 = vmatprep.mubr.bf16.mxu0 0
        %3467 = vmatmul.mubr.bf16.gmra.mrb[0].mxu0 %v3384
        %v3468 = vpop.f32.mrb[0].mxu0
        %v3469 = vadd.f32 0.0, %v3468
        %v3470 = vpop.f32.mrb[0].mxu0
        %v3471 = vpop.f32.mrb[0].mxu0
        %v3472 = vpop.f32.mrb[0].mxu0
        %3473 = vdwg.mxu0
        %v3474 = vadd.f32 %v3366, %v3469
        %s3475 = scalar_lea.vmem %s7, 512
        %v3476 = vld [vmem:[%s3475] sm:$0xf]
        %v3477 = vld [vmem:[%s3475 + $0x4] sm:$0xf]
        %v3478 = vld [vmem:[%s3475 + $0x8] sm:$0xf]
        %v3479 = vld [vmem:[%s3475 + $0xc] sm:$0xf]
        %v3480 = vld [vmem:[%s3475 + $0x10] sm:$0xf]
        %v3481 = vld [vmem:[%s3475 + $0x14] sm:$0xf]
        %v3482 = vld [vmem:[%s3475 + $0x18] sm:$0xf]
        %v3483 = vld [vmem:[%s3475 + $0x1c] sm:$0xf]
        %v3484 = vld [vmem:[%s3475 + $0x20] sm:$0xf]
        %v3485 = vld [vmem:[%s3475 + $0x24] sm:$0xf]
        %v3486 = vld [vmem:[%s3475 + $0x28] sm:$0xf]
        %v3487 = vld [vmem:[%s3475 + $0x2c] sm:$0xf]
        %v3488 = vld [vmem:[%s3475 + $0x30] sm:$0xf]
        %v3489 = vld [vmem:[%s3475 + $0x34] sm:$0xf]
        %v3490 = vld [vmem:[%s3475 + $0x38] sm:$0xf]
        %v3491 = vld [vmem:[%s3475 + $0x3c] sm:$0xf]
        %v3492 = vrot.slane %v2612, 4
        %v3510 = vunpack.c.l.b16 %v3476
        %v3511 = vunpack.c.l.b16 %v3477
        %v3512 = vunpack.c.l.b16 %v3478
        %v3513 = vunpack.c.l.b16 %v3479
        %v3514 = vunpack.c.l.b16 %v3480
        %v3515 = vunpack.c.l.b16 %v3481
        %v3516 = vunpack.c.l.b16 %v3482
        %v3517 = vunpack.c.l.b16 %v3483
        %v3518 = vunpack.c.l.b16 %v3484
        %v3519 = vunpack.c.l.b16 %v3485
        %v3520 = vunpack.c.l.b16 %v3486
        %v3521 = vunpack.c.l.b16 %v3487
        %v3522 = vunpack.c.l.b16 %v3488
        %v3523 = vunpack.c.l.b16 %v3489
        %v3524 = vunpack.c.l.b16 %v3490
        %v3525 = vunpack.c.l.b16 %v3491
        %v3526 = vpack.c.b16 %v3511, %v3510
        %v3527 = vpack.c.b16 %v3513, %v3512
        %v3528 = vpack.c.b16 %v3515, %v3514
        %v3529 = vpack.c.b16 %v3517, %v3516
        %v3530 = vpack.c.b16 %v3519, %v3518
        %v3531 = vpack.c.b16 %v3521, %v3520
        %v3532 = vpack.c.b16 %v3523, %v3522
        %v3533 = vpack.c.b16 %v3525, %v3524
        %3542 = vmatprep.subr.bf16.mxu0 0
        %3543 = vmatpush1.bf16.msra.mxu0 %v3526
        %3544 = vmatprep.subr.bf16.mxu0 0
        %3545 = vmatpush1.bf16.msra.mxu0 %v3527
        %3546 = vmatprep.subr.bf16.mxu0 0
        %3547 = vmatpush1.bf16.msra.mxu0 %v3528
        %3548 = vmatprep.subr.bf16.mxu0 0
        %3549 = vmatpush1.bf16.msra.mxu0 %v3529
        %3550 = vmatprep.subr.bf16.mxu0 0
        %3551 = vmatpush1.bf16.msra.mxu0 %v3530
        %3552 = vmatprep.subr.bf16.mxu0 0
        %3553 = vmatpush1.bf16.msra.mxu0 %v3531
        %3554 = vmatprep.subr.bf16.mxu0 0
        %3555 = vmatpush1.bf16.msra.mxu0 %v3532
        %3556 = vmatprep.subr.bf16.mxu0 0
        %3557 = vmatpush1.bf16.msra.mxu0 %v3533
        %3558 = vmatprep.subr.bf16.mxu0 0
        %3559 = vmatpush1.bf16.msra.mxu0 0
        %3560 = vmatprep.subr.bf16.mxu0 0
        %3561 = vmatpush1.bf16.msra.mxu0 0
        %3562 = vmatprep.subr.bf16.mxu0 0
        %3563 = vmatpush1.bf16.msra.mxu0 0
        %3564 = vmatprep.subr.bf16.mxu0 0
        %3565 = vmatpush1.bf16.msra.mxu0 0
        %3566 = vmatprep.subr.bf16.mxu0 0
        %3567 = vmatpush1.bf16.msra.mxu0 0
        %3568 = vmatprep.subr.bf16.mxu0 0
        %3569 = vmatpush1.bf16.msra.mxu0 0
        %3570 = vmatprep.subr.bf16.mxu0 0
        %3571 = vmatpush1.bf16.msra.mxu0 0
        %3572 = vmatprep.subr.bf16.mxu0 0
        %3573 = vmatpush1.bf16.msra.mxu0 0
        %3574 = vmatprep.mubr.bf16.mxu0 0
        %3575 = vmatmul.mubr.bf16.gmra.mrb[0].mxu0 %v3492
        %v3576 = vpop.f32.mrb[0].mxu0
        %v3577 = vadd.f32 0.0, %v3576
        %v3578 = vpop.f32.mrb[0].mxu0
        %v3579 = vpop.f32.mrb[0].mxu0
        %v3580 = vpop.f32.mrb[0].mxu0
        %3581 = vdwg.mxu0
        %v3582 = vadd.f32 %v3474, %v3577
        %s3583 = scalar_lea.vmem %s7, 576
        %v3584 = vld [vmem:[%s3583] sm:$0xf]
        %v3585 = vld [vmem:[%s3583 + $0x4] sm:$0xf]
        %v3586 = vld [vmem:[%s3583 + $0x8] sm:$0xf]
        %v3587 = vld [vmem:[%s3583 + $0xc] sm:$0xf]
        %v3588 = vld [vmem:[%s3583 + $0x10] sm:$0xf]
        %v3589 = vld [vmem:[%s3583 + $0x14] sm:$0xf]
        %v3590 = vld [vmem:[%s3583 + $0x18] sm:$0xf]
        %v3591 = vld [vmem:[%s3583 + $0x1c] sm:$0xf]
        %v3592 = vld [vmem:[%s3583 + $0x20] sm:$0xf]
        %v3593 = vld [vmem:[%s3583 + $0x24] sm:$0xf]
        %v3594 = vld [vmem:[%s3583 + $0x28] sm:$0xf]
        %v3595 = vld [vmem:[%s3583 + $0x2c] sm:$0xf]
        %v3596 = vld [vmem:[%s3583 + $0x30] sm:$0xf]
        %v3597 = vld [vmem:[%s3583 + $0x34] sm:$0xf]
        %v3598 = vld [vmem:[%s3583 + $0x38] sm:$0xf]
        %v3599 = vld [vmem:[%s3583 + $0x3c] sm:$0xf]
        %v3600 = vrot.slane %v2647, 4
        %v3618 = vunpack.c.l.b16 %v3584
        %v3619 = vunpack.c.l.b16 %v3585
        %v3620 = vunpack.c.l.b16 %v3586
        %v3621 = vunpack.c.l.b16 %v3587
        %v3622 = vunpack.c.l.b16 %v3588
        %v3623 = vunpack.c.l.b16 %v3589
        %v3624 = vunpack.c.l.b16 %v3590
        %v3625 = vunpack.c.l.b16 %v3591
        %v3626 = vunpack.c.l.b16 %v3592
        %v3627 = vunpack.c.l.b16 %v3593
        %v3628 = vunpack.c.l.b16 %v3594
        %v3629 = vunpack.c.l.b16 %v3595
        %v3630 = vunpack.c.l.b16 %v3596
        %v3631 = vunpack.c.l.b16 %v3597
        %v3632 = vunpack.c.l.b16 %v3598
        %v3633 = vunpack.c.l.b16 %v3599
        %v3634 = vpack.c.b16 %v3619, %v3618
        %v3635 = vpack.c.b16 %v3621, %v3620
        %v3636 = vpack.c.b16 %v3623, %v3622
        %v3637 = vpack.c.b16 %v3625, %v3624
        %v3638 = vpack.c.b16 %v3627, %v3626
        %v3639 = vpack.c.b16 %v3629, %v3628
        %v3640 = vpack.c.b16 %v3631, %v3630
        %v3641 = vpack.c.b16 %v3633, %v3632
        %3650 = vmatprep.subr.bf16.mxu0 0
        %3651 = vmatpush1.bf16.msra.mxu0 %v3634
        %3652 = vmatprep.subr.bf16.mxu0 0
        %3653 = vmatpush1.bf16.msra.mxu0 %v3635
        %3654 = vmatprep.subr.bf16.mxu0 0
        %3655 = vmatpush1.bf16.msra.mxu0 %v3636
        %3656 = vmatprep.subr.bf16.mxu0 0
        %3657 = vmatpush1.bf16.msra.mxu0 %v3637
        %3658 = vmatprep.subr.bf16.mxu0 0
        %3659 = vmatpush1.bf16.msra.mxu0 %v3638
        %3660 = vmatprep.subr.bf16.mxu0 0
        %3661 = vmatpush1.bf16.msra.mxu0 %v3639
        %3662 = vmatprep.subr.bf16.mxu0 0
        %3663 = vmatpush1.bf16.msra.mxu0 %v3640
        %3664 = vmatprep.subr.bf16.mxu0 0
        %3665 = vmatpush1.bf16.msra.mxu0 %v3641
        %3666 = vmatprep.subr.bf16.mxu0 0
        %3667 = vmatpush1.bf16.msra.mxu0 0
        %3668 = vmatprep.subr.bf16.mxu0 0
        %3669 = vmatpush1.bf16.msra.mxu0 0
        %3670 = vmatprep.subr.bf16.mxu0 0
        %3671 = vmatpush1.bf16.msra.mxu0 0
        %3672 = vmatprep.subr.bf16.mxu0 0
        %3673 = vmatpush1.bf16.msra.mxu0 0
        %3674 = vmatprep.subr.bf16.mxu0 0
        %3675 = vmatpush1.bf16.msra.mxu0 0
        %3676 = vmatprep.subr.bf16.mxu0 0
        %3677 = vmatpush1.bf16.msra.mxu0 0
        %3678 = vmatprep.subr.bf16.mxu0 0
        %3679 = vmatpush1.bf16.msra.mxu0 0
        %3680 = vmatprep.subr.bf16.mxu0 0
        %3681 = vmatpush1.bf16.msra.mxu0 0
        %3682 = vmatprep.mubr.bf16.mxu0 0
        %3683 = vmatmul.mubr.bf16.gmra.mrb[0].mxu0 %v3600
        %v3684 = vpop.f32.mrb[0].mxu0
        %v3685 = vadd.f32 0.0, %v3684
        %v3686 = vpop.f32.mrb[0].mxu0
        %v3687 = vpop.f32.mrb[0].mxu0
        %v3688 = vpop.f32.mrb[0].mxu0
        %3689 = vdwg.mxu0
        %v3690 = vadd.f32 %v3582, %v3685
        %s3691 = scalar_lea.vmem %s7, 640
        %v3692 = vld [vmem:[%s3691] sm:$0xf]
        %v3693 = vld [vmem:[%s3691 + $0x4] sm:$0xf]
        %v3694 = vld [vmem:[%s3691 + $0x8] sm:$0xf]
        %v3695 = vld [vmem:[%s3691 + $0xc] sm:$0xf]
        %v3696 = vld [vmem:[%s3691 + $0x10] sm:$0xf]
        %v3697 = vld [vmem:[%s3691 + $0x14] sm:$0xf]
        %v3698 = vld [vmem:[%s3691 + $0x18] sm:$0xf]
        %v3699 = vld [vmem:[%s3691 + $0x1c] sm:$0xf]
        %v3700 = vld [vmem:[%s3691 + $0x20] sm:$0xf]
        %v3701 = vld [vmem:[%s3691 + $0x24] sm:$0xf]
        %v3702 = vld [vmem:[%s3691 + $0x28] sm:$0xf]
        %v3703 = vld [vmem:[%s3691 + $0x2c] sm:$0xf]
        %v3704 = vld [vmem:[%s3691 + $0x30] sm:$0xf]
        %v3705 = vld [vmem:[%s3691 + $0x34] sm:$0xf]
        %v3706 = vld [vmem:[%s3691 + $0x38] sm:$0xf]
        %v3707 = vld [vmem:[%s3691 + $0x3c] sm:$0xf]
        %v3708 = vrot.slane %v2612, 5
        %v3726 = vunpack.c.l.b16 %v3692
        %v3727 = vunpack.c.l.b16 %v3693
        %v3728 = vunpack.c.l.b16 %v3694
        %v3729 = vunpack.c.l.b16 %v3695
        %v3730 = vunpack.c.l.b16 %v3696
        %v3731 = vunpack.c.l.b16 %v3697
        %v3732 = vunpack.c.l.b16 %v3698
        %v3733 = vunpack.c.l.b16 %v3699
        %v3734 = vunpack.c.l.b16 %v3700
        %v3735 = vunpack.c.l.b16 %v3701
        %v3736 = vunpack.c.l.b16 %v3702
        %v3737 = vunpack.c.l.b16 %v3703
        %v3738 = vunpack.c.l.b16 %v3704
        %v3739 = vunpack.c.l.b16 %v3705
        %v3740 = vunpack.c.l.b16 %v3706
        %v3741 = vunpack.c.l.b16 %v3707
        %v3742 = vpack.c.b16 %v3727, %v3726
        %v3743 = vpack.c.b16 %v3729, %v3728
        %v3744 = vpack.c.b16 %v3731, %v3730
        %v3745 = vpack.c.b16 %v3733, %v3732
        %v3746 = vpack.c.b16 %v3735, %v3734
        %v3747 = vpack.c.b16 %v3737, %v3736
        %v3748 = vpack.c.b16 %v3739, %v3738
        %v3749 = vpack.c.b16 %v3741, %v3740
        %3758 = vmatprep.subr.bf16.mxu0 0
        %3759 = vmatpush1.bf16.msra.mxu0 %v3742
        %3760 = vmatprep.subr.bf16.mxu0 0
        %3761 = vmatpush1.bf16.msra.mxu0 %v3743
        %3762 = vmatprep.subr.bf16.mxu0 0
        %3763 = vmatpush1.bf16.msra.mxu0 %v3744
        %3764 = vmatprep.subr.bf16.mxu0 0
        %3765 = vmatpush1.bf16.msra.mxu0 %v3745
        %3766 = vmatprep.subr.bf16.mxu0 0
        %3767 = vmatpush1.bf16.msra.mxu0 %v3746
        %3768 = vmatprep.subr.bf16.mxu0 0
        %3769 = vmatpush1.bf16.msra.mxu0 %v3747
        %3770 = vmatprep.subr.bf16.mxu0 0
        %3771 = vmatpush1.bf16.msra.mxu0 %v3748
        %3772 = vmatprep.subr.bf16.mxu0 0
        %3773 = vmatpush1.bf16.msra.mxu0 %v3749
        %3774 = vmatprep.subr.bf16.mxu0 0
        %3775 = vmatpush1.bf16.msra.mxu0 0
        %3776 = vmatprep.subr.bf16.mxu0 0
        %3777 = vmatpush1.bf16.msra.mxu0 0
        %3778 = vmatprep.subr.bf16.mxu0 0
        %3779 = vmatpush1.bf16.msra.mxu0 0
        %3780 = vmatprep.subr.bf16.mxu0 0
        %3781 = vmatpush1.bf16.msra.mxu0 0
        %3782 = vmatprep.subr.bf16.mxu0 0
        %3783 = vmatpush1.bf16.msra.mxu0 0
        %3784 = vmatprep.subr.bf16.mxu0 0
        %3785 = vmatpush1.bf16.msra.mxu0 0
        %3786 = vmatprep.subr.bf16.mxu0 0
        %3787 = vmatpush1.bf16.msra.mxu0 0
        %3788 = vmatprep.subr.bf16.mxu0 0
        %3789 = vmatpush1.bf16.msra.mxu0 0
        %3790 = vmatprep.mubr.bf16.mxu0 0
        %3791 = vmatmul.mubr.bf16.gmra.mrb[0].mxu0 %v3708
        %v3792 = vpop.f32.mrb[0].mxu0
        %v3793 = vadd.f32 0.0, %v3792
        %v3794 = vpop.f32.mrb[0].mxu0
        %v3795 = vpop.f32.mrb[0].mxu0
        %v3796 = vpop.f32.mrb[0].mxu0
        %3797 = vdwg.mxu0
        %v3798 = vadd.f32 %v3690, %v3793
        %s3799 = scalar_lea.vmem %s7, 704
        %v3800 = vld [vmem:[%s3799] sm:$0xf]
        %v3801 = vld [vmem:[%s3799 + $0x4] sm:$0xf]
        %v3802 = vld [vmem:[%s3799 + $0x8] sm:$0xf]
        %v3803 = vld [vmem:[%s3799 + $0xc] sm:$0xf]
        %v3804 = vld [vmem:[%s3799 + $0x10] sm:$0xf]
        %v3805 = vld [vmem:[%s3799 + $0x14] sm:$0xf]
        %v3806 = vld [vmem:[%s3799 + $0x18] sm:$0xf]
        %v3807 = vld [vmem:[%s3799 + $0x1c] sm:$0xf]
        %v3808 = vld [vmem:[%s3799 + $0x20] sm:$0xf]
        %v3809 = vld [vmem:[%s3799 + $0x24] sm:$0xf]
        %v3810 = vld [vmem:[%s3799 + $0x28] sm:$0xf]
        %v3811 = vld [vmem:[%s3799 + $0x2c] sm:$0xf]
        %v3812 = vld [vmem:[%s3799 + $0x30] sm:$0xf]
        %v3813 = vld [vmem:[%s3799 + $0x34] sm:$0xf]
        %v3814 = vld [vmem:[%s3799 + $0x38] sm:$0xf]
        %v3815 = vld [vmem:[%s3799 + $0x3c] sm:$0xf]
        %v3816 = vrot.slane %v2647, 5
        %v3834 = vunpack.c.l.b16 %v3800
        %v3835 = vunpack.c.l.b16 %v3801
        %v3836 = vunpack.c.l.b16 %v3802
        %v3837 = vunpack.c.l.b16 %v3803
        %v3838 = vunpack.c.l.b16 %v3804
        %v3839 = vunpack.c.l.b16 %v3805
        %v3840 = vunpack.c.l.b16 %v3806
        %v3841 = vunpack.c.l.b16 %v3807
        %v3842 = vunpack.c.l.b16 %v3808
        %v3843 = vunpack.c.l.b16 %v3809
        %v3844 = vunpack.c.l.b16 %v3810
        %v3845 = vunpack.c.l.b16 %v3811
        %v3846 = vunpack.c.l.b16 %v3812
        %v3847 = vunpack.c.l.b16 %v3813
        %v3848 = vunpack.c.l.b16 %v3814
        %v3849 = vunpack.c.l.b16 %v3815
        %v3850 = vpack.c.b16 %v3835, %v3834
        %v3851 = vpack.c.b16 %v3837, %v3836
        %v3852 = vpack.c.b16 %v3839, %v3838
        %v3853 = vpack.c.b16 %v3841, %v3840
        %v3854 = vpack.c.b16 %v3843, %v3842
        %v3855 = vpack.c.b16 %v3845, %v3844
        %v3856 = vpack.c.b16 %v3847, %v3846
        %v3857 = vpack.c.b16 %v3849, %v3848
        %3866 = vmatprep.subr.bf16.mxu0 0
        %3867 = vmatpush1.bf16.msra.mxu0 %v3850
        %3868 = vmatprep.subr.bf16.mxu0 0
        %3869 = vmatpush1.bf16.msra.mxu0 %v3851
        %3870 = vmatprep.subr.bf16.mxu0 0
        %3871 = vmatpush1.bf16.msra.mxu0 %v3852
        %3872 = vmatprep.subr.bf16.mxu0 0
        %3873 = vmatpush1.bf16.msra.mxu0 %v3853
        %3874 = vmatprep.subr.bf16.mxu0 0
        %3875 = vmatpush1.bf16.msra.mxu0 %v3854
        %3876 = vmatprep.subr.bf16.mxu0 0
        %3877 = vmatpush1.bf16.msra.mxu0 %v3855
        %3878 = vmatprep.subr.bf16.mxu0 0
        %3879 = vmatpush1.bf16.msra.mxu0 %v3856
        %3880 = vmatprep.subr.bf16.mxu0 0
        %3881 = vmatpush1.bf16.msra.mxu0 %v3857
        %3882 = vmatprep.subr.bf16.mxu0 0
        %3883 = vmatpush1.bf16.msra.mxu0 0
        %3884 = vmatprep.subr.bf16.mxu0 0
        %3885 = vmatpush1.bf16.msra.mxu0 0
        %3886 = vmatprep.subr.bf16.mxu0 0
        %3887 = vmatpush1.bf16.msra.mxu0 0
        %3888 = vmatprep.subr.bf16.mxu0 0
        %3889 = vmatpush1.bf16.msra.mxu0 0
        %3890 = vmatprep.subr.bf16.mxu0 0
        %3891 = vmatpush1.bf16.msra.mxu0 0
        %3892 = vmatprep.subr.bf16.mxu0 0
        %3893 = vmatpush1.bf16.msra.mxu0 0
        %3894 = vmatprep.subr.bf16.mxu0 0
        %3895 = vmatpush1.bf16.msra.mxu0 0
        %3896 = vmatprep.subr.bf16.mxu0 0
        %3897 = vmatpush1.bf16.msra.mxu0 0
        %3898 = vmatprep.mubr.bf16.mxu0 0
        %3899 = vmatmul.mubr.bf16.gmra.mrb[0].mxu0 %v3816
        %v3900 = vpop.f32.mrb[0].mxu0
        %v3901 = vadd.f32 0.0, %v3900
        %v3902 = vpop.f32.mrb[0].mxu0
        %v3903 = vpop.f32.mrb[0].mxu0
        %v3904 = vpop.f32.mrb[0].mxu0
        %3905 = vdwg.mxu0
        %v3906 = vadd.f32 %v3798, %v3901
        %s3907 = scalar_lea.vmem %s7, 768
        %v3908 = vld [vmem:[%s3907] sm:$0xf]
        %v3909 = vld [vmem:[%s3907 + $0x4] sm:$0xf]
        %v3910 = vld [vmem:[%s3907 + $0x8] sm:$0xf]
        %v3911 = vld [vmem:[%s3907 + $0xc] sm:$0xf]
        %v3912 = vld [vmem:[%s3907 + $0x10] sm:$0xf]
        %v3913 = vld [vmem:[%s3907 + $0x14] sm:$0xf]
        %v3914 = vld [vmem:[%s3907 + $0x18] sm:$0xf]
        %v3915 = vld [vmem:[%s3907 + $0x1c] sm:$0xf]
        %v3916 = vld [vmem:[%s3907 + $0x20] sm:$0xf]
        %v3917 = vld [vmem:[%s3907 + $0x24] sm:$0xf]
        %v3918 = vld [vmem:[%s3907 + $0x28] sm:$0xf]
        %v3919 = vld [vmem:[%s3907 + $0x2c] sm:$0xf]
        %v3920 = vld [vmem:[%s3907 + $0x30] sm:$0xf]
        %v3921 = vld [vmem:[%s3907 + $0x34] sm:$0xf]
        %v3922 = vld [vmem:[%s3907 + $0x38] sm:$0xf]
        %v3923 = vld [vmem:[%s3907 + $0x3c] sm:$0xf]
        %v3924 = vrot.slane %v2612, 6
        %v3942 = vunpack.c.l.b16 %v3908
        %v3943 = vunpack.c.l.b16 %v3909
        %v3944 = vunpack.c.l.b16 %v3910
        %v3945 = vunpack.c.l.b16 %v3911
        %v3946 = vunpack.c.l.b16 %v3912
        %v3947 = vunpack.c.l.b16 %v3913
        %v3948 = vunpack.c.l.b16 %v3914
        %v3949 = vunpack.c.l.b16 %v3915
        %v3950 = vunpack.c.l.b16 %v3916
        %v3951 = vunpack.c.l.b16 %v3917
        %v3952 = vunpack.c.l.b16 %v3918
        %v3953 = vunpack.c.l.b16 %v3919
        %v3954 = vunpack.c.l.b16 %v3920
        %v3955 = vunpack.c.l.b16 %v3921
        %v3956 = vunpack.c.l.b16 %v3922
        %v3957 = vunpack.c.l.b16 %v3923
        %v3958 = vpack.c.b16 %v3943, %v3942
        %v3959 = vpack.c.b16 %v3945, %v3944
        %v3960 = vpack.c.b16 %v3947, %v3946
        %v3961 = vpack.c.b16 %v3949, %v3948
        %v3962 = vpack.c.b16 %v3951, %v3950
        %v3963 = vpack.c.b16 %v3953, %v3952
        %v3964 = vpack.c.b16 %v3955, %v3954
        %v3965 = vpack.c.b16 %v3957, %v3956
        %3974 = vmatprep.subr.bf16.mxu0 0
        %3975 = vmatpush1.bf16.msra.mxu0 %v3958
        %3976 = vmatprep.subr.bf16.mxu0 0
        %3977 = vmatpush1.bf16.msra.mxu0 %v3959
        %3978 = vmatprep.subr.bf16.mxu0 0
        %3979 = vmatpush1.bf16.msra.mxu0 %v3960
        %3980 = vmatprep.subr.bf16.mxu0 0
        %3981 = vmatpush1.bf16.msra.mxu0 %v3961
        %3982 = vmatprep.subr.bf16.mxu0 0
        %3983 = vmatpush1.bf16.msra.mxu0 %v3962
        %3984 = vmatprep.subr.bf16.mxu0 0
        %3985 = vmatpush1.bf16.msra.mxu0 %v3963
        %3986 = vmatprep.subr.bf16.mxu0 0
        %3987 = vmatpush1.bf16.msra.mxu0 %v3964
        %3988 = vmatprep.subr.bf16.mxu0 0
        %3989 = vmatpush1.bf16.msra.mxu0 %v3965
        %3990 = vmatprep.subr.bf16.mxu0 0
        %3991 = vmatpush1.bf16.msra.mxu0 0
        %3992 = vmatprep.subr.bf16.mxu0 0
        %3993 = vmatpush1.bf16.msra.mxu0 0
        %3994 = vmatprep.subr.bf16.mxu0 0
        %3995 = vmatpush1.bf16.msra.mxu0 0
        %3996 = vmatprep.subr.bf16.mxu0 0
        %3997 = vmatpush1.bf16.msra.mxu0 0
        %3998 = vmatprep.subr.bf16.mxu0 0
        %3999 = vmatpush1.bf16.msra.mxu0 0
        %4000 = vmatprep.subr.bf16.mxu0 0
        %4001 = vmatpush1.bf16.msra.mxu0 0
        %4002 = vmatprep.subr.bf16.mxu0 0
        %4003 = vmatpush1.bf16.msra.mxu0 0
        %4004 = vmatprep.subr.bf16.mxu0 0
        %4005 = vmatpush1.bf16.msra.mxu0 0
        %4006 = vmatprep.mubr.bf16.mxu0 0
        %4007 = vmatmul.mubr.bf16.gmra.mrb[0].mxu0 %v3924
        %v4008 = vpop.f32.mrb[0].mxu0
        %v4009 = vadd.f32 0.0, %v4008
        %v4010 = vpop.f32.mrb[0].mxu0
        %v4011 = vpop.f32.mrb[0].mxu0
        %v4012 = vpop.f32.mrb[0].mxu0
        %4013 = vdwg.mxu0
        %v4014 = vadd.f32 %v3906, %v4009
        %s4015 = scalar_lea.vmem %s7, 832
        %v4016 = vld [vmem:[%s4015] sm:$0xf]
        %v4017 = vld [vmem:[%s4015 + $0x4] sm:$0xf]
        %v4018 = vld [vmem:[%s4015 + $0x8] sm:$0xf]
        %v4019 = vld [vmem:[%s4015 + $0xc] sm:$0xf]
        %v4020 = vld [vmem:[%s4015 + $0x10] sm:$0xf]
        %v4021 = vld [vmem:[%s4015 + $0x14] sm:$0xf]
        %v4022 = vld [vmem:[%s4015 + $0x18] sm:$0xf]
        %v4023 = vld [vmem:[%s4015 + $0x1c] sm:$0xf]
        %v4024 = vld [vmem:[%s4015 + $0x20] sm:$0xf]
        %v4025 = vld [vmem:[%s4015 + $0x24] sm:$0xf]
        %v4026 = vld [vmem:[%s4015 + $0x28] sm:$0xf]
        %v4027 = vld [vmem:[%s4015 + $0x2c] sm:$0xf]
        %v4028 = vld [vmem:[%s4015 + $0x30] sm:$0xf]
        %v4029 = vld [vmem:[%s4015 + $0x34] sm:$0xf]
        %v4030 = vld [vmem:[%s4015 + $0x38] sm:$0xf]
        %v4031 = vld [vmem:[%s4015 + $0x3c] sm:$0xf]
        %v4032 = vrot.slane %v2647, 6
        %v4050 = vunpack.c.l.b16 %v4016
        %v4051 = vunpack.c.l.b16 %v4017
        %v4052 = vunpack.c.l.b16 %v4018
        %v4053 = vunpack.c.l.b16 %v4019
        %v4054 = vunpack.c.l.b16 %v4020
        %v4055 = vunpack.c.l.b16 %v4021
        %v4056 = vunpack.c.l.b16 %v4022
        %v4057 = vunpack.c.l.b16 %v4023
        %v4058 = vunpack.c.l.b16 %v4024
        %v4059 = vunpack.c.l.b16 %v4025
        %v4060 = vunpack.c.l.b16 %v4026
        %v4061 = vunpack.c.l.b16 %v4027
        %v4062 = vunpack.c.l.b16 %v4028
        %v4063 = vunpack.c.l.b16 %v4029
        %v4064 = vunpack.c.l.b16 %v4030
        %v4065 = vunpack.c.l.b16 %v4031
        %v4066 = vpack.c.b16 %v4051, %v4050
        %v4067 = vpack.c.b16 %v4053, %v4052
        %v4068 = vpack.c.b16 %v4055, %v4054
        %v4069 = vpack.c.b16 %v4057, %v4056
        %v4070 = vpack.c.b16 %v4059, %v4058
        %v4071 = vpack.c.b16 %v4061, %v4060
        %v4072 = vpack.c.b16 %v4063, %v4062
        %v4073 = vpack.c.b16 %v4065, %v4064
        %4082 = vmatprep.subr.bf16.mxu0 0
        %4083 = vmatpush1.bf16.msra.mxu0 %v4066
        %4084 = vmatprep.subr.bf16.mxu0 0
        %4085 = vmatpush1.bf16.msra.mxu0 %v4067
        %4086 = vmatprep.subr.bf16.mxu0 0
        %4087 = vmatpush1.bf16.msra.mxu0 %v4068
        %4088 = vmatprep.subr.bf16.mxu0 0
        %4089 = vmatpush1.bf16.msra.mxu0 %v4069
        %4090 = vmatprep.subr.bf16.mxu0 0
        %4091 = vmatpush1.bf16.msra.mxu0 %v4070
        %4092 = vmatprep.subr.bf16.mxu0 0
        %4093 = vmatpush1.bf16.msra.mxu0 %v4071
        %4094 = vmatprep.subr.bf16.mxu0 0
        %4095 = vmatpush1.bf16.msra.mxu0 %v4072
        %4096 = vmatprep.subr.bf16.mxu0 0
        %4097 = vmatpush1.bf16.msra.mxu0 %v4073
        %4098 = vmatprep.subr.bf16.mxu0 0
        %4099 = vmatpush1.bf16.msra.mxu0 0
        %4100 = vmatprep.subr.bf16.mxu0 0
        %4101 = vmatpush1.bf16.msra.mxu0 0
        %4102 = vmatprep.subr.bf16.mxu0 0
        %4103 = vmatpush1.bf16.msra.mxu0 0
        %4104 = vmatprep.subr.bf16.mxu0 0
        %4105 = vmatpush1.bf16.msra.mxu0 0
        %4106 = vmatprep.subr.bf16.mxu0 0
        %4107 = vmatpush1.bf16.msra.mxu0 0
        %4108 = vmatprep.subr.bf16.mxu0 0
        %4109 = vmatpush1.bf16.msra.mxu0 0
        %4110 = vmatprep.subr.bf16.mxu0 0
        %4111 = vmatpush1.bf16.msra.mxu0 0
        %4112 = vmatprep.subr.bf16.mxu0 0
        %4113 = vmatpush1.bf16.msra.mxu0 0
        %4114 = vmatprep.mubr.bf16.mxu0 0
        %4115 = vmatmul.mubr.bf16.gmra.mrb[0].mxu0 %v4032
        %v4116 = vpop.f32.mrb[0].mxu0
        %v4117 = vadd.f32 0.0, %v4116
        %v4118 = vpop.f32.mrb[0].mxu0
        %v4119 = vpop.f32.mrb[0].mxu0
        %v4120 = vpop.f32.mrb[0].mxu0
        %4121 = vdwg.mxu0
        %v4122 = vadd.f32 %v4014, %v4117
        %s4123 = scalar_lea.vmem %s7, 896
        %v4124 = vld [vmem:[%s4123] sm:$0xf]
        %v4125 = vld [vmem:[%s4123 + $0x4] sm:$0xf]
        %v4126 = vld [vmem:[%s4123 + $0x8] sm:$0xf]
        %v4127 = vld [vmem:[%s4123 + $0xc] sm:$0xf]
        %v4128 = vld [vmem:[%s4123 + $0x10] sm:$0xf]
        %v4129 = vld [vmem:[%s4123 + $0x14] sm:$0xf]
        %v4130 = vld [vmem:[%s4123 + $0x18] sm:$0xf]
        %v4131 = vld [vmem:[%s4123 + $0x1c] sm:$0xf]
        %v4132 = vld [vmem:[%s4123 + $0x20] sm:$0xf]
        %v4133 = vld [vmem:[%s4123 + $0x24] sm:$0xf]
        %v4134 = vld [vmem:[%s4123 + $0x28] sm:$0xf]
        %v4135 = vld [vmem:[%s4123 + $0x2c] sm:$0xf]
        %v4136 = vld [vmem:[%s4123 + $0x30] sm:$0xf]
        %v4137 = vld [vmem:[%s4123 + $0x34] sm:$0xf]
        %v4138 = vld [vmem:[%s4123 + $0x38] sm:$0xf]
        %v4139 = vld [vmem:[%s4123 + $0x3c] sm:$0xf]
        %v4140 = vrot.slane %v2612, 7
        %v4158 = vunpack.c.l.b16 %v4124
        %v4159 = vunpack.c.l.b16 %v4125
        %v4160 = vunpack.c.l.b16 %v4126
        %v4161 = vunpack.c.l.b16 %v4127
        %v4162 = vunpack.c.l.b16 %v4128
        %v4163 = vunpack.c.l.b16 %v4129
        %v4164 = vunpack.c.l.b16 %v4130
        %v4165 = vunpack.c.l.b16 %v4131
        %v4166 = vunpack.c.l.b16 %v4132
        %v4167 = vunpack.c.l.b16 %v4133
        %v4168 = vunpack.c.l.b16 %v4134
        %v4169 = vunpack.c.l.b16 %v4135
        %v4170 = vunpack.c.l.b16 %v4136
        %v4171 = vunpack.c.l.b16 %v4137
        %v4172 = vunpack.c.l.b16 %v4138
        %v4173 = vunpack.c.l.b16 %v4139
        %v4174 = vpack.c.b16 %v4159, %v4158
        %v4175 = vpack.c.b16 %v4161, %v4160
        %v4176 = vpack.c.b16 %v4163, %v4162
        %v4177 = vpack.c.b16 %v4165, %v4164
        %v4178 = vpack.c.b16 %v4167, %v4166
        %v4179 = vpack.c.b16 %v4169, %v4168
        %v4180 = vpack.c.b16 %v4171, %v4170
        %v4181 = vpack.c.b16 %v4173, %v4172
        %4190 = vmatprep.subr.bf16.mxu0 0
        %4191 = vmatpush1.bf16.msra.mxu0 %v4174
        %4192 = vmatprep.subr.bf16.mxu0 0
        %4193 = vmatpush1.bf16.msra.mxu0 %v4175
        %4194 = vmatprep.subr.bf16.mxu0 0
        %4195 = vmatpush1.bf16.msra.mxu0 %v4176
        %4196 = vmatprep.subr.bf16.mxu0 0
        %4197 = vmatpush1.bf16.msra.mxu0 %v4177
        %4198 = vmatprep.subr.bf16.mxu0 0
        %4199 = vmatpush1.bf16.msra.mxu0 %v4178
        %4200 = vmatprep.subr.bf16.mxu0 0
        %4201 = vmatpush1.bf16.msra.mxu0 %v4179
        %4202 = vmatprep.subr.bf16.mxu0 0
        %4203 = vmatpush1.bf16.msra.mxu0 %v4180
        %4204 = vmatprep.subr.bf16.mxu0 0
        %4205 = vmatpush1.bf16.msra.mxu0 %v4181
        %4206 = vmatprep.subr.bf16.mxu0 0
        %4207 = vmatpush1.bf16.msra.mxu0 0
        %4208 = vmatprep.subr.bf16.mxu0 0
        %4209 = vmatpush1.bf16.msra.mxu0 0
        %4210 = vmatprep.subr.bf16.mxu0 0
        %4211 = vmatpush1.bf16.msra.mxu0 0
        %4212 = vmatprep.subr.bf16.mxu0 0
        %4213 = vmatpush1.bf16.msra.mxu0 0
        %4214 = vmatprep.subr.bf16.mxu0 0
        %4215 = vmatpush1.bf16.msra.mxu0 0
        %4216 = vmatprep.subr.bf16.mxu0 0
        %4217 = vmatpush1.bf16.msra.mxu0 0
        %4218 = vmatprep.subr.bf16.mxu0 0
        %4219 = vmatpush1.bf16.msra.mxu0 0
        %4220 = vmatprep.subr.bf16.mxu0 0
        %4221 = vmatpush1.bf16.msra.mxu0 0
        %4222 = vmatprep.mubr.bf16.mxu0 0
        %4223 = vmatmul.mubr.bf16.gmra.mrb[0].mxu0 %v4140
        %v4224 = vpop.f32.mrb[0].mxu0
        %v4225 = vadd.f32 0.0, %v4224
        %v4226 = vpop.f32.mrb[0].mxu0
        %v4227 = vpop.f32.mrb[0].mxu0
        %v4228 = vpop.f32.mrb[0].mxu0
        %4229 = vdwg.mxu0
        %v4230 = vadd.f32 %v4122, %v4225
        %s4231 = scalar_lea.vmem %s7, 960
        %v4232 = vld [vmem:[%s4231] sm:$0xf]
        %v4233 = vld [vmem:[%s4231 + $0x4] sm:$0xf]
        %v4234 = vld [vmem:[%s4231 + $0x8] sm:$0xf]
        %v4235 = vld [vmem:[%s4231 + $0xc] sm:$0xf]
        %v4236 = vld [vmem:[%s4231 + $0x10] sm:$0xf]
        %v4237 = vld [vmem:[%s4231 + $0x14] sm:$0xf]
        %v4238 = vld [vmem:[%s4231 + $0x18] sm:$0xf]
        %v4239 = vld [vmem:[%s4231 + $0x1c] sm:$0xf]
        %v4240 = vld [vmem:[%s4231 + $0x20] sm:$0xf]
        %v4241 = vld [vmem:[%s4231 + $0x24] sm:$0xf]
        %v4242 = vld [vmem:[%s4231 + $0x28] sm:$0xf]
        %v4243 = vld [vmem:[%s4231 + $0x2c] sm:$0xf]
        %v4244 = vld [vmem:[%s4231 + $0x30] sm:$0xf]
        %v4245 = vld [vmem:[%s4231 + $0x34] sm:$0xf]
        %v4246 = vld [vmem:[%s4231 + $0x38] sm:$0xf]
        %v4247 = vld [vmem:[%s4231 + $0x3c] sm:$0xf]
        %v4248 = vrot.slane %v2647, 7
        %v4266 = vunpack.c.l.b16 %v4232
        %v4267 = vunpack.c.l.b16 %v4233
        %v4268 = vunpack.c.l.b16 %v4234
        %v4269 = vunpack.c.l.b16 %v4235
        %v4270 = vunpack.c.l.b16 %v4236
        %v4271 = vunpack.c.l.b16 %v4237
        %v4272 = vunpack.c.l.b16 %v4238
        %v4273 = vunpack.c.l.b16 %v4239
        %v4274 = vunpack.c.l.b16 %v4240
        %v4275 = vunpack.c.l.b16 %v4241
        %v4276 = vunpack.c.l.b16 %v4242
        %v4277 = vunpack.c.l.b16 %v4243
        %v4278 = vunpack.c.l.b16 %v4244
        %v4279 = vunpack.c.l.b16 %v4245
        %v4280 = vunpack.c.l.b16 %v4246
        %v4281 = vunpack.c.l.b16 %v4247
        %v4282 = vpack.c.b16 %v4267, %v4266
        %v4283 = vpack.c.b16 %v4269, %v4268
        %v4284 = vpack.c.b16 %v4271, %v4270
        %v4285 = vpack.c.b16 %v4273, %v4272
        %v4286 = vpack.c.b16 %v4275, %v4274
        %v4287 = vpack.c.b16 %v4277, %v4276
        %v4288 = vpack.c.b16 %v4279, %v4278
        %v4289 = vpack.c.b16 %v4281, %v4280
        %4298 = vmatprep.subr.bf16.mxu0 0
        %4299 = vmatpush1.bf16.msra.mxu0 %v4282
        %4300 = vmatprep.subr.bf16.mxu0 0
        %4301 = vmatpush1.bf16.msra.mxu0 %v4283
        %4302 = vmatprep.subr.bf16.mxu0 0
        %4303 = vmatpush1.bf16.msra.mxu0 %v4284
        %4304 = vmatprep.subr.bf16.mxu0 0
        %4305 = vmatpush1.bf16.msra.mxu0 %v4285
        %4306 = vmatprep.subr.bf16.mxu0 0
        %4307 = vmatpush1.bf16.msra.mxu0 %v4286
        %4308 = vmatprep.subr.bf16.mxu0 0
        %4309 = vmatpush1.bf16.msra.mxu0 %v4287
        %4310 = vmatprep.subr.bf16.mxu0 0
        %4311 = vmatpush1.bf16.msra.mxu0 %v4288
        %4312 = vmatprep.subr.bf16.mxu0 0
        %4313 = vmatpush1.bf16.msra.mxu0 %v4289
        %4314 = vmatprep.subr.bf16.mxu0 0
        %4315 = vmatpush1.bf16.msra.mxu0 0
        %4316 = vmatprep.subr.bf16.mxu0 0
        %4317 = vmatpush1.bf16.msra.mxu0 0
        %4318 = vmatprep.subr.bf16.mxu0 0
        %4319 = vmatpush1.bf16.msra.mxu0 0
        %4320 = vmatprep.subr.bf16.mxu0 0
        %4321 = vmatpush1.bf16.msra.mxu0 0
        %4322 = vmatprep.subr.bf16.mxu0 0
        %4323 = vmatpush1.bf16.msra.mxu0 0
        %4324 = vmatprep.subr.bf16.mxu0 0
        %4325 = vmatpush1.bf16.msra.mxu0 0
        %4326 = vmatprep.subr.bf16.mxu0 0
        %4327 = vmatpush1.bf16.msra.mxu0 0
        %4328 = vmatprep.subr.bf16.mxu0 0
        %4329 = vmatpush1.bf16.msra.mxu0 0
        %4330 = vmatprep.mubr.bf16.mxu0 0
        %4331 = vmatmul.mubr.bf16.gmra.mrb[0].mxu0 %v4248
        %v4332 = vpop.f32.mrb[0].mxu0
        %v4333 = vadd.f32 0.0, %v4332
        %v4334 = vpop.f32.mrb[0].mxu0
        %v4335 = vpop.f32.mrb[0].mxu0
        %v4336 = vpop.f32.mrb[0].mxu0
        %4337 = vdwg.mxu0
        %v4338 = vadd.f32 %v4230, %v4333
        %v4339 = vld [vmem:[%s8] sm:$0x1]
        %v4340 = vadd.f32 %v4338, %v4339
        %v4341 = vmax.f32 %v4340, 0.0
        %vm4342 = vcmask 974848
        %v4343 = vsel %vm4342, %v4341, 0.0
        %4344 = vadd.xlane.f32.xlu0 %v4343
        %v4345 = vpop.xlane.xlu0 %4344
        %v4346 = vrot.slane %v4345, 4
        %v4347 = vadd.f32 %v4345, %v4346
        %v4348 = vrot.slane %v4347, 2
        %v4349 = vadd.f32 %v4347, %v4348
        %v4350 = vrot.slane %v4349, 1
        %v4351 = vadd.f32 %v4349, %v4350
        %s4352 = vtos %v4351
        %v4353 = vstv %s4352
        %v4354 = vrcp.pop 120.0
        %v4355 = vmul.f32 %v4353, %v4354
        %v4356 = vsub.f32 %v4341, %v4355
        %v4357 = vmul.f32 %v4356, %v4356
        %v4358 = vsel %vm4342, %v4357, 0.0
        %4359 = vadd.xlane.f32.xlu0 %v4358
        %v4360 = vpop.xlane.xlu0 %4359
        %v4361 = vrot.slane %v4360, 4
        %v4362 = vadd.f32 %v4360, %v4361
        %v4363 = vrot.slane %v4362, 2
        %v4364 = vadd.f32 %v4362, %v4363
        %v4365 = vrot.slane %v4364, 1
        %v4366 = vadd.f32 %v4364, %v4365
        %s4367 = vtos %v4366
        %v4368 = vstv %s4367
        %v4369 = vmul.f32 %v4368, %v4354
        %v4370 = vadd.f32 %v4369, 1e-05
        %v4371 = vrsqrt.pop %v4370
        %v4372 = vmul.f32 %v4356, %v4371
        %v4373 = vpack.c.bf16 %v4372, %v4372
        %v4374 = vld [vmem:[%s9] sm:$0xf]
        %v4375 = vld [vmem:[%s9 + $0x4] sm:$0xf]
        %v4376 = vld [vmem:[%s9 + $0x8] sm:$0xf]
        %v4377 = vld [vmem:[%s9 + $0xc] sm:$0xf]
        %v4378 = vld [vmem:[%s9 + $0x10] sm:$0xf]
        %v4379 = vld [vmem:[%s9 + $0x14] sm:$0xf]
        %v4380 = vld [vmem:[%s9 + $0x18] sm:$0xf]
        %v4381 = vld [vmem:[%s9 + $0x1c] sm:$0xf]
        %v4382 = vld [vmem:[%s9 + $0x20] sm:$0xf]
        %v4383 = vld [vmem:[%s9 + $0x24] sm:$0xf]
        %v4384 = vld [vmem:[%s9 + $0x28] sm:$0xf]
        %v4385 = vld [vmem:[%s9 + $0x2c] sm:$0xf]
        %v4386 = vld [vmem:[%s9 + $0x30] sm:$0xf]
        %v4387 = vld [vmem:[%s9 + $0x34] sm:$0xf]
        %v4388 = vld [vmem:[%s9 + $0x38] sm:$0xf]
        %v4389 = vld [vmem:[%s9 + $0x3c] sm:$0xf]
        %v4390 = vld [vmem:[%s10] sm:$0x1]
        %v4407 = vunpack.c.l.b16 %v4374
        %v4408 = vunpack.c.l.b16 %v4375
        %v4409 = vunpack.c.l.b16 %v4376
        %v4410 = vunpack.c.l.b16 %v4377
        %v4411 = vunpack.c.l.b16 %v4378
        %v4412 = vunpack.c.l.b16 %v4379
        %v4413 = vunpack.c.l.b16 %v4380
        %v4414 = vunpack.c.l.b16 %v4381
        %v4415 = vunpack.c.l.b16 %v4382
        %v4416 = vunpack.c.l.b16 %v4383
        %v4417 = vunpack.c.l.b16 %v4384
        %v4418 = vunpack.c.l.b16 %v4385
        %v4419 = vunpack.c.l.b16 %v4386
        %v4420 = vunpack.c.l.b16 %v4387
        %v4421 = vunpack.c.l.b16 %v4388
        %v4422 = vunpack.c.l.b16 %v4389
        %v4423 = vpack.c.b16 %v4408, %v4407
        %v4424 = vpack.c.b16 %v4410, %v4409
        %v4425 = vpack.c.b16 %v4412, %v4411
        %v4426 = vpack.c.b16 %v4414, %v4413
        %v4427 = vpack.c.b16 %v4416, %v4415
        %v4428 = vpack.c.b16 %v4418, %v4417
        %v4429 = vpack.c.b16 %v4420, %v4419
        %v4430 = vpack.c.b16 %v4422, %v4421
        %4439 = vmatprep.subr.bf16.mxu0 0
        %4440 = vmatpush1.bf16.msra.mxu0 %v4423
        %4441 = vmatprep.subr.bf16.mxu0 0
        %4442 = vmatpush1.bf16.msra.mxu0 %v4424
        %4443 = vmatprep.subr.bf16.mxu0 0
        %4444 = vmatpush1.bf16.msra.mxu0 %v4425
        %4445 = vmatprep.subr.bf16.mxu0 0
        %4446 = vmatpush1.bf16.msra.mxu0 %v4426
        %4447 = vmatprep.subr.bf16.mxu0 0
        %4448 = vmatpush1.bf16.msra.mxu0 %v4427
        %4449 = vmatprep.subr.bf16.mxu0 0
        %4450 = vmatpush1.bf16.msra.mxu0 %v4428
        %4451 = vmatprep.subr.bf16.mxu0 0
        %4452 = vmatpush1.bf16.msra.mxu0 %v4429
        %4453 = vmatprep.subr.bf16.mxu0 0
        %4454 = vmatpush1.bf16.msra.mxu0 %v4430
        %4455 = vmatprep.subr.bf16.mxu0 0
        %4456 = vmatpush1.bf16.msra.mxu0 0
        %4457 = vmatprep.subr.bf16.mxu0 0
        %4458 = vmatpush1.bf16.msra.mxu0 0
        %4459 = vmatprep.subr.bf16.mxu0 0
        %4460 = vmatpush1.bf16.msra.mxu0 0
        %4461 = vmatprep.subr.bf16.mxu0 0
        %4462 = vmatpush1.bf16.msra.mxu0 0
        %4463 = vmatprep.subr.bf16.mxu0 0
        %4464 = vmatpush1.bf16.msra.mxu0 0
        %4465 = vmatprep.subr.bf16.mxu0 0
        %4466 = vmatpush1.bf16.msra.mxu0 0
        %4467 = vmatprep.subr.bf16.mxu0 0
        %4468 = vmatpush1.bf16.msra.mxu0 0
        %4469 = vmatprep.subr.bf16.mxu0 0
        %4470 = vmatpush1.bf16.msra.mxu0 0
        %4471 = vmatprep.mubr.bf16.mxu0 0
        %4472 = vmatmul.mubr.bf16.gmra.mrb[0].mxu0 %v4373
        %v4473 = vpop.f32.mrb[0].mxu0
        %v4474 = vadd.f32 %v4390, %v4473
        %v4475 = vpop.f32.mrb[0].mxu0
        %v4476 = vpop.f32.mrb[0].mxu0
        %v4477 = vpop.f32.mrb[0].mxu0
        %4478 = vdwg.mxu0
        %v4479 = vmax.f32 %v4474, 0.0
        %vm4480 = vcmask 679936
        %v4481 = vsel %vm4480, %v4479, 0.0
        %4482 = vadd.xlane.f32.xlu0 %v4481
        %v4483 = vpop.xlane.xlu0 %4482
        %v4484 = vrot.slane %v4483, 4
        %v4485 = vadd.f32 %v4483, %v4484
        %v4486 = vrot.slane %v4485, 2
        %v4487 = vadd.f32 %v4485, %v4486
        %v4488 = vrot.slane %v4487, 1
        %v4489 = vadd.f32 %v4487, %v4488
        %s4490 = vtos %v4489
        %v4491 = vstv %s4490
        %v4492 = vrcp.pop 84.0
        %v4493 = vmul.f32 %v4491, %v4492
        %v4494 = vsub.f32 %v4479, %v4493
        %v4495 = vmul.f32 %v4494, %v4494
        %v4496 = vsel %vm4480, %v4495, 0.0
        %4497 = vadd.xlane.f32.xlu0 %v4496
        %v4498 = vpop.xlane.xlu0 %4497
        %v4499 = vrot.slane %v4498, 4
        %v4500 = vadd.f32 %v4498, %v4499
        %v4501 = vrot.slane %v4500, 2
        %v4502 = vadd.f32 %v4500, %v4501
        %v4503 = vrot.slane %v4502, 1
        %v4504 = vadd.f32 %v4502, %v4503
        %s4505 = vtos %v4504
        %v4506 = vstv %s4505
        %v4507 = vmul.f32 %v4506, %v4492
        %v4508 = vadd.f32 %v4507, 1e-05
        %v4509 = vrsqrt.pop %v4508
        %v4510 = vmul.f32 %v4494, %v4509
        %v4511 = vpack.c.bf16 %v4510, %v4510
        %v4512 = vld [vmem:[%s11] sm:$0xf]
        %v4513 = vld [vmem:[%s11 + $0x4] sm:$0xf]
        %v4514 = vld [vmem:[%s11 + $0x8] sm:$0xf]
        %v4515 = vld [vmem:[%s11 + $0xc] sm:$0xf]
        %v4516 = vld [vmem:[%s11 + $0x10] sm:$0xf]
        %v4517 = vld [vmem:[%s11 + $0x14] sm:$0xf]
        %v4518 = vld [vmem:[%s11 + $0x18] sm:$0xf]
        %v4519 = vld [vmem:[%s11 + $0x1c] sm:$0xf]
        %v4520 = vld [vmem:[%s11 + $0x20] sm:$0xf]
        %v4521 = vld [vmem:[%s11 + $0x24] sm:$0xf]
        %v4522 = vld [vmem:[%s11 + $0x28] sm:$0xf]
        %v4523 = vld [vmem:[%s11 + $0x2c] sm:$0xf]
        %v4524 = vld [vmem:[%s11 + $0x30] sm:$0xf]
        %v4525 = vld [vmem:[%s11 + $0x34] sm:$0xf]
        %v4526 = vld [vmem:[%s11 + $0x38] sm:$0xf]
        %v4527 = vld [vmem:[%s11 + $0x3c] sm:$0xf]
        %v4528 = vld [vmem:[%s12] sm:$0x1]
        %v4545 = vunpack.c.l.b16 %v4512
        %v4546 = vunpack.c.l.b16 %v4513
        %v4547 = vunpack.c.l.b16 %v4514
        %v4548 = vunpack.c.l.b16 %v4515
        %v4549 = vunpack.c.l.b16 %v4516
        %v4550 = vunpack.c.l.b16 %v4517
        %v4551 = vunpack.c.l.b16 %v4518
        %v4552 = vunpack.c.l.b16 %v4519
        %v4553 = vunpack.c.l.b16 %v4520
        %v4554 = vunpack.c.l.b16 %v4521
        %v4555 = vunpack.c.l.b16 %v4522
        %v4556 = vunpack.c.l.b16 %v4523
        %v4557 = vunpack.c.l.b16 %v4524
        %v4558 = vunpack.c.l.b16 %v4525
        %v4559 = vunpack.c.l.b16 %v4526
        %v4560 = vunpack.c.l.b16 %v4527
        %v4561 = vpack.c.b16 %v4546, %v4545
        %v4562 = vpack.c.b16 %v4548, %v4547
        %v4563 = vpack.c.b16 %v4550, %v4549
        %v4564 = vpack.c.b16 %v4552, %v4551
        %v4565 = vpack.c.b16 %v4554, %v4553
        %v4566 = vpack.c.b16 %v4556, %v4555
        %v4567 = vpack.c.b16 %v4558, %v4557
        %v4568 = vpack.c.b16 %v4560, %v4559
        %4577 = vmatprep.subr.bf16.mxu0 0
        %4578 = vmatpush1.bf16.msra.mxu0 %v4561
        %4579 = vmatprep.subr.bf16.mxu0 0
        %4580 = vmatpush1.bf16.msra.mxu0 %v4562
        %4581 = vmatprep.subr.bf16.mxu0 0
        %4582 = vmatpush1.bf16.msra.mxu0 %v4563
        %4583 = vmatprep.subr.bf16.mxu0 0
        %4584 = vmatpush1.bf16.msra.mxu0 %v4564
        %4585 = vmatprep.subr.bf16.mxu0 0
        %4586 = vmatpush1.bf16.msra.mxu0 %v4565
        %4587 = vmatprep.subr.bf16.mxu0 0
        %4588 = vmatpush1.bf16.msra.mxu0 %v4566
        %4589 = vmatprep.subr.bf16.mxu0 0
        %4590 = vmatpush1.bf16.msra.mxu0 %v4567
        %4591 = vmatprep.subr.bf16.mxu0 0
        %4592 = vmatpush1.bf16.msra.mxu0 %v4568
        %4593 = vmatprep.subr.bf16.mxu0 0
        %4594 = vmatpush1.bf16.msra.mxu0 0
        %4595 = vmatprep.subr.bf16.mxu0 0
        %4596 = vmatpush1.bf16.msra.mxu0 0
        %4597 = vmatprep.subr.bf16.mxu0 0
        %4598 = vmatpush1.bf16.msra.mxu0 0
        %4599 = vmatprep.subr.bf16.mxu0 0
        %4600 = vmatpush1.bf16.msra.mxu0 0
        %4601 = vmatprep.subr.bf16.mxu0 0
        %4602 = vmatpush1.bf16.msra.mxu0 0
        %4603 = vmatprep.subr.bf16.mxu0 0
        %4604 = vmatpush1.bf16.msra.mxu0 0
        %4605 = vmatprep.subr.bf16.mxu0 0
        %4606 = vmatpush1.bf16.msra.mxu0 0
        %4607 = vmatprep.subr.bf16.mxu0 0
        %4608 = vmatpush1.bf16.msra.mxu0 0
        %4609 = vmatprep.mubr.bf16.mxu0 0
        %4610 = vmatmul.mubr.bf16.gmra.mrb[0].mxu0 %v4511
        %v4611 = vpop.f32.mrb[0].mxu0
        %v4612 = vadd.f32 %v4528, %v4611
        %v4613 = vpop.f32.mrb[0].mxu0
        %v4614 = vpop.f32.mrb[0].mxu0
        %v4615 = vpop.f32.mrb[0].mxu0
        %4616 = vdwg.mxu0
        %4617 = vst [vmem:[%s432] sm:$0x1] %v4612
        %s4618 = sand.u32 %s313, 1
        %s4619 = scalar_lea.sflag [#allocation3], %s4618
        %s4620 = sand.u32 %s313, 1
        %s4621 = scalar_lea.vmem [#allocation2], %s4620
        // Predicated region
        $region73: #{lenet5_forward.1} parent=71 // pred_check
          %p4622 = pneg %p323
        $region74: #{lenet5_forward.1} parent=71 // pred_check_branch
          %4624 = sbr.rel (%p4622) target = $region76
        $region75: #{lenet5_forward.1} parent=71 // pred_region
          %s4626 = ssub.s32 16, 16
          %4627 = vsyncadd %s4619, %s4626
          %s4628 = smul.addr %s27, 16
          %s4629 = scalar_lea.hbm %s13, %s4628
          %s4631 = sshll.u32 %s4621, 4
          %s4632 = int_to_ptr.vmem [resolvable:$true] %s4631
          %4634 = dma.vmem_to_hbm [thread:$0]  %s4632, 16, %s4629, %s4619
        $region76: #{lenet5_forward.1} parent=71 // pred_fallthru
          _
      $region72: #{lenet5_forward.1} parent=5 // pred_fallthru
        _
      %p4635 = scmp.le.s32.totalorder 2, %s22
      // Predicated region
      $region77: #{lenet5_forward.1} parent=5 // pred_check
        %p4636 = pneg %p4635
      $region78: #{lenet5_forward.1} parent=5 // pred_check_branch
        %4638 = sbr.rel (%p4636) target = $region80
      $region79: #{lenet5_forward.1} parent=5 // pred_region
        %s4639 = ssub.s32 %s22, 2
        // Predicated region
        $region81: #{lenet5_forward.1} parent=79 // pred_check
          %p4640 = pneg %p329
        $region82: #{lenet5_forward.1} parent=79 // pred_check_branch
          %4642 = sbr.rel (%p4640) target = $region84
        $region83: #{lenet5_forward.1} parent=79 // pred_region
          %s4643 = sand.u32 %s314, 1
          %s4644 = scalar_lea.sflag [#allocation3], %s4643
          %s4645 = sand.u32 %s314, 1
          %s4646 = scalar_lea.vmem [#allocation2], %s4645
          %4647 = dma.done %s4644, 16
        $region84: #{lenet5_forward.1} parent=79 // pred_fallthru
          _
      $region80: #{lenet5_forward.1} parent=5 // pred_fallthru
        _
    $region6: #{lenet5_forward.1} parent=1 // loop_footer
      %s26 = sadd.s32 1, %s22
    $region7: #{lenet5_forward.1} parent=1 // loop_footer_branch
      %21 = sbr.rel target = $region3
    $region8: #{lenet5_forward.1} parent=1 // loop_exit
      _
    %4648 = vsyncpa [#allocation3], 1
    %s4649 = scalar_lea.sflag [#allocation3], 1
    %4650 = vsyncpa %s4649, 1

</llo_original>
